<compile_context>
chip_gen: v7x
topology: tpu7x:2x2x1
jax: 0.10.0
libtpu: 0.0.40
codegen_flags: <defaults>
</compile_context>

<pallas_src>
import functools

import jax
import jax.numpy as jnp
import numpy as np
from jax.experimental import pallas as pl
from jax.experimental.pallas import tpu as pltpu

NEG_SLOPE = 0.01   # nn.LeakyReLU default negative_slope
BN_EPS = 1e-5      # nn.BatchNorm2d default eps


def _ceil_to(x, m):
    return ((x + m - 1) // m) * m


# --------------------------------------------------------------------------
# Fused Pallas kernel (one batch element per grid step)
# --------------------------------------------------------------------------
def _resnet_block_kernel(*refs, num_conv1, has_proj, Wp, NLC, ROW1,
                         cin_p, cout_p, KMAX):
    x_ref, mask_ref, w3_ref, sb_ref = refs[0], refs[1], refs[2], refs[3]
    idx = 4
    wsc_ref = None
    if has_proj:
        wsc_ref = refs[idx]
        idx += 1
    out_ref = refs[idx]
    buf_a, buf_b = refs[idx + 1], refs[idx + 2]

    OFF = ROW1 - Wp                       # start of the padded image in the flat buffer
    FLAT = buf_a.shape[-1]
    mask = mask_ref[...]                  # (1, NLC) f32: 1.0 on valid output lanes

    def conv3x3(src_ref, layer, K, src_f32):
        # 9 per-tap accumulating matmuls on shifted lane windows of src.
        acc = None
        for t in range(9):
            dy, dx = t // 3, t % 3
            start = OFF + dy * Wp + (dx - 1)
            s = src_ref[:, start:start + NLC]          # (K, NLC)
            if src_f32:
                s = s.astype(jnp.bfloat16)
            w = w3_ref[layer * 9 + t]                  # (cout_p, KMAX) bf16
            if K != KMAX:
                w = w[:, :K]
            d = jnp.dot(w, s, preferred_element_type=jnp.float32)
            acc = d if acc is None else acc + d
        # folded BatchNorm (eval mode)
        return acc * sb_ref[2 * layer] + sb_ref[2 * layer + 1]

    # Zero only the halo margins of the ping-pong buffers; the interior
    # [ROW1, ROW1+NLC) is fully overwritten (mask-zeroed) every layer.
    for buf in (buf_a, buf_b)[:min(num_conv1, 2)]:
        buf[:, :ROW1] = jnp.zeros((cout_p, ROW1), jnp.bfloat16)
        buf[:, ROW1 + NLC:FLAT] = jnp.zeros((cout_p, FLAT - ROW1 - NLC), jnp.bfloat16)

    # ---- conv1 stack: 3x3 conv + BN + LeakyReLU, VMEM-resident (bf16) ----
    src_ref, src_f32, K = x_ref, True, cin_p
    bufs = (buf_a, buf_b)
    for li in range(num_conv1):
        y = conv3x3(src_ref, li, K, src_f32)
        y = jnp.where(y >= 0, y, NEG_SLOPE * y)
        dst = bufs[li % 2]
        # 128-aligned, 128-multiple-wide, single bf16 store; mask keeps pad
        # columns / out-of-image lanes at zero for the next conv's halo.
        dst[:, ROW1:ROW1 + NLC] = (y * mask).astype(jnp.bfloat16)
        src_ref, src_f32, K = dst, False, cout_p

    # ---- conv2 + BN2 (no activation; pointwise at full resolution) ----
    y2 = conv3x3(src_ref, num_conv1, K, src_f32)

    # ---- shortcut + residual add + LeakyReLU epilogue ----
    x_val = x_ref[:, ROW1:ROW1 + NLC]     # original input, rows 1..H (f32)
    if has_proj:
        sc = jnp.dot(wsc_ref[...], x_val.astype(jnp.bfloat16),
                     preferred_element_type=jnp.float32)
        sc = sc * sb_ref[2 * (num_conv1 + 1)] + sb_ref[2 * (num_conv1 + 1) + 1]
    else:
        sc = x_val

    out = y2 + sc
    # NOTE: pad columns / lanes >= H*Wp contain unmasked garbage; the wrapper
    # slices them away immediately. Do not consume out_flat elsewhere.
    out_ref[...] = jnp.where(out >= 0, out, NEG_SLOPE * out)


# --------------------------------------------------------------------------
# Parameter packing helpers (wrapper-side, plain XLA)
# --------------------------------------------------------------------------
def _pack_conv_w(w, kpad, cout_p):
    """(3,3,cin,cout) HWIO -> (9, cout_p, kpad) f32, tap-major."""
    _, _, cin, cout = w.shape
    wt = jnp.transpose(w.astype(jnp.float32).reshape(9, cin, cout), (0, 2, 1))  # (9,cout,cin)
    return jnp.pad(wt, ((0, 0), (0, cout_p - cout), (0, kpad - cin)))


def _col(v, cout_p):
    v = v.astype(jnp.float32)
    return jnp.pad(v, (0, cout_p - v.shape[0])).reshape(cout_p, 1)


# --------------------------------------------------------------------------
# Forward pass wrapper (NCHW in -> NCHW out)
# --------------------------------------------------------------------------
def resnet_block_forward(x_nchw, params, stride):
    N, Cin, H, W = x_nchw.shape
    Cout = params["conv2_w"].shape[-1]
    num_conv1 = len(params["conv1"])
    has_proj = params["shortcut"] is not None

    Wp, Hp = W + 2, H + 2
    NL = H * Wp                               # valid output lanes (rows 1..H, all Wp cols)
    NLC = _ceil_to(NL, 128)                   # lane-dense compute / store width
    ROW1 = _ceil_to(Wp + 1, 128)              # 128-aligned start of row 1 in the flat buffer
    OFF = ROW1 - Wp                           # padded-image origin
    FLAT = _ceil_to(ROW1 + Wp + 1 + NLC, 128)  # flat buffer length (covers all tap reads)
    cin_p = _ceil_to(Cin, 8)
    cout_p = _ceil_to(Cout, 8)
    KMAX = max(cin_p, cout_p)

    # Pad ONCE for the whole block: spatial halo + channel round-up, then place
    # the padded image at OFF inside a zeroed flat (C, FLAT) buffer.
    x = x_nchw.astype(jnp.float32)
    xp = jnp.pad(x, ((0, 0), (0, cin_p - Cin), (1, 1), (1, 1)))        # (N,cin_p,Hp,Wp)
    xp = xp.reshape(N, cin_p, Hp * Wp)
    xp = jnp.pad(xp, ((0, 0), (0, 0), (OFF, FLAT - OFF - Hp * Wp)))    # (N,cin_p,FLAT)

    lane = np.arange(NLC)
    col = lane % Wp
    mask = ((col >= 1) & (col <= W) & (lane < NL)).astype(np.float32)
    mask = jnp.asarray(mask).reshape(1, NLC)

    # Pack weights / BN scale+bias into consolidated slabs.
    w_taps, sb = [], []
    for (w, s, b) in params["conv1"]:
        w_taps.append(_pack_conv_w(w, KMAX, cout_p))
        sb.append(_col(s, cout_p)); sb.append(_col(b, cout_p))
    w_taps.append(_pack_conv_w(params["conv2_w"], KMAX, cout_p))
    sb.append(_col(params["bn2_scale"], cout_p)); sb.append(_col(params["bn2_bias"], cout_p))
    if has_proj:
        ws, ss, bs = params["shortcut"]
        sb.append(_col(ss, cout_p)); sb.append(_col(bs, cout_p))

    w3 = jnp.concatenate(w_taps, axis=0).astype(jnp.bfloat16)   # ((L+1)*9, cout_p, KMAX)
    sb_arr = jnp.stack(sb, axis=0)                              # (2*(L+1+proj), cout_p, 1)

    inputs = [xp, mask, w3, sb_arr]
    in_specs = [
        pl.BlockSpec((None, cin_p, FLAT), lambda n: (n, 0, 0)),
        pl.BlockSpec((1, NLC), lambda n: (0, 0)),
        pl.BlockSpec(w3.shape, lambda n: (0, 0, 0)),
        pl.BlockSpec(sb_arr.shape, lambda n: (0, 0, 0)),
    ]
    if has_proj:
        ws = params["shortcut"][0]                              # (1,1,Cin,Cout)
        wsf = jnp.zeros((cout_p, cin_p), jnp.float32)
        wsf = wsf.at[:Cout, :Cin].set(jnp.transpose(ws.astype(jnp.float32).reshape(Cin, Cout)))
        inputs.append(wsf.astype(jnp.bfloat16))
        in_specs.append(pl.BlockSpec((cout_p, cin_p), lambda n: (0, 0)))

    kernel = functools.partial(
        _resnet_block_kernel, num_conv1=num_conv1, has_proj=has_proj,
        Wp=Wp, NLC=NLC, ROW1=ROW1, cin_p=cin_p, cout_p=cout_p, KMAX=KMAX)

    out_flat = pl.pallas_call(
        kernel,
        out_shape=jax.ShapeDtypeStruct((N, cout_p, NLC), jnp.float32),
        grid=(N,),
        in_specs=in_specs,
        out_specs=pl.BlockSpec((None, cout_p, NLC), lambda n: (n, 0, 0)),
        scratch_shapes=[pltpu.VMEM((cout_p, FLAT), jnp.bfloat16),
                        pltpu.VMEM((cout_p, FLAT), jnp.bfloat16)],
        compiler_params=pltpu.CompilerParams(
            dimension_semantics=("parallel",),
            vmem_limit_bytes=64 * 1024 * 1024),
    )(*inputs)

    # (C, H*Wp) is already NCHW-ordered: drop channel/lane padding, drop the
    # halo column and apply the stride (the pointwise epilogue commutes with
    # subsampling, so this is exact).
    out = out_flat[:, :Cout, :NL].reshape(N, Cout, H, Wp)
    return out[:, :, ::stride, 1:1 + W:stride]


# --------------------------------------------------------------------------
# Parameter construction (deterministic, synthetic; BN folded = eval mode)
# --------------------------------------------------------------------------
def _make_bn(key, c):
    k1, k2, k3, k4 = jax.random.split(key, 4)
    gamma = jax.random.uniform(k1, (c,), jnp.float32, 0.5, 1.5)
    beta = 0.1 * jax.random.normal(k2, (c,), jnp.float32)
    mean = 0.1 * jax.random.normal(k3, (c,), jnp.float32)
    var = jax.random.uniform(k4, (c,), jnp.float32, 0.5, 1.5)
    scale = gamma / jnp.sqrt(var + BN_EPS)
    bias = beta - mean * scale
    return scale, bias


def init_params(key, in_c, out_c, num_conv1_layers, stride):
    keys = iter(jax.random.split(key, 2 * num_conv1_layers + 4))
    conv1 = []
    c_prev = in_c
    for _ in range(num_conv1_layers):
        w = 0.1 * jax.random.normal(next(keys), (3, 3, c_prev, out_c), jnp.float32)
        s, b = _make_bn(next(keys), out_c)
        conv1.append((w, s, b))
        c_prev = out_c
    conv2_w = 0.1 * jax.random.normal(next(keys), (3, 3, out_c, out_c), jnp.float32)
    bn2_s, bn2_b = _make_bn(next(keys), out_c)
    if in_c != out_c or stride != 1:
        ws = 0.1 * jax.random.normal(next(keys), (1, 1, in_c, out_c), jnp.float32)
        ss, bs = _make_bn(next(keys), out_c)
        shortcut = (ws, ss, bs)
    else:
        shortcut = None
    return dict(conv1=conv1, conv2_w=conv2_w, bn2_scale=bn2_s, bn2_bias=bn2_b,
                shortcut=shortcut)


# --------------------------------------------------------------------------
# Pure-JAX reference (same bf16-input / f32-accumulation arithmetic)
# --------------------------------------------------------------------------
def ref_forward(x_nchw, params, stride):
    x = x_nchw.astype(jnp.float32)

    def conv(inp, w, s, pad):
        return jax.lax.conv_general_dilated(
            inp.astype(jnp.bfloat16), w.astype(jnp.bfloat16),
            window_strides=(s, s), padding=[(pad, pad), (pad, pad)],
            dimension_numbers=("NCHW", "HWIO", "NCHW"),
            preferred_element_type=jnp.float32)

    def bn(y, s, b):
        return y * s.reshape(1, -1, 1, 1) + b.reshape(1, -1, 1, 1)

    def lrelu(y):
        return jnp.where(y >= 0, y, NEG_SLOPE * y)

    residual = x
    h = x
    for (w, s, b) in params["conv1"]:
        h = lrelu(bn(conv(h, w, 1, 1), s, b))
    out = bn(conv(h, params["conv2_w"], stride, 1),
             params["bn2_scale"], params["bn2_bias"])
    if params["shortcut"] is None:
        sc = residual
    else:
        ws, ss, bs = params["shortcut"]
        sc = bn(conv(residual, ws, stride, 0), ss, bs)
    return lrelu(out + sc)


# --------------------------------------------------------------------------
if __name__ == "__main__":
    key = jax.random.PRNGKey(0)
    kx, kp, kx2, kp2 = jax.random.split(key, 4)

    # Config A: projection shortcut (in_c != out_c, stride 2).
    in_c, out_c, L, stride = 4, 8, 2, 2
    x = jax.random.normal(kx, (2, in_c, 16, 16), jnp.float32)   # NCHW like PyTorch
    params = init_params(kp, in_c, out_c, L, stride)
    out = jax.block_until_ready(resnet_block_forward(x, params, stride))
    assert out.shape == (2, out_c, 8, 8), out.shape
    ref = jax.block_until_ready(ref_forward(x, params, stride))
    np.testing.assert_allclose(np.asarray(out), np.asarray(ref), atol=2e-3, rtol=2e-3)

    # Config B: identity shortcut (in_c == out_c, stride 1).
    x2 = jax.random.normal(kx2, (2, out_c, 16, 16), jnp.float32)
    params2 = init_params(kp2, out_c, out_c, L, 1)
    out2 = jax.block_until_ready(resnet_block_forward(x2, params2, 1))
    assert out2.shape == (2, out_c, 16, 16), out2.shape
    ref2 = jax.block_until_ready(ref_forward(x2, params2, 1))
    np.testing.assert_allclose(np.asarray(out2), np.asarray(ref2), atol=2e-3, rtol=2e-3)

    print("KERNEL_OK")
</pallas_src>

<mosaic_0001>
module attributes {stable_mosaic.version = 11 : i64} {
  func.func @_resnet_block_kernel(%arg0: i32, %arg1: memref<1x8x640xf32, #tpu.memory_space<vmem>>, %arg2: memref<1x384xf32, #tpu.memory_space<vmem>>, %arg3: memref<27x8x8xbf16, #tpu.memory_space<vmem>>, %arg4: memref<8x8x1xf32, #tpu.memory_space<vmem>>, %arg5: memref<8x8xbf16, #tpu.memory_space<vmem>>, %arg6: memref<1x8x384xf32, #tpu.memory_space<vmem>>, %arg7: memref<8x640xbf16, #tpu.memory_space<vmem>>, %arg8: memref<8x640xbf16, #tpu.memory_space<vmem>>) attributes {dimension_semantics = [#tpu.dimension_semantics<parallel>], iteration_bounds = array<i64: 2>, scalar_prefetch = 0 : i64, scratch_operands = 2 : i64, tpu.core_type = #tpu.core_type<tc>, window_params = [{transform_indices = @transform_0, window_bounds = array<i64: 1, 8, 640>}, {pipeline_mode = #tpu.pipeline_mode<synchronous>, transform_indices = @transform_1, window_bounds = array<i64: 1, 384>}, {pipeline_mode = #tpu.pipeline_mode<synchronous>, transform_indices = @transform_2, window_bounds = array<i64: 27, 8, 8>}, {pipeline_mode = #tpu.pipeline_mode<synchronous>, transform_indices = @transform_3, window_bounds = array<i64: 8, 8, 1>}, {pipeline_mode = #tpu.pipeline_mode<synchronous>, transform_indices = @transform_4, window_bounds = array<i64: 8, 8>}, {transform_indices = @transform_5, window_bounds = array<i64: 1, 8, 384>}]} {
    %c0 = arith.constant 0 : index
    %c0_0 = arith.constant 0 : index
    %0 = vector.load %arg2[%c0, %c0_0] : memref<1x384xf32, #tpu.memory_space<vmem>>, vector<1x384xf32>
    %cst = arith.constant 0.000000e+00 : bf16
    %1 = vector.broadcast %cst : bf16 to vector<8x128xbf16>
    %c0_1 = arith.constant 0 : index
    %c0_2 = arith.constant 0 : index
    %2 = vector.load %arg7[%c0_1, %c0_2] : memref<8x640xbf16, #tpu.memory_space<vmem>>, vector<8x128xbf16>
    tpu.vector_store %arg7[%c0_1, %c0_2], %1 {strides = array<i32>} : memref<8x640xbf16, #tpu.memory_space<vmem>>, vector<8x128xbf16>,
    %cst_3 = arith.constant 0.000000e+00 : bf16
    %3 = vector.broadcast %cst_3 : bf16 to vector<8x128xbf16>
    %c0_4 = arith.constant 0 : index
    %c512 = arith.constant 512 : index
    %4 = vector.load %arg7[%c0_4, %c512] : memref<8x640xbf16, #tpu.memory_space<vmem>>, vector<8x128xbf16>
    tpu.vector_store %arg7[%c0_4, %c512], %3 {strides = array<i32>} : memref<8x640xbf16, #tpu.memory_space<vmem>>, vector<8x128xbf16>,
    %cst_5 = arith.constant 0.000000e+00 : bf16
    %5 = vector.broadcast %cst_5 : bf16 to vector<8x128xbf16>
    %c0_6 = arith.constant 0 : index
    %c0_7 = arith.constant 0 : index
    %6 = vector.load %arg8[%c0_6, %c0_7] : memref<8x640xbf16, #tpu.memory_space<vmem>>, vector<8x128xbf16>
    tpu.vector_store %arg8[%c0_6, %c0_7], %5 {strides = array<i32>} : memref<8x640xbf16, #tpu.memory_space<vmem>>, vector<8x128xbf16>,
    %cst_8 = arith.constant 0.000000e+00 : bf16
    %7 = vector.broadcast %cst_8 : bf16 to vector<8x128xbf16>
    %c0_9 = arith.constant 0 : index
    %c512_10 = arith.constant 512 : index
    %8 = vector.load %arg8[%c0_9, %c512_10] : memref<8x640xbf16, #tpu.memory_space<vmem>>, vector<8x128xbf16>
    tpu.vector_store %arg8[%c0_9, %c512_10], %7 {strides = array<i32>} : memref<8x640xbf16, #tpu.memory_space<vmem>>, vector<8x128xbf16>,
    %c0_11 = arith.constant 0 : index
    %c0_12 = arith.constant 0 : index
    %c109 = arith.constant 109 : index
    %9 = vector.load %arg1[%c0_11, %c0_12, %c109] : memref<1x8x640xf32, #tpu.memory_space<vmem>>, vector<1x8x384xf32>
    %10 = vector.shape_cast %9 : vector<1x8x384xf32> to vector<8x384xf32>
    %11 = arith.truncf %10 : vector<8x384xf32> to vector<8x384xbf16>
    %c0_13 = arith.constant 0 : index
    %c0_14 = arith.constant 0 : index
    %c0_15 = arith.constant 0 : index
    %12 = vector.load %arg3[%c0_13, %c0_14, %c0_15] : memref<27x8x8xbf16, #tpu.memory_space<vmem>>, vector<1x8x8xbf16>
    %13 = vector.shape_cast %12 : vector<1x8x8xbf16> to vector<8x8xbf16>
    %cst_16 = arith.constant dense<0.000000e+00> : vector<8x384xf32>
    %14 = tpu.matmul %13, %11, %cst_16 {dimension_numbers = #tpu.dot_dimension_numbers<[1], [0], [0], [1], [0, 0, 1, 1], [], []>} : vector<8x8xbf16>, vector<8x384xbf16>, vector<8x384xf32> -> vector<8x384xf32>
    %c0_17 = arith.constant 0 : index
    %c0_18 = arith.constant 0 : index
    %c110 = arith.constant 110 : index
    %15 = vector.load %arg1[%c0_17, %c0_18, %c110] : memref<1x8x640xf32, #tpu.memory_space<vmem>>, vector<1x8x384xf32>
    %16 = vector.shape_cast %15 : vector<1x8x384xf32> to vector<8x384xf32>
    %17 = arith.truncf %16 : vector<8x384xf32> to vector<8x384xbf16>
    %c1 = arith.constant 1 : index
    %c0_19 = arith.constant 0 : index
    %c0_20 = arith.constant 0 : index
    %18 = vector.load %arg3[%c1, %c0_19, %c0_20] : memref<27x8x8xbf16, #tpu.memory_space<vmem>>, vector<1x8x8xbf16>
    %19 = vector.shape_cast %18 : vector<1x8x8xbf16> to vector<8x8xbf16>
    %cst_21 = arith.constant dense<0.000000e+00> : vector<8x384xf32>
    %20 = tpu.matmul %19, %17, %cst_21 {dimension_numbers = #tpu.dot_dimension_numbers<[1], [0], [0], [1], [0, 0, 1, 1], [], []>} : vector<8x8xbf16>, vector<8x384xbf16>, vector<8x384xf32> -> vector<8x384xf32>
    %21 = arith.addf %14, %20 : vector<8x384xf32>
    %c0_22 = arith.constant 0 : index
    %c0_23 = arith.constant 0 : index
    %c111 = arith.constant 111 : index
    %22 = vector.load %arg1[%c0_22, %c0_23, %c111] : memref<1x8x640xf32, #tpu.memory_space<vmem>>, vector<1x8x384xf32>
    %23 = vector.shape_cast %22 : vector<1x8x384xf32> to vector<8x384xf32>
    %24 = arith.truncf %23 : vector<8x384xf32> to vector<8x384xbf16>
    %c2 = arith.constant 2 : index
    %c0_24 = arith.constant 0 : index
    %c0_25 = arith.constant 0 : index
    %25 = vector.load %arg3[%c2, %c0_24, %c0_25] : memref<27x8x8xbf16, #tpu.memory_space<vmem>>, vector<1x8x8xbf16>
    %26 = vector.shape_cast %25 : vector<1x8x8xbf16> to vector<8x8xbf16>
    %cst_26 = arith.constant dense<0.000000e+00> : vector<8x384xf32>
    %27 = tpu.matmul %26, %24, %cst_26 {dimension_numbers = #tpu.dot_dimension_numbers<[1], [0], [0], [1], [0, 0, 1, 1], [], []>} : vector<8x8xbf16>, vector<8x384xbf16>, vector<8x384xf32> -> vector<8x384xf32>
    %28 = arith.addf %21, %27 : vector<8x384xf32>
    %c0_27 = arith.constant 0 : index
    %c0_28 = arith.constant 0 : index
    %c127 = arith.constant 127 : index
    %29 = vector.load %arg1[%c0_27, %c0_28, %c127] : memref<1x8x640xf32, #tpu.memory_space<vmem>>, vector<1x8x384xf32>
    %30 = vector.shape_cast %29 : vector<1x8x384xf32> to vector<8x384xf32>
    %31 = arith.truncf %30 : vector<8x384xf32> to vector<8x384xbf16>
    %c3 = arith.constant 3 : index
    %c0_29 = arith.constant 0 : index
    %c0_30 = arith.constant 0 : index
    %32 = vector.load %arg3[%c3, %c0_29, %c0_30] : memref<27x8x8xbf16, #tpu.memory_space<vmem>>, vector<1x8x8xbf16>
    %33 = vector.shape_cast %32 : vector<1x8x8xbf16> to vector<8x8xbf16>
    %cst_31 = arith.constant dense<0.000000e+00> : vector<8x384xf32>
    %34 = tpu.matmul %33, %31, %cst_31 {dimension_numbers = #tpu.dot_dimension_numbers<[1], [0], [0], [1], [0, 0, 1, 1], [], []>} : vector<8x8xbf16>, vector<8x384xbf16>, vector<8x384xf32> -> vector<8x384xf32>
    %35 = arith.addf %28, %34 : vector<8x384xf32>
    %c0_32 = arith.constant 0 : index
    %c0_33 = arith.constant 0 : index
    %c128 = arith.constant 128 : index
    %36 = vector.load %arg1[%c0_32, %c0_33, %c128] : memref<1x8x640xf32, #tpu.memory_space<vmem>>, vector<1x8x384xf32>
    %37 = vector.shape_cast %36 : vector<1x8x384xf32> to vector<8x384xf32>
    %38 = arith.truncf %37 : vector<8x384xf32> to vector<8x384xbf16>
    %c4 = arith.constant 4 : index
    %c0_34 = arith.constant 0 : index
    %c0_35 = arith.constant 0 : index
    %39 = vector.load %arg3[%c4, %c0_34, %c0_35] : memref<27x8x8xbf16, #tpu.memory_space<vmem>>, vector<1x8x8xbf16>
    %40 = vector.shape_cast %39 : vector<1x8x8xbf16> to vector<8x8xbf16>
    %cst_36 = arith.constant dense<0.000000e+00> : vector<8x384xf32>
    %41 = tpu.matmul %40, %38, %cst_36 {dimension_numbers = #tpu.dot_dimension_numbers<[1], [0], [0], [1], [0, 0, 1, 1], [], []>} : vector<8x8xbf16>, vector<8x384xbf16>, vector<8x384xf32> -> vector<8x384xf32>
    %42 = arith.addf %35, %41 : vector<8x384xf32>
    %c0_37 = arith.constant 0 : index
    %c0_38 = arith.constant 0 : index
    %c129 = arith.constant 129 : index
    %43 = vector.load %arg1[%c0_37, %c0_38, %c129] : memref<1x8x640xf32, #tpu.memory_space<vmem>>, vector<1x8x384xf32>
    %44 = vector.shape_cast %43 : vector<1x8x384xf32> to vector<8x384xf32>
    %45 = arith.truncf %44 : vector<8x384xf32> to vector<8x384xbf16>
    %c5 = arith.constant 5 : index
    %c0_39 = arith.constant 0 : index
    %c0_40 = arith.constant 0 : index
    %46 = vector.load %arg3[%c5, %c0_39, %c0_40] : memref<27x8x8xbf16, #tpu.memory_space<vmem>>, vector<1x8x8xbf16>
    %47 = vector.shape_cast %46 : vector<1x8x8xbf16> to vector<8x8xbf16>
    %cst_41 = arith.constant dense<0.000000e+00> : vector<8x384xf32>
    %48 = tpu.matmul %47, %45, %cst_41 {dimension_numbers = #tpu.dot_dimension_numbers<[1], [0], [0], [1], [0, 0, 1, 1], [], []>} : vector<8x8xbf16>, vector<8x384xbf16>, vector<8x384xf32> -> vector<8x384xf32>
    %49 = arith.addf %42, %48 : vector<8x384xf32>
    %c0_42 = arith.constant 0 : index
    %c0_43 = arith.constant 0 : index
    %c145 = arith.constant 145 : index
    %50 = vector.load %arg1[%c0_42, %c0_43, %c145] : memref<1x8x640xf32, #tpu.memory_space<vmem>>, vector<1x8x384xf32>
    %51 = vector.shape_cast %50 : vector<1x8x384xf32> to vector<8x384xf32>
    %52 = arith.truncf %51 : vector<8x384xf32> to vector<8x384xbf16>
    %c6 = arith.constant 6 : index
    %c0_44 = arith.constant 0 : index
    %c0_45 = arith.constant 0 : index
    %53 = vector.load %arg3[%c6, %c0_44, %c0_45] : memref<27x8x8xbf16, #tpu.memory_space<vmem>>, vector<1x8x8xbf16>
    %54 = vector.shape_cast %53 : vector<1x8x8xbf16> to vector<8x8xbf16>
    %cst_46 = arith.constant dense<0.000000e+00> : vector<8x384xf32>
    %55 = tpu.matmul %54, %52, %cst_46 {dimension_numbers = #tpu.dot_dimension_numbers<[1], [0], [0], [1], [0, 0, 1, 1], [], []>} : vector<8x8xbf16>, vector<8x384xbf16>, vector<8x384xf32> -> vector<8x384xf32>
    %56 = arith.addf %49, %55 : vector<8x384xf32>
    %c0_47 = arith.constant 0 : index
    %c0_48 = arith.constant 0 : index
    %c146 = arith.constant 146 : index
    %57 = vector.load %arg1[%c0_47, %c0_48, %c146] : memref<1x8x640xf32, #tpu.memory_space<vmem>>, vector<1x8x384xf32>
    %58 = vector.shape_cast %57 : vector<1x8x384xf32> to vector<8x384xf32>
    %59 = arith.truncf %58 : vector<8x384xf32> to vector<8x384xbf16>
    %c7 = arith.constant 7 : index
    %c0_49 = arith.constant 0 : index
    %c0_50 = arith.constant 0 : index
    %60 = vector.load %arg3[%c7, %c0_49, %c0_50] : memref<27x8x8xbf16, #tpu.memory_space<vmem>>, vector<1x8x8xbf16>
    %61 = vector.shape_cast %60 : vector<1x8x8xbf16> to vector<8x8xbf16>
    %cst_51 = arith.constant dense<0.000000e+00> : vector<8x384xf32>
    %62 = tpu.matmul %61, %59, %cst_51 {dimension_numbers = #tpu.dot_dimension_numbers<[1], [0], [0], [1], [0, 0, 1, 1], [], []>} : vector<8x8xbf16>, vector<8x384xbf16>, vector<8x384xf32> -> vector<8x384xf32>
    %63 = arith.addf %56, %62 : vector<8x384xf32>
    %c0_52 = arith.constant 0 : index
    %c0_53 = arith.constant 0 : index
    %c147 = arith.constant 147 : index
    %64 = vector.load %arg1[%c0_52, %c0_53, %c147] : memref<1x8x640xf32, #tpu.memory_space<vmem>>, vector<1x8x384xf32>
    %65 = vector.shape_cast %64 : vector<1x8x384xf32> to vector<8x384xf32>
    %66 = arith.truncf %65 : vector<8x384xf32> to vector<8x384xbf16>
    %c8 = arith.constant 8 : index
    %c0_54 = arith.constant 0 : index
    %c0_55 = arith.constant 0 : index
    %67 = vector.load %arg3[%c8, %c0_54, %c0_55] : memref<27x8x8xbf16, #tpu.memory_space<vmem>>, vector<1x8x8xbf16>
    %68 = vector.shape_cast %67 : vector<1x8x8xbf16> to vector<8x8xbf16>
    %cst_56 = arith.constant dense<0.000000e+00> : vector<8x384xf32>
    %69 = tpu.matmul %68, %66, %cst_56 {dimension_numbers = #tpu.dot_dimension_numbers<[1], [0], [0], [1], [0, 0, 1, 1], [], []>} : vector<8x8xbf16>, vector<8x384xbf16>, vector<8x384xf32> -> vector<8x384xf32>
    %70 = arith.addf %63, %69 : vector<8x384xf32>
    %c0_57 = arith.constant 0 : index
    %c0_58 = arith.constant 0 : index
    %c0_59 = arith.constant 0 : index
    %71 = vector.load %arg4[%c0_57, %c0_58, %c0_59] : memref<8x8x1xf32, #tpu.memory_space<vmem>>, vector<1x8x1xf32>
    %72 = vector.shape_cast %71 : vector<1x8x1xf32> to vector<8x1xf32>
    %73 = vector.broadcast %72 : vector<8x1xf32> to vector<8x384xf32>
    %74 = arith.mulf %70, %73 : vector<8x384xf32>
    %c1_60 = arith.constant 1 : index
    %c0_61 = arith.constant 0 : index
    %c0_62 = arith.constant 0 : index
    %75 = vector.load %arg4[%c1_60, %c0_61, %c0_62] : memref<8x8x1xf32, #tpu.memory_space<vmem>>, vector<1x8x1xf32>
    %76 = vector.shape_cast %75 : vector<1x8x1xf32> to vector<8x1xf32>
    %77 = vector.broadcast %76 : vector<8x1xf32> to vector<8x384xf32>
    %78 = arith.addf %74, %77 : vector<8x384xf32>
    %cst_63 = arith.constant 0.000000e+00 : f32
    %79 = vector.broadcast %cst_63 : f32 to vector<8x384xf32>
    %80 = arith.cmpf oge, %78, %79 : vector<8x384xf32>
    %cst_64 = arith.constant 0.00999999977 : f32
    %81 = vector.broadcast %cst_64 : f32 to vector<8x384xf32>
    %82 = arith.mulf %81, %78 : vector<8x384xf32>
    %83 = arith.select %80, %78, %82 : vector<8x384xi1>, vector<8x384xf32>
    %84 = vector.broadcast %0 : vector<1x384xf32> to vector<8x384xf32>
    %85 = arith.mulf %83, %84 : vector<8x384xf32>
    %86 = arith.truncf %85 : vector<8x384xf32> to vector<8x384xbf16>
    %c0_65 = arith.constant 0 : index
    %c128_66 = arith.constant 128 : index
    %87 = vector.load %arg7[%c0_65, %c128_66] : memref<8x640xbf16, #tpu.memory_space<vmem>>, vector<8x384xbf16>
    tpu.vector_store %arg7[%c0_65, %c128_66], %86 {strides = array<i32>} : memref<8x640xbf16, #tpu.memory_space<vmem>>, vector<8x384xbf16>,
    %c0_67 = arith.constant 0 : index
    %c109_68 = arith.constant 109 : index
    %88 = vector.load %arg7[%c0_67, %c109_68] : memref<8x640xbf16, #tpu.memory_space<vmem>>, vector<8x384xbf16>
    %c9 = arith.constant 9 : index
    %c0_69 = arith.constant 0 : index
    %c0_70 = arith.constant 0 : index
    %89 = vector.load %arg3[%c9, %c0_69, %c0_70] : memref<27x8x8xbf16, #tpu.memory_space<vmem>>, vector<1x8x8xbf16>
    %90 = vector.shape_cast %89 : vector<1x8x8xbf16> to vector<8x8xbf16>
    %cst_71 = arith.constant dense<0.000000e+00> : vector<8x384xf32>
    %91 = tpu.matmul %90, %88, %cst_71 {dimension_numbers = #tpu.dot_dimension_numbers<[1], [0], [0], [1], [0, 0, 1, 1], [], []>} : vector<8x8xbf16>, vector<8x384xbf16>, vector<8x384xf32> -> vector<8x384xf32>
    %c0_72 = arith.constant 0 : index
    %c110_73 = arith.constant 110 : index
    %92 = vector.load %arg7[%c0_72, %c110_73] : memref<8x640xbf16, #tpu.memory_space<vmem>>, vector<8x384xbf16>
    %c10 = arith.constant 10 : index
    %c0_74 = arith.constant 0 : index
    %c0_75 = arith.constant 0 : index
    %93 = vector.load %arg3[%c10, %c0_74, %c0_75] : memref<27x8x8xbf16, #tpu.memory_space<vmem>>, vector<1x8x8xbf16>
    %94 = vector.shape_cast %93 : vector<1x8x8xbf16> to vector<8x8xbf16>
    %cst_76 = arith.constant dense<0.000000e+00> : vector<8x384xf32>
    %95 = tpu.matmul %94, %92, %cst_76 {dimension_numbers = #tpu.dot_dimension_numbers<[1], [0], [0], [1], [0, 0, 1, 1], [], []>} : vector<8x8xbf16>, vector<8x384xbf16>, vector<8x384xf32> -> vector<8x384xf32>
    %96 = arith.addf %91, %95 : vector<8x384xf32>
    %c0_77 = arith.constant 0 : index
    %c111_78 = arith.constant 111 : index
    %97 = vector.load %arg7[%c0_77, %c111_78] : memref<8x640xbf16, #tpu.memory_space<vmem>>, vector<8x384xbf16>
    %c11 = arith.constant 11 : index
    %c0_79 = arith.constant 0 : index
    %c0_80 = arith.constant 0 : index
    %98 = vector.load %arg3[%c11, %c0_79, %c0_80] : memref<27x8x8xbf16, #tpu.memory_space<vmem>>, vector<1x8x8xbf16>
    %99 = vector.shape_cast %98 : vector<1x8x8xbf16> to vector<8x8xbf16>
    %cst_81 = arith.constant dense<0.000000e+00> : vector<8x384xf32>
    %100 = tpu.matmul %99, %97, %cst_81 {dimension_numbers = #tpu.dot_dimension_numbers<[1], [0], [0], [1], [0, 0, 1, 1], [], []>} : vector<8x8xbf16>, vector<8x384xbf16>, vector<8x384xf32> -> vector<8x384xf32>
    %101 = arith.addf %96, %100 : vector<8x384xf32>
    %c0_82 = arith.constant 0 : index
    %c127_83 = arith.constant 127 : index
    %102 = vector.load %arg7[%c0_82, %c127_83] : memref<8x640xbf16, #tpu.memory_space<vmem>>, vector<8x384xbf16>
    %c12 = arith.constant 12 : index
    %c0_84 = arith.constant 0 : index
    %c0_85 = arith.constant 0 : index
    %103 = vector.load %arg3[%c12, %c0_84, %c0_85] : memref<27x8x8xbf16, #tpu.memory_space<vmem>>, vector<1x8x8xbf16>
    %104 = vector.shape_cast %103 : vector<1x8x8xbf16> to vector<8x8xbf16>
    %cst_86 = arith.constant dense<0.000000e+00> : vector<8x384xf32>
    %105 = tpu.matmul %104, %102, %cst_86 {dimension_numbers = #tpu.dot_dimension_numbers<[1], [0], [0], [1], [0, 0, 1, 1], [], []>} : vector<8x8xbf16>, vector<8x384xbf16>, vector<8x384xf32> -> vector<8x384xf32>
    %106 = arith.addf %101, %105 : vector<8x384xf32>
    %c0_87 = arith.constant 0 : index
    %c128_88 = arith.constant 128 : index
    %107 = vector.load %arg7[%c0_87, %c128_88] : memref<8x640xbf16, #tpu.memory_space<vmem>>, vector<8x384xbf16>
    %c13 = arith.constant 13 : index
    %c0_89 = arith.constant 0 : index
    %c0_90 = arith.constant 0 : index
    %108 = vector.load %arg3[%c13, %c0_89, %c0_90] : memref<27x8x8xbf16, #tpu.memory_space<vmem>>, vector<1x8x8xbf16>
    %109 = vector.shape_cast %108 : vector<1x8x8xbf16> to vector<8x8xbf16>
    %cst_91 = arith.constant dense<0.000000e+00> : vector<8x384xf32>
    %110 = tpu.matmul %109, %107, %cst_91 {dimension_numbers = #tpu.dot_dimension_numbers<[1], [0], [0], [1], [0, 0, 1, 1], [], []>} : vector<8x8xbf16>, vector<8x384xbf16>, vector<8x384xf32> -> vector<8x384xf32>
    %111 = arith.addf %106, %110 : vector<8x384xf32>
    %c0_92 = arith.constant 0 : index
    %c129_93 = arith.constant 129 : index
    %112 = vector.load %arg7[%c0_92, %c129_93] : memref<8x640xbf16, #tpu.memory_space<vmem>>, vector<8x384xbf16>
    %c14 = arith.constant 14 : index
    %c0_94 = arith.constant 0 : index
    %c0_95 = arith.constant 0 : index
    %113 = vector.load %arg3[%c14, %c0_94, %c0_95] : memref<27x8x8xbf16, #tpu.memory_space<vmem>>, vector<1x8x8xbf16>
    %114 = vector.shape_cast %113 : vector<1x8x8xbf16> to vector<8x8xbf16>
    %cst_96 = arith.constant dense<0.000000e+00> : vector<8x384xf32>
    %115 = tpu.matmul %114, %112, %cst_96 {dimension_numbers = #tpu.dot_dimension_numbers<[1], [0], [0], [1], [0, 0, 1, 1], [], []>} : vector<8x8xbf16>, vector<8x384xbf16>, vector<8x384xf32> -> vector<8x384xf32>
    %116 = arith.addf %111, %115 : vector<8x384xf32>
    %c0_97 = arith.constant 0 : index
    %c145_98 = arith.constant 145 : index
    %117 = vector.load %arg7[%c0_97, %c145_98] : memref<8x640xbf16, #tpu.memory_space<vmem>>, vector<8x384xbf16>
    %c15 = arith.constant 15 : index
    %c0_99 = arith.constant 0 : index
    %c0_100 = arith.constant 0 : index
    %118 = vector.load %arg3[%c15, %c0_99, %c0_100] : memref<27x8x8xbf16, #tpu.memory_space<vmem>>, vector<1x8x8xbf16>
    %119 = vector.shape_cast %118 : vector<1x8x8xbf16> to vector<8x8xbf16>
    %cst_101 = arith.constant dense<0.000000e+00> : vector<8x384xf32>
    %120 = tpu.matmul %119, %117, %cst_101 {dimension_numbers = #tpu.dot_dimension_numbers<[1], [0], [0], [1], [0, 0, 1, 1], [], []>} : vector<8x8xbf16>, vector<8x384xbf16>, vector<8x384xf32> -> vector<8x384xf32>
    %121 = arith.addf %116, %120 : vector<8x384xf32>
    %c0_102 = arith.constant 0 : index
    %c146_103 = arith.constant 146 : index
    %122 = vector.load %arg7[%c0_102, %c146_103] : memref<8x640xbf16, #tpu.memory_space<vmem>>, vector<8x384xbf16>
    %c16 = arith.constant 16 : index
    %c0_104 = arith.constant 0 : index
    %c0_105 = arith.constant 0 : index
    %123 = vector.load %arg3[%c16, %c0_104, %c0_105] : memref<27x8x8xbf16, #tpu.memory_space<vmem>>, vector<1x8x8xbf16>
    %124 = vector.shape_cast %123 : vector<1x8x8xbf16> to vector<8x8xbf16>
    %cst_106 = arith.constant dense<0.000000e+00> : vector<8x384xf32>
    %125 = tpu.matmul %124, %122, %cst_106 {dimension_numbers = #tpu.dot_dimension_numbers<[1], [0], [0], [1], [0, 0, 1, 1], [], []>} : vector<8x8xbf16>, vector<8x384xbf16>, vector<8x384xf32> -> vector<8x384xf32>
    %126 = arith.addf %121, %125 : vector<8x384xf32>
    %c0_107 = arith.constant 0 : index
    %c147_108 = arith.constant 147 : index
    %127 = vector.load %arg7[%c0_107, %c147_108] : memref<8x640xbf16, #tpu.memory_space<vmem>>, vector<8x384xbf16>
    %c17 = arith.constant 17 : index
    %c0_109 = arith.constant 0 : index
    %c0_110 = arith.constant 0 : index
    %128 = vector.load %arg3[%c17, %c0_109, %c0_110] : memref<27x8x8xbf16, #tpu.memory_space<vmem>>, vector<1x8x8xbf16>
    %129 = vector.shape_cast %128 : vector<1x8x8xbf16> to vector<8x8xbf16>
    %cst_111 = arith.constant dense<0.000000e+00> : vector<8x384xf32>
    %130 = tpu.matmul %129, %127, %cst_111 {dimension_numbers = #tpu.dot_dimension_numbers<[1], [0], [0], [1], [0, 0, 1, 1], [], []>} : vector<8x8xbf16>, vector<8x384xbf16>, vector<8x384xf32> -> vector<8x384xf32>
    %131 = arith.addf %126, %130 : vector<8x384xf32>
    %c2_112 = arith.constant 2 : index
    %c0_113 = arith.constant 0 : index
    %c0_114 = arith.constant 0 : index
    %132 = vector.load %arg4[%c2_112, %c0_113, %c0_114] : memref<8x8x1xf32, #tpu.memory_space<vmem>>, vector<1x8x1xf32>
    %133 = vector.shape_cast %132 : vector<1x8x1xf32> to vector<8x1xf32>
    %134 = vector.broadcast %133 : vector<8x1xf32> to vector<8x384xf32>
    %135 = arith.mulf %131, %134 : vector<8x384xf32>
    %c3_115 = arith.constant 3 : index
    %c0_116 = arith.constant 0 : index
    %c0_117 = arith.constant 0 : index
    %136 = vector.load %arg4[%c3_115, %c0_116, %c0_117] : memref<8x8x1xf32, #tpu.memory_space<vmem>>, vector<1x8x1xf32>
    %137 = vector.shape_cast %136 : vector<1x8x1xf32> to vector<8x1xf32>
    %138 = vector.broadcast %137 : vector<8x1xf32> to vector<8x384xf32>
    %139 = arith.addf %135, %138 : vector<8x384xf32>
    %cst_118 = arith.constant 0.000000e+00 : f32
    %140 = vector.broadcast %cst_118 : f32 to vector<8x384xf32>
    %141 = arith.cmpf oge, %139, %140 : vector<8x384xf32>
    %cst_119 = arith.constant 0.00999999977 : f32
    %142 = vector.broadcast %cst_119 : f32 to vector<8x384xf32>
    %143 = arith.mulf %142, %139 : vector<8x384xf32>
    %144 = arith.select %141, %139, %143 : vector<8x384xi1>, vector<8x384xf32>
    %145 = vector.broadcast %0 : vector<1x384xf32> to vector<8x384xf32>
    %146 = arith.mulf %144, %145 : vector<8x384xf32>
    %147 = arith.truncf %146 : vector<8x384xf32> to vector<8x384xbf16>
    %c0_120 = arith.constant 0 : index
    %c128_121 = arith.constant 128 : index
    %148 = vector.load %arg8[%c0_120, %c128_121] : memref<8x640xbf16, #tpu.memory_space<vmem>>, vector<8x384xbf16>
    tpu.vector_store %arg8[%c0_120, %c128_121], %147 {strides = array<i32>} : memref<8x640xbf16, #tpu.memory_space<vmem>>, vector<8x384xbf16>,
    %c0_122 = arith.constant 0 : index
    %c109_123 = arith.constant 109 : index
    %149 = vector.load %arg8[%c0_122, %c109_123] : memref<8x640xbf16, #tpu.memory_space<vmem>>, vector<8x384xbf16>
    %c18 = arith.constant 18 : index
    %c0_124 = arith.constant 0 : index
    %c0_125 = arith.constant 0 : index
    %150 = vector.load %arg3[%c18, %c0_124, %c0_125] : memref<27x8x8xbf16, #tpu.memory_space<vmem>>, vector<1x8x8xbf16>
    %151 = vector.shape_cast %150 : vector<1x8x8xbf16> to vector<8x8xbf16>
    %cst_126 = arith.constant dense<0.000000e+00> : vector<8x384xf32>
    %152 = tpu.matmul %151, %149, %cst_126 {dimension_numbers = #tpu.dot_dimension_numbers<[1], [0], [0], [1], [0, 0, 1, 1], [], []>} : vector<8x8xbf16>, vector<8x384xbf16>, vector<8x384xf32> -> vector<8x384xf32>
    %c0_127 = arith.constant 0 : index
    %c110_128 = arith.constant 110 : index
    %153 = vector.load %arg8[%c0_127, %c110_128] : memref<8x640xbf16, #tpu.memory_space<vmem>>, vector<8x384xbf16>
    %c19 = arith.constant 19 : index
    %c0_129 = arith.constant 0 : index
    %c0_130 = arith.constant 0 : index
    %154 = vector.load %arg3[%c19, %c0_129, %c0_130] : memref<27x8x8xbf16, #tpu.memory_space<vmem>>, vector<1x8x8xbf16>
    %155 = vector.shape_cast %154 : vector<1x8x8xbf16> to vector<8x8xbf16>
    %cst_131 = arith.constant dense<0.000000e+00> : vector<8x384xf32>
    %156 = tpu.matmul %155, %153, %cst_131 {dimension_numbers = #tpu.dot_dimension_numbers<[1], [0], [0], [1], [0, 0, 1, 1], [], []>} : vector<8x8xbf16>, vector<8x384xbf16>, vector<8x384xf32> -> vector<8x384xf32>
    %157 = arith.addf %152, %156 : vector<8x384xf32>
    %c0_132 = arith.constant 0 : index
    %c111_133 = arith.constant 111 : index
    %158 = vector.load %arg8[%c0_132, %c111_133] : memref<8x640xbf16, #tpu.memory_space<vmem>>, vector<8x384xbf16>
    %c20 = arith.constant 20 : index
    %c0_134 = arith.constant 0 : index
    %c0_135 = arith.constant 0 : index
    %159 = vector.load %arg3[%c20, %c0_134, %c0_135] : memref<27x8x8xbf16, #tpu.memory_space<vmem>>, vector<1x8x8xbf16>
    %160 = vector.shape_cast %159 : vector<1x8x8xbf16> to vector<8x8xbf16>
    %cst_136 = arith.constant dense<0.000000e+00> : vector<8x384xf32>
    %161 = tpu.matmul %160, %158, %cst_136 {dimension_numbers = #tpu.dot_dimension_numbers<[1], [0], [0], [1], [0, 0, 1, 1], [], []>} : vector<8x8xbf16>, vector<8x384xbf16>, vector<8x384xf32> -> vector<8x384xf32>
    %162 = arith.addf %157, %161 : vector<8x384xf32>
    %c0_137 = arith.constant 0 : index
    %c127_138 = arith.constant 127 : index
    %163 = vector.load %arg8[%c0_137, %c127_138] : memref<8x640xbf16, #tpu.memory_space<vmem>>, vector<8x384xbf16>
    %c21 = arith.constant 21 : index
    %c0_139 = arith.constant 0 : index
    %c0_140 = arith.constant 0 : index
    %164 = vector.load %arg3[%c21, %c0_139, %c0_140] : memref<27x8x8xbf16, #tpu.memory_space<vmem>>, vector<1x8x8xbf16>
    %165 = vector.shape_cast %164 : vector<1x8x8xbf16> to vector<8x8xbf16>
    %cst_141 = arith.constant dense<0.000000e+00> : vector<8x384xf32>
    %166 = tpu.matmul %165, %163, %cst_141 {dimension_numbers = #tpu.dot_dimension_numbers<[1], [0], [0], [1], [0, 0, 1, 1], [], []>} : vector<8x8xbf16>, vector<8x384xbf16>, vector<8x384xf32> -> vector<8x384xf32>
    %167 = arith.addf %162, %166 : vector<8x384xf32>
    %c0_142 = arith.constant 0 : index
    %c128_143 = arith.constant 128 : index
    %168 = vector.load %arg8[%c0_142, %c128_143] : memref<8x640xbf16, #tpu.memory_space<vmem>>, vector<8x384xbf16>
    %c22 = arith.constant 22 : index
    %c0_144 = arith.constant 0 : index
    %c0_145 = arith.constant 0 : index
    %169 = vector.load %arg3[%c22, %c0_144, %c0_145] : memref<27x8x8xbf16, #tpu.memory_space<vmem>>, vector<1x8x8xbf16>
    %170 = vector.shape_cast %169 : vector<1x8x8xbf16> to vector<8x8xbf16>
    %cst_146 = arith.constant dense<0.000000e+00> : vector<8x384xf32>
    %171 = tpu.matmul %170, %168, %cst_146 {dimension_numbers = #tpu.dot_dimension_numbers<[1], [0], [0], [1], [0, 0, 1, 1], [], []>} : vector<8x8xbf16>, vector<8x384xbf16>, vector<8x384xf32> -> vector<8x384xf32>
    %172 = arith.addf %167, %171 : vector<8x384xf32>
    %c0_147 = arith.constant 0 : index
    %c129_148 = arith.constant 129 : index
    %173 = vector.load %arg8[%c0_147, %c129_148] : memref<8x640xbf16, #tpu.memory_space<vmem>>, vector<8x384xbf16>
    %c23 = arith.constant 23 : index
    %c0_149 = arith.constant 0 : index
    %c0_150 = arith.constant 0 : index
    %174 = vector.load %arg3[%c23, %c0_149, %c0_150] : memref<27x8x8xbf16, #tpu.memory_space<vmem>>, vector<1x8x8xbf16>
    %175 = vector.shape_cast %174 : vector<1x8x8xbf16> to vector<8x8xbf16>
    %cst_151 = arith.constant dense<0.000000e+00> : vector<8x384xf32>
    %176 = tpu.matmul %175, %173, %cst_151 {dimension_numbers = #tpu.dot_dimension_numbers<[1], [0], [0], [1], [0, 0, 1, 1], [], []>} : vector<8x8xbf16>, vector<8x384xbf16>, vector<8x384xf32> -> vector<8x384xf32>
    %177 = arith.addf %172, %176 : vector<8x384xf32>
    %c0_152 = arith.constant 0 : index
    %c145_153 = arith.constant 145 : index
    %178 = vector.load %arg8[%c0_152, %c145_153] : memref<8x640xbf16, #tpu.memory_space<vmem>>, vector<8x384xbf16>
    %c24 = arith.constant 24 : index
    %c0_154 = arith.constant 0 : index
    %c0_155 = arith.constant 0 : index
    %179 = vector.load %arg3[%c24, %c0_154, %c0_155] : memref<27x8x8xbf16, #tpu.memory_space<vmem>>, vector<1x8x8xbf16>
    %180 = vector.shape_cast %179 : vector<1x8x8xbf16> to vector<8x8xbf16>
    %cst_156 = arith.constant dense<0.000000e+00> : vector<8x384xf32>
    %181 = tpu.matmul %180, %178, %cst_156 {dimension_numbers = #tpu.dot_dimension_numbers<[1], [0], [0], [1], [0, 0, 1, 1], [], []>} : vector<8x8xbf16>, vector<8x384xbf16>, vector<8x384xf32> -> vector<8x384xf32>
    %182 = arith.addf %177, %181 : vector<8x384xf32>
    %c0_157 = arith.constant 0 : index
    %c146_158 = arith.constant 146 : index
    %183 = vector.load %arg8[%c0_157, %c146_158] : memref<8x640xbf16, #tpu.memory_space<vmem>>, vector<8x384xbf16>
    %c25 = arith.constant 25 : index
    %c0_159 = arith.constant 0 : index
    %c0_160 = arith.constant 0 : index
    %184 = vector.load %arg3[%c25, %c0_159, %c0_160] : memref<27x8x8xbf16, #tpu.memory_space<vmem>>, vector<1x8x8xbf16>
    %185 = vector.shape_cast %184 : vector<1x8x8xbf16> to vector<8x8xbf16>
    %cst_161 = arith.constant dense<0.000000e+00> : vector<8x384xf32>
    %186 = tpu.matmul %185, %183, %cst_161 {dimension_numbers = #tpu.dot_dimension_numbers<[1], [0], [0], [1], [0, 0, 1, 1], [], []>} : vector<8x8xbf16>, vector<8x384xbf16>, vector<8x384xf32> -> vector<8x384xf32>
    %187 = arith.addf %182, %186 : vector<8x384xf32>
    %c0_162 = arith.constant 0 : index
    %c147_163 = arith.constant 147 : index
    %188 = vector.load %arg8[%c0_162, %c147_163] : memref<8x640xbf16, #tpu.memory_space<vmem>>, vector<8x384xbf16>
    %c26 = arith.constant 26 : index
    %c0_164 = arith.constant 0 : index
    %c0_165 = arith.constant 0 : index
    %189 = vector.load %arg3[%c26, %c0_164, %c0_165] : memref<27x8x8xbf16, #tpu.memory_space<vmem>>, vector<1x8x8xbf16>
    %190 = vector.shape_cast %189 : vector<1x8x8xbf16> to vector<8x8xbf16>
    %cst_166 = arith.constant dense<0.000000e+00> : vector<8x384xf32>
    %191 = tpu.matmul %190, %188, %cst_166 {dimension_numbers = #tpu.dot_dimension_numbers<[1], [0], [0], [1], [0, 0, 1, 1], [], []>} : vector<8x8xbf16>, vector<8x384xbf16>, vector<8x384xf32> -> vector<8x384xf32>
    %192 = arith.addf %187, %191 : vector<8x384xf32>
    %c4_167 = arith.constant 4 : index
    %c0_168 = arith.constant 0 : index
    %c0_169 = arith.constant 0 : index
    %193 = vector.load %arg4[%c4_167, %c0_168, %c0_169] : memref<8x8x1xf32, #tpu.memory_space<vmem>>, vector<1x8x1xf32>
    %194 = vector.shape_cast %193 : vector<1x8x1xf32> to vector<8x1xf32>
    %195 = vector.broadcast %194 : vector<8x1xf32> to vector<8x384xf32>
    %196 = arith.mulf %192, %195 : vector<8x384xf32>
    %c5_170 = arith.constant 5 : index
    %c0_171 = arith.constant 0 : index
    %c0_172 = arith.constant 0 : index
    %197 = vector.load %arg4[%c5_170, %c0_171, %c0_172] : memref<8x8x1xf32, #tpu.memory_space<vmem>>, vector<1x8x1xf32>
    %198 = vector.shape_cast %197 : vector<1x8x1xf32> to vector<8x1xf32>
    %199 = vector.broadcast %198 : vector<8x1xf32> to vector<8x384xf32>
    %200 = arith.addf %196, %199 : vector<8x384xf32>
    %c0_173 = arith.constant 0 : index
    %c0_174 = arith.constant 0 : index
    %c128_175 = arith.constant 128 : index
    %201 = vector.load %arg1[%c0_173, %c0_174, %c128_175] : memref<1x8x640xf32, #tpu.memory_space<vmem>>, vector<1x8x384xf32>
    %202 = vector.shape_cast %201 : vector<1x8x384xf32> to vector<8x384xf32>
    %c0_176 = arith.constant 0 : index
    %c0_177 = arith.constant 0 : index
    %203 = vector.load %arg5[%c0_176, %c0_177] : memref<8x8xbf16, #tpu.memory_space<vmem>>, vector<8x8xbf16>
    %204 = arith.truncf %202 : vector<8x384xf32> to vector<8x384xbf16>
    %cst_178 = arith.constant dense<0.000000e+00> : vector<8x384xf32>
    %205 = tpu.matmul %203, %204, %cst_178 {dimension_numbers = #tpu.dot_dimension_numbers<[1], [0], [0], [1], [0, 0, 1, 1], [], []>} : vector<8x8xbf16>, vector<8x384xbf16>, vector<8x384xf32> -> vector<8x384xf32>
    %c6_179 = arith.constant 6 : index
    %c0_180 = arith.constant 0 : index
    %c0_181 = arith.constant 0 : index
    %206 = vector.load %arg4[%c6_179, %c0_180, %c0_181] : memref<8x8x1xf32, #tpu.memory_space<vmem>>, vector<1x8x1xf32>
    %207 = vector.shape_cast %206 : vector<1x8x1xf32> to vector<8x1xf32>
    %208 = vector.broadcast %207 : vector<8x1xf32> to vector<8x384xf32>
    %209 = arith.mulf %205, %208 : vector<8x384xf32>
    %c7_182 = arith.constant 7 : index
    %c0_183 = arith.constant 0 : index
    %c0_184 = arith.constant 0 : index
    %210 = vector.load %arg4[%c7_182, %c0_183, %c0_184] : memref<8x8x1xf32, #tpu.memory_space<vmem>>, vector<1x8x1xf32>
    %211 = vector.shape_cast %210 : vector<1x8x1xf32> to vector<8x1xf32>
    %212 = vector.broadcast %211 : vector<8x1xf32> to vector<8x384xf32>
    %213 = arith.addf %209, %212 : vector<8x384xf32>
    %214 = arith.addf %200, %213 : vector<8x384xf32>
    %cst_185 = arith.constant 0.000000e+00 : f32
    %215 = vector.broadcast %cst_185 : f32 to vector<8x384xf32>
    %216 = arith.cmpf oge, %214, %215 : vector<8x384xf32>
    %cst_186 = arith.constant 0.00999999977 : f32
    %217 = vector.broadcast %cst_186 : f32 to vector<8x384xf32>
    %218 = arith.mulf %217, %214 : vector<8x384xf32>
    %219 = arith.select %216, %214, %218 : vector<8x384xi1>, vector<8x384xf32>
    %c0_187 = arith.constant 0 : index
    %c0_188 = arith.constant 0 : index
    %c0_189 = arith.constant 0 : index
    %220 = vector.load %arg6[%c0_187, %c0_188, %c0_189] : memref<1x8x384xf32, #tpu.memory_space<vmem>>, vector<1x8x384xf32>
    %221 = vector.shape_cast %220 : vector<1x8x384xf32> to vector<8x384xf32>
    %222 = vector.shape_cast %219 : vector<8x384xf32> to vector<1x8x384xf32>
    tpu.vector_store %arg6[%c0_187, %c0_188, %c0_189], %222 {strides = array<i32>} : memref<1x8x384xf32, #tpu.memory_space<vmem>>, vector<1x8x384xf32>,
    return
  }
  func.func @transform_0(%arg0: i32) -> (i32, i32, i32) {
    %c0_i32 = arith.constant 0 : i32
    %c0_i32_0 = arith.constant 0 : i32
    %c0_i32_1 = arith.constant 0 : i32
    return %arg0, %c0_i32, %c0_i32_0 : i32, i32, i32
  }
  func.func @transform_1(%arg0: i32) -> (i32, i32) {
    %c0_i32 = arith.constant 0 : i32
    %c0_i32_0 = arith.constant 0 : i32
    %c0_i32_1 = arith.constant 0 : i32
    return %c0_i32, %c0_i32_0 : i32, i32
  }
  func.func @transform_2(%arg0: i32) -> (i32, i32, i32) {
    %c0_i32 = arith.constant 0 : i32
    %c0_i32_0 = arith.constant 0 : i32
    %c0_i32_1 = arith.constant 0 : i32
    %c0_i32_2 = arith.constant 0 : i32
    return %c0_i32, %c0_i32_0, %c0_i32_1 : i32, i32, i32
  }
  func.func @transform_3(%arg0: i32) -> (i32, i32, i32) {
    %c0_i32 = arith.constant 0 : i32
    %c0_i32_0 = arith.constant 0 : i32
    %c0_i32_1 = arith.constant 0 : i32
    %c0_i32_2 = arith.constant 0 : i32
    return %c0_i32, %c0_i32_0, %c0_i32_1 : i32, i32, i32
  }
  func.func @transform_4(%arg0: i32) -> (i32, i32) {
    %c0_i32 = arith.constant 0 : i32
    %c0_i32_0 = arith.constant 0 : i32
    %c0_i32_1 = arith.constant 0 : i32
    return %c0_i32, %c0_i32_0 : i32, i32
  }
  func.func @transform_5(%arg0: i32) -> (i32, i32, i32) {
    %c0_i32 = arith.constant 0 : i32
    %c0_i32_0 = arith.constant 0 : i32
    %c0_i32_1 = arith.constant 0 : i32
    return %arg0, %c0_i32, %c0_i32_0 : i32, i32, i32
  }
}

</mosaic_0001>

<llo_original>
// kernel: tpu_custom_call.1
$region0: #{tpu_custom_call.1}
  #allocation0 [shape = 'u32[]', space=smem, size = 0x4, offset = 0x4, fixed_abs, tag = 'smem constant byte address 0x4 - core index']
  #allocation1 [shape = 'u32[144,128]{1,0:T(1,128)}', space=vmem, size = 0x12000, scoped, tag = 'internal scratch']
  #allocation2 [shape = 'bf16[8,640]{1,0:T(8,128)(2,1)}', space=vmem, size = 0x2800, scoped, tag = 'scratch operand']
  #allocation3 [shape = 'bf16[8,640]{1,0:T(8,128)(2,1)}', space=vmem, size = 0x2800, scoped, tag = 'scratch operand']
  %s0 = inlined_call_operand.hbm [shape: f32[2,8,640], index: 0, kind: input, shape index: {}]
  %s1 = inlined_call_operand.hbm [shape: f32[1,384], index: 1, kind: input, shape index: {}]
  %s2 = inlined_call_operand.hbm [shape: bf16[27,8,8], index: 2, kind: input, shape index: {}]
  %s3 = inlined_call_operand.hbm [shape: f32[8,8,1], index: 3, kind: input, shape index: {}]
  %s4 = inlined_call_operand.hbm [shape: bf16[8,8], index: 4, kind: input, shape index: {}]
  %s5 = inlined_call_operand.hbm [shape: f32[2,8,384], index: 5, kind: output, shape index: {}]
  %s6 = sld [smem:[#allocation0]]
  $region73: #{tpu_custom_call.1} parent=0
    _
  %s8 = ssub.s32 1, %s6
  %s9 = scalar_select 0, %s8, %s6
  $region1: #{tpu_custom_call.1} parent=0
    #allocation4 [shape = 'u8[40960]{0}', space=vmem, size = 0xa000, scoped, tag = 'input window, operand 0']
    #allocation5 [shape = 's32[2]{0}', space=sflag, size = 0x8, scoped, tag = 'scoped memory for tpu_custom_call.1']
    #allocation6 [shape = 's32[2]{0}', space=sflag, size = 0x8, scoped, tag = 'scoped memory for tpu_custom_call.1']
    #allocation7 [shape = 'u8[1536]{0}', space=vmem, size = 0x800, scoped, tag = 'input window, operand 1, single buffered']
    #allocation8 [shape = 's32[1]{0}', space=sflag, size = 0x4, scoped, tag = 'scoped memory for tpu_custom_call.1']
    #allocation9 [shape = 'u8[55296]{0}', space=vmem, size = 0xd800, scoped, tag = 'input window, operand 2, single buffered']
    #allocation10 [shape = 'u8[32768]{0}', space=vmem, size = 0x8000, scoped, tag = 'input window, operand 3, single buffered']
    #allocation11 [shape = 's32[1]{0}', space=sflag, size = 0x4, scoped, tag = 'scoped memory for tpu_custom_call.1']
    #allocation12 [shape = 'u8[2048]{0}', space=vmem, size = 0x800, scoped, tag = 'input window, operand 4, single buffered']
    #allocation13 [shape = 'u8[24576]{0}', space=vmem, size = 0x6000, scoped, tag = 'output window, operand 0']
    %10 = vsyncpa [#allocation5], 0
    %s11 = scalar_lea.sflag [#allocation5], 1
    %12 = vsyncpa %s11, 0
    %13 = vsyncpa [#allocation8], 0
    %14 = vsyncpa [#allocation11], 0
    %15 = vsyncpa [#allocation6], 0
    %s16 = scalar_lea.sflag [#allocation6], 1
    %17 = vsyncpa %s16, 0
    loop: start=0, step=1, limit=4
    $region2: #{tpu_custom_call.1} parent=1 // loop_pre_header
      _
    $region3: #{tpu_custom_call.1} parent=1 // loop_header
      %s19 = sphi 0, %s23
      %p20 = scmp.ge.s32.totalorder %s19, 4
      %s29 = sphi 0, %s31
      %s32 = sphi 0, %s29
      %s33 = sphi 0, %s32
      %s49 = sphi 0, %s33
      %s53 = sphi 0, %s53
      %s55 = sphi 0, %s53
      %s56 = sphi 0, %s55
      %s70 = sphi 0, %s56
      %s74 = sphi 0, %s74
      %s76 = sphi 0, %s74
      %s77 = sphi 0, %s76
      %s91 = sphi 0, %s77
      %s95 = sphi 0, %s95
      %s97 = sphi 0, %s95
      %s98 = sphi 0, %s97
      %s112 = sphi 0, %s98
      %s116 = sphi 0, %s116
      %s118 = sphi 0, %s116
      %s119 = sphi 0, %s118
      %s133 = sphi 0, %s119
      %s139 = sphi 0, %s141
      %s142 = sphi 0, %s139
      %s143 = sphi 0, %s142
      %s159 = sphi 0, %s143
    $region4: #{tpu_custom_call.1} parent=1 // loop_header_branch
      %22 = sbr.rel (%p20) target = $region8
    $region5: #{tpu_custom_call.1} parent=1 // loop_body
      %s24 = ssub.s32 %s19, 1
      %s25 = ssub.s32 %s19, 2
      %s26 = sadd.s32 %s19, 1
      %s27 = ssub.s32 %s19, %s26
      %p28 = scmp.eq.s32.totalorder %s27, 0
      %s30 = sadd.s32 %s29, 1
      %s31 = scalar_select %p28, %s29, %s30
      %p34 = pneg %p28
      %p35 = scmp.eq.s32.totalorder %s19, 1
      %p36 = por %p34, %p35
      %p37 = scmp.ne.s32.totalorder %s29, %s32
      %p38 = scmp.eq.s32.totalorder %s19, 0
      %p39 = por %p37, %p38
      %p40 = scmp.ne.s32.totalorder %s29, %s32
      %p41 = scmp.eq.s32.totalorder %s24, 1
      %p42 = por %p40, %p41
      %p43 = scmp.ne.s32.totalorder %s32, %s33
      %p44 = scmp.eq.s32.totalorder %s24, 0
      %p45 = por %p43, %p44
      %p46 = scmp.ne.s32.totalorder %s32, %s33
      %p47 = scmp.eq.s32.totalorder %s25, 1
      %p48 = por %p46, %p47
      %p50 = scmp.ne.s32.totalorder %s33, %s49
      %p51 = scmp.eq.s32.totalorder %s25, 0
      %p52 = por %p50, %p51
      %s54 = sadd.s32 %s53, 1
      %p57 = scmp.eq.s32.totalorder %s19, 1
      %p58 = scmp.ne.s32.totalorder %s53, %s55
      %p59 = scmp.eq.s32.totalorder %s19, 0
      %p60 = por %p58, %p59
      %p61 = scmp.ne.s32.totalorder %s53, %s55
      %p62 = scmp.eq.s32.totalorder %s24, 1
      %p63 = por %p61, %p62
      %p64 = scmp.ne.s32.totalorder %s55, %s56
      %p65 = scmp.eq.s32.totalorder %s24, 0
      %p66 = por %p64, %p65
      %p67 = scmp.ne.s32.totalorder %s55, %s56
      %p68 = scmp.eq.s32.totalorder %s25, 1
      %p69 = por %p67, %p68
      %p71 = scmp.ne.s32.totalorder %s56, %s70
      %p72 = scmp.eq.s32.totalorder %s25, 0
      %p73 = por %p71, %p72
      %s75 = sadd.s32 %s74, 1
      %p78 = scmp.eq.s32.totalorder %s19, 1
      %p79 = scmp.ne.s32.totalorder %s74, %s76
      %p80 = scmp.eq.s32.totalorder %s19, 0
      %p81 = por %p79, %p80
      %p82 = scmp.ne.s32.totalorder %s74, %s76
      %p83 = scmp.eq.s32.totalorder %s24, 1
      %p84 = por %p82, %p83
      %p85 = scmp.ne.s32.totalorder %s76, %s77
      %p86 = scmp.eq.s32.totalorder %s24, 0
      %p87 = por %p85, %p86
      %p88 = scmp.ne.s32.totalorder %s76, %s77
      %p89 = scmp.eq.s32.totalorder %s25, 1
      %p90 = por %p88, %p89
      %p92 = scmp.ne.s32.totalorder %s77, %s91
      %p93 = scmp.eq.s32.totalorder %s25, 0
      %p94 = por %p92, %p93
      %s96 = sadd.s32 %s95, 1
      %p99 = scmp.eq.s32.totalorder %s19, 1
      %p100 = scmp.ne.s32.totalorder %s95, %s97
      %p101 = scmp.eq.s32.totalorder %s19, 0
      %p102 = por %p100, %p101
      %p103 = scmp.ne.s32.totalorder %s95, %s97
      %p104 = scmp.eq.s32.totalorder %s24, 1
      %p105 = por %p103, %p104
      %p106 = scmp.ne.s32.totalorder %s97, %s98
      %p107 = scmp.eq.s32.totalorder %s24, 0
      %p108 = por %p106, %p107
      %p109 = scmp.ne.s32.totalorder %s97, %s98
      %p110 = scmp.eq.s32.totalorder %s25, 1
      %p111 = por %p109, %p110
      %p113 = scmp.ne.s32.totalorder %s98, %s112
      %p114 = scmp.eq.s32.totalorder %s25, 0
      %p115 = por %p113, %p114
      %s117 = sadd.s32 %s116, 1
      %p120 = scmp.eq.s32.totalorder %s19, 1
      %p121 = scmp.ne.s32.totalorder %s116, %s118
      %p122 = scmp.eq.s32.totalorder %s19, 0
      %p123 = por %p121, %p122
      %p124 = scmp.ne.s32.totalorder %s116, %s118
      %p125 = scmp.eq.s32.totalorder %s24, 1
      %p126 = por %p124, %p125
      %p127 = scmp.ne.s32.totalorder %s118, %s119
      %p128 = scmp.eq.s32.totalorder %s24, 0
      %p129 = por %p127, %p128
      %p130 = scmp.ne.s32.totalorder %s118, %s119
      %p131 = scmp.eq.s32.totalorder %s25, 1
      %p132 = por %p130, %p131
      %p134 = scmp.ne.s32.totalorder %s119, %s133
      %p135 = scmp.eq.s32.totalorder %s25, 0
      %p136 = por %p134, %p135
      %s137 = ssub.s32 %s19, %s26
      %p138 = scmp.eq.s32.totalorder %s137, 0
      %s140 = sadd.s32 %s139, 1
      %s141 = scalar_select %p138, %s139, %s140
      %p144 = pneg %p138
      %p145 = scmp.eq.s32.totalorder %s19, 1
      %p146 = por %p144, %p145
      %p147 = scmp.ne.s32.totalorder %s139, %s142
      %p148 = scmp.eq.s32.totalorder %s19, 0
      %p149 = por %p147, %p148
      %p150 = scmp.ne.s32.totalorder %s139, %s142
      %p151 = scmp.eq.s32.totalorder %s24, 1
      %p152 = por %p150, %p151
      %p153 = scmp.ne.s32.totalorder %s142, %s143
      %p154 = scmp.eq.s32.totalorder %s24, 0
      %p155 = por %p153, %p154
      %p156 = scmp.ne.s32.totalorder %s142, %s143
      %p157 = scmp.eq.s32.totalorder %s25, 1
      %p158 = por %p156, %p157
      %p160 = scmp.ne.s32.totalorder %s143, %s159
      %p161 = scmp.eq.s32.totalorder %s25, 0
      %p162 = por %p160, %p161
      %p163 = scmp.le.s32.totalorder 1, %s19
      %p164 = scmp.lt.s32.totalorder %s19, 3
      %p165 = pnand %p163, %p164
      %p166 = pneg %p165
      // Predicated region
      $region9: #{tpu_custom_call.1} parent=5 // pred_check
        _
      $region10: #{tpu_custom_call.1} parent=5 // pred_check_branch
        %168 = sbr.rel (%p165) target = $region12
      $region11: #{tpu_custom_call.1} parent=5 // pred_region
        %s169 = ssub.s32 %s19, 1
        // Predicated region
        $region13: #{tpu_custom_call.1} parent=11 // pred_check
          %p170 = pneg %p66
        $region14: #{tpu_custom_call.1} parent=11 // pred_check_branch
          %172 = sbr.rel (%p170) target = $region16
        $region15: #{tpu_custom_call.1} parent=11 // pred_region
          %s174 = ssub.s32 48, 48
          %175 = vsyncadd [#allocation8], %s174
          %s177 = sshll.u32 [#allocation7], 4
          %s178 = int_to_ptr.vmem [resolvable:$true] %s177
          %180 = dma.hbm_to_vmem [thread:$0]  %s1, 48, %s178, [#allocation8]
        $region16: #{tpu_custom_call.1} parent=11 // pred_fallthru
          _
        // Predicated region
        $region17: #{tpu_custom_call.1} parent=11 // pred_check
          %p181 = pneg %p87
        $region18: #{tpu_custom_call.1} parent=11 // pred_check_branch
          %183 = sbr.rel (%p181) target = $region20
        $region19: #{tpu_custom_call.1} parent=11 // pred_region
          %s185 = ssub.s32 1728, 1728
          %186 = vsyncadd [#allocation8], %s185
          %s187 = sshll.u32 [#allocation9], 4
          %s188 = int_to_ptr.vmem [resolvable:$true] %s187
          %193 = dma.hbm_to_vmem [thread:$0]  %s2, 1728, %s188, [#allocation8], 64, 64, 4
        $region20: #{tpu_custom_call.1} parent=11 // pred_fallthru
          _
        // Predicated region
        $region21: #{tpu_custom_call.1} parent=11 // pred_check
          %p194 = pneg %p108
        $region22: #{tpu_custom_call.1} parent=11 // pred_check_branch
          %196 = sbr.rel (%p194) target = $region24
        $region23: #{tpu_custom_call.1} parent=11 // pred_region
          %s198 = ssub.s32 1024, 1024
          %199 = vsyncadd [#allocation11], %s198
          %s200 = sshll.u32 [#allocation10], 4
          %s201 = int_to_ptr.vmem [resolvable:$true] %s200
          %206 = dma.hbm_to_vmem [thread:$0]  %s3, 1024, %s201, [#allocation11], 128, 128, 8
        $region24: #{tpu_custom_call.1} parent=11 // pred_fallthru
          _
        // Predicated region
        $region25: #{tpu_custom_call.1} parent=11 // pred_check
          %p207 = pneg %p129
        $region26: #{tpu_custom_call.1} parent=11 // pred_check_branch
          %209 = sbr.rel (%p207) target = $region28
        $region27: #{tpu_custom_call.1} parent=11 // pred_region
          %s211 = ssub.s32 64, 64
          %212 = vsyncadd [#allocation11], %s211
          %s214 = sshll.u32 [#allocation12], 4
          %s215 = int_to_ptr.vmem [resolvable:$true] %s214
          %217 = dma.hbm_to_vmem [thread:$0]  %s4, 64, %s215, [#allocation11]
        $region28: #{tpu_custom_call.1} parent=11 // pred_fallthru
          _
      $region12: #{tpu_custom_call.1} parent=5 // pred_fallthru
        _
      %p218 = scmp.lt.s32.totalorder %s19, 2
      // Predicated region
      $region29: #{tpu_custom_call.1} parent=5 // pred_check
        %p219 = pneg %p218
      $region30: #{tpu_custom_call.1} parent=5 // pred_check_branch
        %221 = sbr.rel (%p219) target = $region32
      $region31: #{tpu_custom_call.1} parent=5 // pred_region
        // Predicated region
        $region33: #{tpu_custom_call.1} parent=31 // pred_check
          %p222 = pneg %p39
        $region34: #{tpu_custom_call.1} parent=31 // pred_check_branch
          %224 = sbr.rel (%p222) target = $region36
        $region35: #{tpu_custom_call.1} parent=31 // pred_region
          %s225 = sand.u32 %s29, 1
          %s226 = scalar_lea.sflag [#allocation5], %s225
          %s227 = sand.u32 %s29, 1
          %s228 = smul.addr %s227, 40
          %s229 = scalar_lea.vmem [#allocation4], %s228
          %s231 = ssub.s32 640, 640
          %232 = vsyncadd %s226, %s231
          %s233 = smul.addr %s19, 5
          %s234 = smul.addr %s233, 128
          %s235 = scalar_lea.hbm %s0, %s234
          %s237 = sshll.u32 %s229, 4
          %s238 = int_to_ptr.vmem [resolvable:$true] %s237
          %240 = dma.hbm_to_vmem [thread:$0]  %s235, 640, %s238, %s226
        $region36: #{tpu_custom_call.1} parent=31 // pred_fallthru
          _
      $region32: #{tpu_custom_call.1} parent=5 // pred_fallthru
        _
      %p241 = scmp.le.s32.totalorder 1, %s19
      %p242 = scmp.lt.s32.totalorder %s19, 3
      %p243 = pnand %p241, %p242
      %p244 = pneg %p243
      // Predicated region
      $region37: #{tpu_custom_call.1} parent=5 // pred_check
        _
      $region38: #{tpu_custom_call.1} parent=5 // pred_check_branch
        %246 = sbr.rel (%p243) target = $region40
      $region39: #{tpu_custom_call.1} parent=5 // pred_region
        %s247 = ssub.s32 %s19, 1
        %s248 = sand.u32 %s32, 1
        %s249 = scalar_lea.sflag [#allocation5], %s248
        %s250 = sand.u32 %s32, 1
        %s251 = smul.addr %s250, 40
        %s252 = scalar_lea.vmem [#allocation4], %s251
        // Predicated region
        $region41: #{tpu_custom_call.1} parent=39 // pred_check
          %p253 = pneg %p45
        $region42: #{tpu_custom_call.1} parent=39 // pred_check_branch
          %255 = sbr.rel (%p253) target = $region44
        $region43: #{tpu_custom_call.1} parent=39 // pred_region
          %256 = dma.done %s249, 640
        $region44: #{tpu_custom_call.1} parent=39 // pred_fallthru
          _
        // Predicated region
        $region45: #{tpu_custom_call.1} parent=39 // pred_check
          %p257 = pneg %p66
        $region46: #{tpu_custom_call.1} parent=39 // pred_check_branch
          %259 = sbr.rel (%p257) target = $region48
        $region47: #{tpu_custom_call.1} parent=39 // pred_region
          %260 = dma.done [#allocation8], 48
        $region48: #{tpu_custom_call.1} parent=39 // pred_fallthru
          _
        // Predicated region
        $region49: #{tpu_custom_call.1} parent=39 // pred_check
          %p261 = pneg %p87
        $region50: #{tpu_custom_call.1} parent=39 // pred_check_branch
          %263 = sbr.rel (%p261) target = $region52
        $region51: #{tpu_custom_call.1} parent=39 // pred_region
          %264 = dma.done [#allocation8], 1728
        $region52: #{tpu_custom_call.1} parent=39 // pred_fallthru
          _
        // Predicated region
        $region53: #{tpu_custom_call.1} parent=39 // pred_check
          %p265 = pneg %p108
        $region54: #{tpu_custom_call.1} parent=39 // pred_check_branch
          %267 = sbr.rel (%p265) target = $region56
        $region55: #{tpu_custom_call.1} parent=39 // pred_region
          %268 = dma.done [#allocation11], 1024
        $region56: #{tpu_custom_call.1} parent=39 // pred_fallthru
          _
        // Predicated region
        $region57: #{tpu_custom_call.1} parent=39 // pred_check
          %p269 = pneg %p129
        $region58: #{tpu_custom_call.1} parent=39 // pred_check_branch
          %271 = sbr.rel (%p269) target = $region60
        $region59: #{tpu_custom_call.1} parent=39 // pred_region
          %272 = dma.done [#allocation11], 64
        $region60: #{tpu_custom_call.1} parent=39 // pred_fallthru
          _
        %s273 = sand.u32 %s32, 1
        %s274 = scalar_lea.sflag [#allocation5], %s273
        %s275 = sand.u32 %s32, 1
        %s276 = smul.addr %s275, 40
        %s277 = scalar_lea.vmem [#allocation4], %s276
        %p278 = pneg %p45
        %p279 = pneg %p42
        %p280 = pneg %p66
        %p281 = pneg %p63
        %p282 = pneg %p87
        %p283 = pneg %p84
        %p284 = pneg %p108
        %p285 = pneg %p105
        %p286 = pneg %p129
        %p287 = pneg %p126
        %p288 = pneg %p155
        %p289 = pneg %p152
        %s290 = sand.u32 %s142, 1
        %s291 = scalar_lea.sflag [#allocation6], %s290
        %s292 = sand.u32 %s142, 1
        %s293 = smul.addr %s292, 24
        %s294 = scalar_lea.vmem [#allocation13], %s293
        %v296 = vld [vmem:[#allocation7] sm:$0x7]
        %297 = vst [vmem:[#allocation2] sm:$0xf] 0
        %298 = vst [vmem:[#allocation2 + $0x10] sm:$0xf] 0
        %299 = vst [vmem:[#allocation3] sm:$0xf] 0
        %300 = vst [vmem:[#allocation3 + $0x10] sm:$0xf] 0
        %v301 = vld [vmem:[%s252] sm:$0xff]
        %v302 = vld [vmem:[%s252 + $0x8] sm:$0xff]
        %v303 = vld [vmem:[%s252 + $0x10] sm:$0xff]
        %v304 = vld [vmem:[%s252 + $0x18] sm:$0xff]
        %v305 = vpack.c.bf16 %v301, %v301
        %v306 = vpack.c.bf16 %v302, %v302
        %v307 = vpack.c.bf16 %v303, %v303
        %v308 = vpack.c.bf16 %v304, %v304
        %v309 = vld [vmem:[#allocation9] sm:$0xf]
        %s310 = scalar_lea.vmem [#allocation9], 4
        %v311 = vld [vmem:[%s310] sm:$0xf]
        %316 = vrot.lane.b32.xlu0 %v305, 18
        %v317 = vpop.permute.xlu0 %316
        %318 = vrot.lane.b32.xlu0 %v306, 18
        %v319 = vpop.permute.xlu0 %318
        %320 = vrot.lane.b32.xlu0 %v307, 18
        %v321 = vpop.permute.xlu0 %320
        %322 = vrot.lane.b32.xlu0 %v308, 18
        %v323 = vpop.permute.xlu0 %322
        %vm324 = vcmask 146432
        %v325 = vsel %vm324, %v317, %v319
        %v326 = vsel %vm324, %v319, %v321
        %v327 = vsel %vm324, %v321, %v323
        %vm328 = vcmask 64512
        %v330 = vsel %vm328, %v311, 0
        %vm332 = vcmask 1043456
        %v334 = vsel %vm332, %v325, 0
        %v337 = vsel %vm332, %v326, 0
        %v340 = vsel %vm332, %v327, 0
        %342 = vmatprep.subr.bf16.mxu0 %v337
        %343 = vmatpush1.bf16.msra.mxu0 %v334
        %344 = vmatprep.subr.bf16.mxu0 0
        %345 = vmatpush1.bf16.msra.mxu0 0
        %346 = vmatprep.subr.bf16.mxu0 0
        %347 = vmatpush1.bf16.msra.mxu0 0
        %348 = vmatprep.subr.bf16.mxu0 0
        %349 = vmatpush1.bf16.msra.mxu0 0
        %350 = vmatprep.subr.bf16.mxu0 0
        %351 = vmatpush1.bf16.msra.mxu0 0
        %352 = vmatprep.subr.bf16.mxu0 0
        %353 = vmatpush1.bf16.msra.mxu0 0
        %354 = vmatprep.subr.bf16.mxu0 0
        %355 = vmatpush1.bf16.msra.mxu0 0
        %356 = vmatprep.subr.bf16.mxu0 0
        %357 = vmatpush1.bf16.msra.mxu0 0
        %358 = vmatprep.subr.bf16.mxu0 0
        %359 = vmatpush1.bf16.msra.mxu0 0
        %360 = vmatprep.subr.bf16.mxu0 0
        %361 = vmatpush1.bf16.msra.mxu0 0
        %362 = vmatprep.subr.bf16.mxu0 0
        %363 = vmatpush1.bf16.msra.mxu0 0
        %364 = vmatprep.subr.bf16.mxu0 0
        %365 = vmatpush1.bf16.msra.mxu0 0
        %366 = vmatprep.subr.bf16.mxu0 0
        %367 = vmatpush1.bf16.msra.mxu0 0
        %368 = vmatprep.subr.bf16.mxu0 0
        %369 = vmatpush1.bf16.msra.mxu0 0
        %370 = vmatprep.subr.bf16.mxu0 0
        %371 = vmatpush1.bf16.msra.mxu0 0
        %372 = vmatprep.subr.bf16.mxu0 0
        %373 = vmatpush1.bf16.msra.mxu0 0
        %374 = vmatprep.mubr.bf16.mxu0 0
        %375 = vmatmul.mubr.bf16.gmra.mrb[0].mxu0 %v330
        %v376 = vpop.f32.mrb[0].mxu0
        %v377 = vadd.f32 0.0, %v376
        %v378 = vpop.f32.mrb[0].mxu0
        %v379 = vadd.f32 0.0, %v378
        %v380 = vpop.f32.mrb[0].mxu0
        %v381 = vpop.f32.mrb[0].mxu0
        %382 = vdwg.mxu0
        %383 = vmatprep.subr.bf16.mxu0 0
        %384 = vmatpush1.bf16.msra.mxu0 %v340
        %385 = vmatprep.subr.bf16.mxu0 0
        %386 = vmatpush1.bf16.msra.mxu0 0
        %387 = vmatprep.subr.bf16.mxu0 0
        %388 = vmatpush1.bf16.msra.mxu0 0
        %389 = vmatprep.subr.bf16.mxu0 0
        %390 = vmatpush1.bf16.msra.mxu0 0
        %391 = vmatprep.subr.bf16.mxu0 0
        %392 = vmatpush1.bf16.msra.mxu0 0
        %393 = vmatprep.subr.bf16.mxu0 0
        %394 = vmatpush1.bf16.msra.mxu0 0
        %395 = vmatprep.subr.bf16.mxu0 0
        %396 = vmatpush1.bf16.msra.mxu0 0
        %397 = vmatprep.subr.bf16.mxu0 0
        %398 = vmatpush1.bf16.msra.mxu0 0
        %399 = vmatprep.subr.bf16.mxu0 0
        %400 = vmatpush1.bf16.msra.mxu0 0
        %401 = vmatprep.subr.bf16.mxu0 0
        %402 = vmatpush1.bf16.msra.mxu0 0
        %403 = vmatprep.subr.bf16.mxu0 0
        %404 = vmatpush1.bf16.msra.mxu0 0
        %405 = vmatprep.subr.bf16.mxu0 0
        %406 = vmatpush1.bf16.msra.mxu0 0
        %407 = vmatprep.subr.bf16.mxu0 0
        %408 = vmatpush1.bf16.msra.mxu0 0
        %409 = vmatprep.subr.bf16.mxu0 0
        %410 = vmatpush1.bf16.msra.mxu0 0
        %411 = vmatprep.subr.bf16.mxu0 0
        %412 = vmatpush1.bf16.msra.mxu0 0
        %413 = vmatprep.subr.bf16.mxu0 0
        %414 = vmatpush1.bf16.msra.mxu0 0
        %415 = vmatprep.mubr.bf16.mxu0 0
        %416 = vmatmul.mubr.bf16.gmra.mrb[0].mxu0 %v330
        %v417 = vpop.f32.mrb[0].mxu0
        %v418 = vadd.f32 0.0, %v417
        %v419 = vpop.f32.mrb[0].mxu0
        %v420 = vpop.f32.mrb[0].mxu0
        %v421 = vpop.f32.mrb[0].mxu0
        %422 = vdwg.mxu0
        %423 = vrot.lane.b32.xlu0 %v305, 19
        %v424 = vpop.permute.xlu0 %423
        %425 = vrot.lane.b32.xlu0 %v306, 19
        %v426 = vpop.permute.xlu0 %425
        %427 = vrot.lane.b32.xlu0 %v307, 19
        %v428 = vpop.permute.xlu0 %427
        %429 = vrot.lane.b32.xlu0 %v308, 19
        %v430 = vpop.permute.xlu0 %429
        %vm431 = vcmask 154624
        %v432 = vsel %vm431, %v424, %v426
        %v433 = vsel %vm431, %v426, %v428
        %v434 = vsel %vm431, %v428, %v430
        %v436 = vsel %vm328, %v309, 0
        %v439 = vsel %vm332, %v432, 0
        %v442 = vsel %vm332, %v433, 0
        %v445 = vsel %vm332, %v434, 0
        %447 = vmatprep.subr.bf16.mxu0 %v442
        %448 = vmatpush1.bf16.msra.mxu0 %v439
        %449 = vmatprep.subr.bf16.mxu0 0
        %450 = vmatpush1.bf16.msra.mxu0 0
        %451 = vmatprep.subr.bf16.mxu0 0
        %452 = vmatpush1.bf16.msra.mxu0 0
        %453 = vmatprep.subr.bf16.mxu0 0
        %454 = vmatpush1.bf16.msra.mxu0 0
        %455 = vmatprep.subr.bf16.mxu0 0
        %456 = vmatpush1.bf16.msra.mxu0 0
        %457 = vmatprep.subr.bf16.mxu0 0
        %458 = vmatpush1.bf16.msra.mxu0 0
        %459 = vmatprep.subr.bf16.mxu0 0
        %460 = vmatpush1.bf16.msra.mxu0 0
        %461 = vmatprep.subr.bf16.mxu0 0
        %462 = vmatpush1.bf16.msra.mxu0 0
        %463 = vmatprep.subr.bf16.mxu0 0
        %464 = vmatpush1.bf16.msra.mxu0 0
        %465 = vmatprep.subr.bf16.mxu0 0
        %466 = vmatpush1.bf16.msra.mxu0 0
        %467 = vmatprep.subr.bf16.mxu0 0
        %468 = vmatpush1.bf16.msra.mxu0 0
        %469 = vmatprep.subr.bf16.mxu0 0
        %470 = vmatpush1.bf16.msra.mxu0 0
        %471 = vmatprep.subr.bf16.mxu0 0
        %472 = vmatpush1.bf16.msra.mxu0 0
        %473 = vmatprep.subr.bf16.mxu0 0
        %474 = vmatpush1.bf16.msra.mxu0 0
        %475 = vmatprep.subr.bf16.mxu0 0
        %476 = vmatpush1.bf16.msra.mxu0 0
        %477 = vmatprep.subr.bf16.mxu0 0
        %478 = vmatpush1.bf16.msra.mxu0 0
        %479 = vmatprep.mubr.bf16.mxu0 0
        %480 = vmatmul.mubr.bf16.gmra.mrb[0].mxu0 %v436
        %v481 = vpop.f32.mrb[0].mxu0
        %v482 = vadd.f32 %v377, %v481
        %v483 = vpop.f32.mrb[0].mxu0
        %v484 = vadd.f32 %v379, %v483
        %v485 = vpop.f32.mrb[0].mxu0
        %v486 = vpop.f32.mrb[0].mxu0
        %487 = vdwg.mxu0
        %488 = vmatprep.subr.bf16.mxu0 0
        %489 = vmatpush1.bf16.msra.mxu0 %v445
        %490 = vmatprep.subr.bf16.mxu0 0
        %491 = vmatpush1.bf16.msra.mxu0 0
        %492 = vmatprep.subr.bf16.mxu0 0
        %493 = vmatpush1.bf16.msra.mxu0 0
        %494 = vmatprep.subr.bf16.mxu0 0
        %495 = vmatpush1.bf16.msra.mxu0 0
        %496 = vmatprep.subr.bf16.mxu0 0
        %497 = vmatpush1.bf16.msra.mxu0 0
        %498 = vmatprep.subr.bf16.mxu0 0
        %499 = vmatpush1.bf16.msra.mxu0 0
        %500 = vmatprep.subr.bf16.mxu0 0
        %501 = vmatpush1.bf16.msra.mxu0 0
        %502 = vmatprep.subr.bf16.mxu0 0
        %503 = vmatpush1.bf16.msra.mxu0 0
        %504 = vmatprep.subr.bf16.mxu0 0
        %505 = vmatpush1.bf16.msra.mxu0 0
        %506 = vmatprep.subr.bf16.mxu0 0
        %507 = vmatpush1.bf16.msra.mxu0 0
        %508 = vmatprep.subr.bf16.mxu0 0
        %509 = vmatpush1.bf16.msra.mxu0 0
        %510 = vmatprep.subr.bf16.mxu0 0
        %511 = vmatpush1.bf16.msra.mxu0 0
        %512 = vmatprep.subr.bf16.mxu0 0
        %513 = vmatpush1.bf16.msra.mxu0 0
        %514 = vmatprep.subr.bf16.mxu0 0
        %515 = vmatpush1.bf16.msra.mxu0 0
        %516 = vmatprep.subr.bf16.mxu0 0
        %517 = vmatpush1.bf16.msra.mxu0 0
        %518 = vmatprep.subr.bf16.mxu0 0
        %519 = vmatpush1.bf16.msra.mxu0 0
        %520 = vmatprep.mubr.bf16.mxu0 0
        %521 = vmatmul.mubr.bf16.gmra.mrb[0].mxu0 %v436
        %v522 = vpop.f32.mrb[0].mxu0
        %v523 = vadd.f32 %v418, %v522
        %v524 = vpop.f32.mrb[0].mxu0
        %v525 = vpop.f32.mrb[0].mxu0
        %v526 = vpop.f32.mrb[0].mxu0
        %527 = vdwg.mxu0
        %s528 = scalar_lea.vmem [#allocation9], 8
        %v529 = vld [vmem:[%s528] sm:$0xf]
        %530 = vrot.lane.b32.xlu0 %v305, 17
        %v531 = vpop.permute.xlu0 %530
        %532 = vrot.lane.b32.xlu0 %v306, 17
        %v533 = vpop.permute.xlu0 %532
        %534 = vrot.lane.b32.xlu0 %v307, 17
        %v535 = vpop.permute.xlu0 %534
        %536 = vrot.lane.b32.xlu0 %v308, 17
        %v537 = vpop.permute.xlu0 %536
        %vm538 = vcmask 138240
        %v539 = vsel %vm538, %v531, %v533
        %v540 = vsel %vm538, %v533, %v535
        %v541 = vsel %vm538, %v535, %v537
        %v543 = vsel %vm328, %v529, 0
        %v546 = vsel %vm332, %v539, 0
        %v549 = vsel %vm332, %v540, 0
        %v552 = vsel %vm332, %v541, 0
        %554 = vmatprep.subr.bf16.mxu0 %v549
        %555 = vmatpush1.bf16.msra.mxu0 %v546
        %556 = vmatprep.subr.bf16.mxu0 0
        %557 = vmatpush1.bf16.msra.mxu0 0
        %558 = vmatprep.subr.bf16.mxu0 0
        %559 = vmatpush1.bf16.msra.mxu0 0
        %560 = vmatprep.subr.bf16.mxu0 0
        %561 = vmatpush1.bf16.msra.mxu0 0
        %562 = vmatprep.subr.bf16.mxu0 0
        %563 = vmatpush1.bf16.msra.mxu0 0
        %564 = vmatprep.subr.bf16.mxu0 0
        %565 = vmatpush1.bf16.msra.mxu0 0
        %566 = vmatprep.subr.bf16.mxu0 0
        %567 = vmatpush1.bf16.msra.mxu0 0
        %568 = vmatprep.subr.bf16.mxu0 0
        %569 = vmatpush1.bf16.msra.mxu0 0
        %570 = vmatprep.subr.bf16.mxu0 0
        %571 = vmatpush1.bf16.msra.mxu0 0
        %572 = vmatprep.subr.bf16.mxu0 0
        %573 = vmatpush1.bf16.msra.mxu0 0
        %574 = vmatprep.subr.bf16.mxu0 0
        %575 = vmatpush1.bf16.msra.mxu0 0
        %576 = vmatprep.subr.bf16.mxu0 0
        %577 = vmatpush1.bf16.msra.mxu0 0
        %578 = vmatprep.subr.bf16.mxu0 0
        %579 = vmatpush1.bf16.msra.mxu0 0
        %580 = vmatprep.subr.bf16.mxu0 0
        %581 = vmatpush1.bf16.msra.mxu0 0
        %582 = vmatprep.subr.bf16.mxu0 0
        %583 = vmatpush1.bf16.msra.mxu0 0
        %584 = vmatprep.subr.bf16.mxu0 0
        %585 = vmatpush1.bf16.msra.mxu0 0
        %586 = vmatprep.mubr.bf16.mxu0 0
        %587 = vmatmul.mubr.bf16.gmra.mrb[0].mxu0 %v543
        %v588 = vpop.f32.mrb[0].mxu0
        %v589 = vadd.f32 0.0, %v588
        %v590 = vpop.f32.mrb[0].mxu0
        %v591 = vadd.f32 0.0, %v590
        %v592 = vpop.f32.mrb[0].mxu0
        %v593 = vpop.f32.mrb[0].mxu0
        %594 = vdwg.mxu0
        %595 = vmatprep.subr.bf16.mxu0 0
        %596 = vmatpush1.bf16.msra.mxu0 %v552
        %597 = vmatprep.subr.bf16.mxu0 0
        %598 = vmatpush1.bf16.msra.mxu0 0
        %599 = vmatprep.subr.bf16.mxu0 0
        %600 = vmatpush1.bf16.msra.mxu0 0
        %601 = vmatprep.subr.bf16.mxu0 0
        %602 = vmatpush1.bf16.msra.mxu0 0
        %603 = vmatprep.subr.bf16.mxu0 0
        %604 = vmatpush1.bf16.msra.mxu0 0
        %605 = vmatprep.subr.bf16.mxu0 0
        %606 = vmatpush1.bf16.msra.mxu0 0
        %607 = vmatprep.subr.bf16.mxu0 0
        %608 = vmatpush1.bf16.msra.mxu0 0
        %609 = vmatprep.subr.bf16.mxu0 0
        %610 = vmatpush1.bf16.msra.mxu0 0
        %611 = vmatprep.subr.bf16.mxu0 0
        %612 = vmatpush1.bf16.msra.mxu0 0
        %613 = vmatprep.subr.bf16.mxu0 0
        %614 = vmatpush1.bf16.msra.mxu0 0
        %615 = vmatprep.subr.bf16.mxu0 0
        %616 = vmatpush1.bf16.msra.mxu0 0
        %617 = vmatprep.subr.bf16.mxu0 0
        %618 = vmatpush1.bf16.msra.mxu0 0
        %619 = vmatprep.subr.bf16.mxu0 0
        %620 = vmatpush1.bf16.msra.mxu0 0
        %621 = vmatprep.subr.bf16.mxu0 0
        %622 = vmatpush1.bf16.msra.mxu0 0
        %623 = vmatprep.subr.bf16.mxu0 0
        %624 = vmatpush1.bf16.msra.mxu0 0
        %625 = vmatprep.subr.bf16.mxu0 0
        %626 = vmatpush1.bf16.msra.mxu0 0
        %627 = vmatprep.mubr.bf16.mxu0 0
        %628 = vmatmul.mubr.bf16.gmra.mrb[0].mxu0 %v543
        %v629 = vpop.f32.mrb[0].mxu0
        %v630 = vadd.f32 0.0, %v629
        %v631 = vpop.f32.mrb[0].mxu0
        %v632 = vpop.f32.mrb[0].mxu0
        %v633 = vpop.f32.mrb[0].mxu0
        %634 = vdwg.mxu0
        %v635 = vadd.f32 %v482, %v589
        %v636 = vadd.f32 %v484, %v591
        %v637 = vadd.f32 %v523, %v630
        %s638 = scalar_lea.vmem [#allocation9], 12
        %v639 = vld [vmem:[%s638] sm:$0xf]
        %640 = vrot.lane.b32.xlu0 %v305, 1
        %v641 = vpop.permute.xlu0 %640
        %642 = vrot.lane.b32.xlu0 %v306, 1
        %v643 = vpop.permute.xlu0 %642
        %644 = vrot.lane.b32.xlu0 %v307, 1
        %v645 = vpop.permute.xlu0 %644
        %646 = vrot.lane.b32.xlu0 %v308, 1
        %v647 = vpop.permute.xlu0 %646
        %vm648 = vcmask 7168
        %v649 = vsel %vm648, %v641, %v643
        %v650 = vsel %vm648, %v643, %v645
        %v651 = vsel %vm648, %v645, %v647
        %v653 = vsel %vm328, %v639, 0
        %v656 = vsel %vm332, %v649, 0
        %v659 = vsel %vm332, %v650, 0
        %v662 = vsel %vm332, %v651, 0
        %664 = vmatprep.subr.bf16.mxu0 %v659
        %665 = vmatpush1.bf16.msra.mxu0 %v656
        %666 = vmatprep.subr.bf16.mxu0 0
        %667 = vmatpush1.bf16.msra.mxu0 0
        %668 = vmatprep.subr.bf16.mxu0 0
        %669 = vmatpush1.bf16.msra.mxu0 0
        %670 = vmatprep.subr.bf16.mxu0 0
        %671 = vmatpush1.bf16.msra.mxu0 0
        %672 = vmatprep.subr.bf16.mxu0 0
        %673 = vmatpush1.bf16.msra.mxu0 0
        %674 = vmatprep.subr.bf16.mxu0 0
        %675 = vmatpush1.bf16.msra.mxu0 0
        %676 = vmatprep.subr.bf16.mxu0 0
        %677 = vmatpush1.bf16.msra.mxu0 0
        %678 = vmatprep.subr.bf16.mxu0 0
        %679 = vmatpush1.bf16.msra.mxu0 0
        %680 = vmatprep.subr.bf16.mxu0 0
        %681 = vmatpush1.bf16.msra.mxu0 0
        %682 = vmatprep.subr.bf16.mxu0 0
        %683 = vmatpush1.bf16.msra.mxu0 0
        %684 = vmatprep.subr.bf16.mxu0 0
        %685 = vmatpush1.bf16.msra.mxu0 0
        %686 = vmatprep.subr.bf16.mxu0 0
        %687 = vmatpush1.bf16.msra.mxu0 0
        %688 = vmatprep.subr.bf16.mxu0 0
        %689 = vmatpush1.bf16.msra.mxu0 0
        %690 = vmatprep.subr.bf16.mxu0 0
        %691 = vmatpush1.bf16.msra.mxu0 0
        %692 = vmatprep.subr.bf16.mxu0 0
        %693 = vmatpush1.bf16.msra.mxu0 0
        %694 = vmatprep.subr.bf16.mxu0 0
        %695 = vmatpush1.bf16.msra.mxu0 0
        %696 = vmatprep.mubr.bf16.mxu0 0
        %697 = vmatmul.mubr.bf16.gmra.mrb[0].mxu0 %v653
        %v698 = vpop.f32.mrb[0].mxu0
        %v699 = vadd.f32 0.0, %v698
        %v700 = vpop.f32.mrb[0].mxu0
        %v701 = vadd.f32 0.0, %v700
        %v702 = vpop.f32.mrb[0].mxu0
        %v703 = vpop.f32.mrb[0].mxu0
        %704 = vdwg.mxu0
        %705 = vmatprep.subr.bf16.mxu0 0
        %706 = vmatpush1.bf16.msra.mxu0 %v662
        %707 = vmatprep.subr.bf16.mxu0 0
        %708 = vmatpush1.bf16.msra.mxu0 0
        %709 = vmatprep.subr.bf16.mxu0 0
        %710 = vmatpush1.bf16.msra.mxu0 0
        %711 = vmatprep.subr.bf16.mxu0 0
        %712 = vmatpush1.bf16.msra.mxu0 0
        %713 = vmatprep.subr.bf16.mxu0 0
        %714 = vmatpush1.bf16.msra.mxu0 0
        %715 = vmatprep.subr.bf16.mxu0 0
        %716 = vmatpush1.bf16.msra.mxu0 0
        %717 = vmatprep.subr.bf16.mxu0 0
        %718 = vmatpush1.bf16.msra.mxu0 0
        %719 = vmatprep.subr.bf16.mxu0 0
        %720 = vmatpush1.bf16.msra.mxu0 0
        %721 = vmatprep.subr.bf16.mxu0 0
        %722 = vmatpush1.bf16.msra.mxu0 0
        %723 = vmatprep.subr.bf16.mxu0 0
        %724 = vmatpush1.bf16.msra.mxu0 0
        %725 = vmatprep.subr.bf16.mxu0 0
        %726 = vmatpush1.bf16.msra.mxu0 0
        %727 = vmatprep.subr.bf16.mxu0 0
        %728 = vmatpush1.bf16.msra.mxu0 0
        %729 = vmatprep.subr.bf16.mxu0 0
        %730 = vmatpush1.bf16.msra.mxu0 0
        %731 = vmatprep.subr.bf16.mxu0 0
        %732 = vmatpush1.bf16.msra.mxu0 0
        %733 = vmatprep.subr.bf16.mxu0 0
        %734 = vmatpush1.bf16.msra.mxu0 0
        %735 = vmatprep.subr.bf16.mxu0 0
        %736 = vmatpush1.bf16.msra.mxu0 0
        %737 = vmatprep.mubr.bf16.mxu0 0
        %738 = vmatmul.mubr.bf16.gmra.mrb[0].mxu0 %v653
        %v739 = vpop.f32.mrb[0].mxu0
        %v740 = vadd.f32 0.0, %v739
        %v741 = vpop.f32.mrb[0].mxu0
        %v742 = vpop.f32.mrb[0].mxu0
        %v743 = vpop.f32.mrb[0].mxu0
        %744 = vdwg.mxu0
        %v745 = vadd.f32 %v635, %v699
        %v746 = vadd.f32 %v636, %v701
        %v747 = vadd.f32 %v637, %v740
        %s748 = scalar_lea.vmem [#allocation9], 16
        %v749 = vld [vmem:[%s748] sm:$0xf]
        %v751 = vsel %vm328, %v749, 0
        %v754 = vsel %vm332, %v306, 0
        %v757 = vsel %vm332, %v307, 0
        %v760 = vsel %vm332, %v308, 0
        %762 = vmatprep.subr.bf16.mxu0 %v757
        %763 = vmatpush1.bf16.msra.mxu0 %v754
        %764 = vmatprep.subr.bf16.mxu0 0
        %765 = vmatpush1.bf16.msra.mxu0 0
        %766 = vmatprep.subr.bf16.mxu0 0
        %767 = vmatpush1.bf16.msra.mxu0 0
        %768 = vmatprep.subr.bf16.mxu0 0
        %769 = vmatpush1.bf16.msra.mxu0 0
        %770 = vmatprep.subr.bf16.mxu0 0
        %771 = vmatpush1.bf16.msra.mxu0 0
        %772 = vmatprep.subr.bf16.mxu0 0
        %773 = vmatpush1.bf16.msra.mxu0 0
        %774 = vmatprep.subr.bf16.mxu0 0
        %775 = vmatpush1.bf16.msra.mxu0 0
        %776 = vmatprep.subr.bf16.mxu0 0
        %777 = vmatpush1.bf16.msra.mxu0 0
        %778 = vmatprep.subr.bf16.mxu0 0
        %779 = vmatpush1.bf16.msra.mxu0 0
        %780 = vmatprep.subr.bf16.mxu0 0
        %781 = vmatpush1.bf16.msra.mxu0 0
        %782 = vmatprep.subr.bf16.mxu0 0
        %783 = vmatpush1.bf16.msra.mxu0 0
        %784 = vmatprep.subr.bf16.mxu0 0
        %785 = vmatpush1.bf16.msra.mxu0 0
        %786 = vmatprep.subr.bf16.mxu0 0
        %787 = vmatpush1.bf16.msra.mxu0 0
        %788 = vmatprep.subr.bf16.mxu0 0
        %789 = vmatpush1.bf16.msra.mxu0 0
        %790 = vmatprep.subr.bf16.mxu0 0
        %791 = vmatpush1.bf16.msra.mxu0 0
        %792 = vmatprep.subr.bf16.mxu0 0
        %793 = vmatpush1.bf16.msra.mxu0 0
        %794 = vmatprep.mubr.bf16.mxu0 0
        %795 = vmatmul.mubr.bf16.gmra.mrb[0].mxu0 %v751
        %v796 = vpop.f32.mrb[0].mxu0
        %v797 = vadd.f32 0.0, %v796
        %v798 = vpop.f32.mrb[0].mxu0
        %v799 = vadd.f32 0.0, %v798
        %v800 = vpop.f32.mrb[0].mxu0
        %v801 = vpop.f32.mrb[0].mxu0
        %802 = vdwg.mxu0
        %803 = vmatprep.subr.bf16.mxu0 0
        %804 = vmatpush1.bf16.msra.mxu0 %v760
        %805 = vmatprep.subr.bf16.mxu0 0
        %806 = vmatpush1.bf16.msra.mxu0 0
        %807 = vmatprep.subr.bf16.mxu0 0
        %808 = vmatpush1.bf16.msra.mxu0 0
        %809 = vmatprep.subr.bf16.mxu0 0
        %810 = vmatpush1.bf16.msra.mxu0 0
        %811 = vmatprep.subr.bf16.mxu0 0
        %812 = vmatpush1.bf16.msra.mxu0 0
        %813 = vmatprep.subr.bf16.mxu0 0
        %814 = vmatpush1.bf16.msra.mxu0 0
        %815 = vmatprep.subr.bf16.mxu0 0
        %816 = vmatpush1.bf16.msra.mxu0 0
        %817 = vmatprep.subr.bf16.mxu0 0
        %818 = vmatpush1.bf16.msra.mxu0 0
        %819 = vmatprep.subr.bf16.mxu0 0
        %820 = vmatpush1.bf16.msra.mxu0 0
        %821 = vmatprep.subr.bf16.mxu0 0
        %822 = vmatpush1.bf16.msra.mxu0 0
        %823 = vmatprep.subr.bf16.mxu0 0
        %824 = vmatpush1.bf16.msra.mxu0 0
        %825 = vmatprep.subr.bf16.mxu0 0
        %826 = vmatpush1.bf16.msra.mxu0 0
        %827 = vmatprep.subr.bf16.mxu0 0
        %828 = vmatpush1.bf16.msra.mxu0 0
        %829 = vmatprep.subr.bf16.mxu0 0
        %830 = vmatpush1.bf16.msra.mxu0 0
        %831 = vmatprep.subr.bf16.mxu0 0
        %832 = vmatpush1.bf16.msra.mxu0 0
        %833 = vmatprep.subr.bf16.mxu0 0
        %834 = vmatpush1.bf16.msra.mxu0 0
        %835 = vmatprep.mubr.bf16.mxu0 0
        %836 = vmatmul.mubr.bf16.gmra.mrb[0].mxu0 %v751
        %v837 = vpop.f32.mrb[0].mxu0
        %v838 = vadd.f32 0.0, %v837
        %v839 = vpop.f32.mrb[0].mxu0
        %v840 = vpop.f32.mrb[0].mxu0
        %v841 = vpop.f32.mrb[0].mxu0
        %842 = vdwg.mxu0
        %v843 = vadd.f32 %v745, %v797
        %v844 = vadd.f32 %v746, %v799
        %v845 = vadd.f32 %v747, %v838
        %v846 = vld [vmem:[%s252 + $0x8] sm:$0xff]
        %v847 = vld [vmem:[%s252 + $0x10] sm:$0xff]
        %v848 = vld [vmem:[%s252 + $0x18] sm:$0xff]
        %v849 = vld [vmem:[%s252 + $0x20] sm:$0xff]
        %v850 = vpack.c.bf16 %v846, %v846
        %v851 = vpack.c.bf16 %v847, %v847
        %v852 = vpack.c.bf16 %v848, %v848
        %v853 = vpack.c.bf16 %v849, %v849
        %s854 = scalar_lea.vmem [#allocation9], 20
        %v855 = vld [vmem:[%s854] sm:$0xf]
        %860 = vrot.lane.b32.xlu0 %v850, 127
        %v861 = vpop.permute.xlu0 %860
        %862 = vrot.lane.b32.xlu0 %v851, 127
        %v863 = vpop.permute.xlu0 %862
        %864 = vrot.lane.b32.xlu0 %v852, 127
        %v865 = vpop.permute.xlu0 %864
        %866 = vrot.lane.b32.xlu0 %v853, 127
        %v867 = vpop.permute.xlu0 %866
        %vm868 = vcmask 1039360
        %v869 = vsel %vm868, %v861, %v863
        %v870 = vsel %vm868, %v863, %v865
        %v871 = vsel %vm868, %v865, %v867
        %v873 = vsel %vm328, %v855, 0
        %v876 = vsel %vm332, %v869, 0
        %v879 = vsel %vm332, %v870, 0
        %v882 = vsel %vm332, %v871, 0
        %884 = vmatprep.subr.bf16.mxu0 %v879
        %885 = vmatpush1.bf16.msra.mxu0 %v876
        %886 = vmatprep.subr.bf16.mxu0 0
        %887 = vmatpush1.bf16.msra.mxu0 0
        %888 = vmatprep.subr.bf16.mxu0 0
        %889 = vmatpush1.bf16.msra.mxu0 0
        %890 = vmatprep.subr.bf16.mxu0 0
        %891 = vmatpush1.bf16.msra.mxu0 0
        %892 = vmatprep.subr.bf16.mxu0 0
        %893 = vmatpush1.bf16.msra.mxu0 0
        %894 = vmatprep.subr.bf16.mxu0 0
        %895 = vmatpush1.bf16.msra.mxu0 0
        %896 = vmatprep.subr.bf16.mxu0 0
        %897 = vmatpush1.bf16.msra.mxu0 0
        %898 = vmatprep.subr.bf16.mxu0 0
        %899 = vmatpush1.bf16.msra.mxu0 0
        %900 = vmatprep.subr.bf16.mxu0 0
        %901 = vmatpush1.bf16.msra.mxu0 0
        %902 = vmatprep.subr.bf16.mxu0 0
        %903 = vmatpush1.bf16.msra.mxu0 0
        %904 = vmatprep.subr.bf16.mxu0 0
        %905 = vmatpush1.bf16.msra.mxu0 0
        %906 = vmatprep.subr.bf16.mxu0 0
        %907 = vmatpush1.bf16.msra.mxu0 0
        %908 = vmatprep.subr.bf16.mxu0 0
        %909 = vmatpush1.bf16.msra.mxu0 0
        %910 = vmatprep.subr.bf16.mxu0 0
        %911 = vmatpush1.bf16.msra.mxu0 0
        %912 = vmatprep.subr.bf16.mxu0 0
        %913 = vmatpush1.bf16.msra.mxu0 0
        %914 = vmatprep.subr.bf16.mxu0 0
        %915 = vmatpush1.bf16.msra.mxu0 0
        %916 = vmatprep.mubr.bf16.mxu0 0
        %917 = vmatmul.mubr.bf16.gmra.mrb[0].mxu0 %v873
        %v918 = vpop.f32.mrb[0].mxu0
        %v919 = vadd.f32 0.0, %v918
        %v920 = vpop.f32.mrb[0].mxu0
        %v921 = vadd.f32 0.0, %v920
        %v922 = vpop.f32.mrb[0].mxu0
        %v923 = vpop.f32.mrb[0].mxu0
        %924 = vdwg.mxu0
        %925 = vmatprep.subr.bf16.mxu0 0
        %926 = vmatpush1.bf16.msra.mxu0 %v882
        %927 = vmatprep.subr.bf16.mxu0 0
        %928 = vmatpush1.bf16.msra.mxu0 0
        %929 = vmatprep.subr.bf16.mxu0 0
        %930 = vmatpush1.bf16.msra.mxu0 0
        %931 = vmatprep.subr.bf16.mxu0 0
        %932 = vmatpush1.bf16.msra.mxu0 0
        %933 = vmatprep.subr.bf16.mxu0 0
        %934 = vmatpush1.bf16.msra.mxu0 0
        %935 = vmatprep.subr.bf16.mxu0 0
        %936 = vmatpush1.bf16.msra.mxu0 0
        %937 = vmatprep.subr.bf16.mxu0 0
        %938 = vmatpush1.bf16.msra.mxu0 0
        %939 = vmatprep.subr.bf16.mxu0 0
        %940 = vmatpush1.bf16.msra.mxu0 0
        %941 = vmatprep.subr.bf16.mxu0 0
        %942 = vmatpush1.bf16.msra.mxu0 0
        %943 = vmatprep.subr.bf16.mxu0 0
        %944 = vmatpush1.bf16.msra.mxu0 0
        %945 = vmatprep.subr.bf16.mxu0 0
        %946 = vmatpush1.bf16.msra.mxu0 0
        %947 = vmatprep.subr.bf16.mxu0 0
        %948 = vmatpush1.bf16.msra.mxu0 0
        %949 = vmatprep.subr.bf16.mxu0 0
        %950 = vmatpush1.bf16.msra.mxu0 0
        %951 = vmatprep.subr.bf16.mxu0 0
        %952 = vmatpush1.bf16.msra.mxu0 0
        %953 = vmatprep.subr.bf16.mxu0 0
        %954 = vmatpush1.bf16.msra.mxu0 0
        %955 = vmatprep.subr.bf16.mxu0 0
        %956 = vmatpush1.bf16.msra.mxu0 0
        %957 = vmatprep.mubr.bf16.mxu0 0
        %958 = vmatmul.mubr.bf16.gmra.mrb[0].mxu0 %v873
        %v959 = vpop.f32.mrb[0].mxu0
        %v960 = vadd.f32 0.0, %v959
        %v961 = vpop.f32.mrb[0].mxu0
        %v962 = vpop.f32.mrb[0].mxu0
        %v963 = vpop.f32.mrb[0].mxu0
        %964 = vdwg.mxu0
        %v965 = vadd.f32 %v843, %v919
        %v966 = vadd.f32 %v844, %v921
        %v967 = vadd.f32 %v845, %v960
        %s968 = scalar_lea.vmem [#allocation9], 24
        %v969 = vld [vmem:[%s968] sm:$0xf]
        %970 = vrot.lane.b32.xlu0 %v850, 111
        %v971 = vpop.permute.xlu0 %970
        %972 = vrot.lane.b32.xlu0 %v851, 111
        %v973 = vpop.permute.xlu0 %972
        %974 = vrot.lane.b32.xlu0 %v852, 111
        %v975 = vpop.permute.xlu0 %974
        %976 = vrot.lane.b32.xlu0 %v853, 111
        %v977 = vpop.permute.xlu0 %976
        %vm978 = vcmask 908288
        %v979 = vsel %vm978, %v971, %v973
        %v980 = vsel %vm978, %v973, %v975
        %v981 = vsel %vm978, %v975, %v977
        %v983 = vsel %vm328, %v969, 0
        %v986 = vsel %vm332, %v979, 0
        %v989 = vsel %vm332, %v980, 0
        %v992 = vsel %vm332, %v981, 0
        %994 = vmatprep.subr.bf16.mxu0 %v989
        %995 = vmatpush1.bf16.msra.mxu0 %v986
        %996 = vmatprep.subr.bf16.mxu0 0
        %997 = vmatpush1.bf16.msra.mxu0 0
        %998 = vmatprep.subr.bf16.mxu0 0
        %999 = vmatpush1.bf16.msra.mxu0 0
        %1000 = vmatprep.subr.bf16.mxu0 0
        %1001 = vmatpush1.bf16.msra.mxu0 0
        %1002 = vmatprep.subr.bf16.mxu0 0
        %1003 = vmatpush1.bf16.msra.mxu0 0
        %1004 = vmatprep.subr.bf16.mxu0 0
        %1005 = vmatpush1.bf16.msra.mxu0 0
        %1006 = vmatprep.subr.bf16.mxu0 0
        %1007 = vmatpush1.bf16.msra.mxu0 0
        %1008 = vmatprep.subr.bf16.mxu0 0
        %1009 = vmatpush1.bf16.msra.mxu0 0
        %1010 = vmatprep.subr.bf16.mxu0 0
        %1011 = vmatpush1.bf16.msra.mxu0 0
        %1012 = vmatprep.subr.bf16.mxu0 0
        %1013 = vmatpush1.bf16.msra.mxu0 0
        %1014 = vmatprep.subr.bf16.mxu0 0
        %1015 = vmatpush1.bf16.msra.mxu0 0
        %1016 = vmatprep.subr.bf16.mxu0 0
        %1017 = vmatpush1.bf16.msra.mxu0 0
        %1018 = vmatprep.subr.bf16.mxu0 0
        %1019 = vmatpush1.bf16.msra.mxu0 0
        %1020 = vmatprep.subr.bf16.mxu0 0
        %1021 = vmatpush1.bf16.msra.mxu0 0
        %1022 = vmatprep.subr.bf16.mxu0 0
        %1023 = vmatpush1.bf16.msra.mxu0 0
        %1024 = vmatprep.subr.bf16.mxu0 0
        %1025 = vmatpush1.bf16.msra.mxu0 0
        %1026 = vmatprep.mubr.bf16.mxu0 0
        %1027 = vmatmul.mubr.bf16.gmra.mrb[0].mxu0 %v983
        %v1028 = vpop.f32.mrb[0].mxu0
        %v1029 = vadd.f32 0.0, %v1028
        %v1030 = vpop.f32.mrb[0].mxu0
        %v1031 = vadd.f32 0.0, %v1030
        %v1032 = vpop.f32.mrb[0].mxu0
        %v1033 = vpop.f32.mrb[0].mxu0
        %1034 = vdwg.mxu0
        %1035 = vmatprep.subr.bf16.mxu0 0
        %1036 = vmatpush1.bf16.msra.mxu0 %v992
        %1037 = vmatprep.subr.bf16.mxu0 0
        %1038 = vmatpush1.bf16.msra.mxu0 0
        %1039 = vmatprep.subr.bf16.mxu0 0
        %1040 = vmatpush1.bf16.msra.mxu0 0
        %1041 = vmatprep.subr.bf16.mxu0 0
        %1042 = vmatpush1.bf16.msra.mxu0 0
        %1043 = vmatprep.subr.bf16.mxu0 0
        %1044 = vmatpush1.bf16.msra.mxu0 0
        %1045 = vmatprep.subr.bf16.mxu0 0
        %1046 = vmatpush1.bf16.msra.mxu0 0
        %1047 = vmatprep.subr.bf16.mxu0 0
        %1048 = vmatpush1.bf16.msra.mxu0 0
        %1049 = vmatprep.subr.bf16.mxu0 0
        %1050 = vmatpush1.bf16.msra.mxu0 0
        %1051 = vmatprep.subr.bf16.mxu0 0
        %1052 = vmatpush1.bf16.msra.mxu0 0
        %1053 = vmatprep.subr.bf16.mxu0 0
        %1054 = vmatpush1.bf16.msra.mxu0 0
        %1055 = vmatprep.subr.bf16.mxu0 0
        %1056 = vmatpush1.bf16.msra.mxu0 0
        %1057 = vmatprep.subr.bf16.mxu0 0
        %1058 = vmatpush1.bf16.msra.mxu0 0
        %1059 = vmatprep.subr.bf16.mxu0 0
        %1060 = vmatpush1.bf16.msra.mxu0 0
        %1061 = vmatprep.subr.bf16.mxu0 0
        %1062 = vmatpush1.bf16.msra.mxu0 0
        %1063 = vmatprep.subr.bf16.mxu0 0
        %1064 = vmatpush1.bf16.msra.mxu0 0
        %1065 = vmatprep.subr.bf16.mxu0 0
        %1066 = vmatpush1.bf16.msra.mxu0 0
        %1067 = vmatprep.mubr.bf16.mxu0 0
        %1068 = vmatmul.mubr.bf16.gmra.mrb[0].mxu0 %v983
        %v1069 = vpop.f32.mrb[0].mxu0
        %v1070 = vadd.f32 0.0, %v1069
        %v1071 = vpop.f32.mrb[0].mxu0
        %v1072 = vpop.f32.mrb[0].mxu0
        %v1073 = vpop.f32.mrb[0].mxu0
        %1074 = vdwg.mxu0
        %v1075 = vadd.f32 %v965, %v1029
        %v1076 = vadd.f32 %v966, %v1031
        %v1077 = vadd.f32 %v967, %v1070
        %s1078 = scalar_lea.vmem [#allocation9], 28
        %v1079 = vld [vmem:[%s1078] sm:$0xf]
        %1080 = vrot.lane.b32.xlu0 %v850, 110
        %v1081 = vpop.permute.xlu0 %1080
        %1082 = vrot.lane.b32.xlu0 %v851, 110
        %v1083 = vpop.permute.xlu0 %1082
        %1084 = vrot.lane.b32.xlu0 %v852, 110
        %v1085 = vpop.permute.xlu0 %1084
        %1086 = vrot.lane.b32.xlu0 %v853, 110
        %v1087 = vpop.permute.xlu0 %1086
        %vm1088 = vcmask 900096
        %v1089 = vsel %vm1088, %v1081, %v1083
        %v1090 = vsel %vm1088, %v1083, %v1085
        %v1091 = vsel %vm1088, %v1085, %v1087
        %v1093 = vsel %vm328, %v1079, 0
        %v1096 = vsel %vm332, %v1089, 0
        %v1099 = vsel %vm332, %v1090, 0
        %v1102 = vsel %vm332, %v1091, 0
        %1104 = vmatprep.subr.bf16.mxu0 %v1099
        %1105 = vmatpush1.bf16.msra.mxu0 %v1096
        %1106 = vmatprep.subr.bf16.mxu0 0
        %1107 = vmatpush1.bf16.msra.mxu0 0
        %1108 = vmatprep.subr.bf16.mxu0 0
        %1109 = vmatpush1.bf16.msra.mxu0 0
        %1110 = vmatprep.subr.bf16.mxu0 0
        %1111 = vmatpush1.bf16.msra.mxu0 0
        %1112 = vmatprep.subr.bf16.mxu0 0
        %1113 = vmatpush1.bf16.msra.mxu0 0
        %1114 = vmatprep.subr.bf16.mxu0 0
        %1115 = vmatpush1.bf16.msra.mxu0 0
        %1116 = vmatprep.subr.bf16.mxu0 0
        %1117 = vmatpush1.bf16.msra.mxu0 0
        %1118 = vmatprep.subr.bf16.mxu0 0
        %1119 = vmatpush1.bf16.msra.mxu0 0
        %1120 = vmatprep.subr.bf16.mxu0 0
        %1121 = vmatpush1.bf16.msra.mxu0 0
        %1122 = vmatprep.subr.bf16.mxu0 0
        %1123 = vmatpush1.bf16.msra.mxu0 0
        %1124 = vmatprep.subr.bf16.mxu0 0
        %1125 = vmatpush1.bf16.msra.mxu0 0
        %1126 = vmatprep.subr.bf16.mxu0 0
        %1127 = vmatpush1.bf16.msra.mxu0 0
        %1128 = vmatprep.subr.bf16.mxu0 0
        %1129 = vmatpush1.bf16.msra.mxu0 0
        %1130 = vmatprep.subr.bf16.mxu0 0
        %1131 = vmatpush1.bf16.msra.mxu0 0
        %1132 = vmatprep.subr.bf16.mxu0 0
        %1133 = vmatpush1.bf16.msra.mxu0 0
        %1134 = vmatprep.subr.bf16.mxu0 0
        %1135 = vmatpush1.bf16.msra.mxu0 0
        %1136 = vmatprep.mubr.bf16.mxu0 0
        %1137 = vmatmul.mubr.bf16.gmra.mrb[0].mxu0 %v1093
        %v1138 = vpop.f32.mrb[0].mxu0
        %v1139 = vadd.f32 0.0, %v1138
        %v1140 = vpop.f32.mrb[0].mxu0
        %v1141 = vadd.f32 0.0, %v1140
        %v1142 = vpop.f32.mrb[0].mxu0
        %v1143 = vpop.f32.mrb[0].mxu0
        %1144 = vdwg.mxu0
        %1145 = vmatprep.subr.bf16.mxu0 0
        %1146 = vmatpush1.bf16.msra.mxu0 %v1102
        %1147 = vmatprep.subr.bf16.mxu0 0
        %1148 = vmatpush1.bf16.msra.mxu0 0
        %1149 = vmatprep.subr.bf16.mxu0 0
        %1150 = vmatpush1.bf16.msra.mxu0 0
        %1151 = vmatprep.subr.bf16.mxu0 0
        %1152 = vmatpush1.bf16.msra.mxu0 0
        %1153 = vmatprep.subr.bf16.mxu0 0
        %1154 = vmatpush1.bf16.msra.mxu0 0
        %1155 = vmatprep.subr.bf16.mxu0 0
        %1156 = vmatpush1.bf16.msra.mxu0 0
        %1157 = vmatprep.subr.bf16.mxu0 0
        %1158 = vmatpush1.bf16.msra.mxu0 0
        %1159 = vmatprep.subr.bf16.mxu0 0
        %1160 = vmatpush1.bf16.msra.mxu0 0
        %1161 = vmatprep.subr.bf16.mxu0 0
        %1162 = vmatpush1.bf16.msra.mxu0 0
        %1163 = vmatprep.subr.bf16.mxu0 0
        %1164 = vmatpush1.bf16.msra.mxu0 0
        %1165 = vmatprep.subr.bf16.mxu0 0
        %1166 = vmatpush1.bf16.msra.mxu0 0
        %1167 = vmatprep.subr.bf16.mxu0 0
        %1168 = vmatpush1.bf16.msra.mxu0 0
        %1169 = vmatprep.subr.bf16.mxu0 0
        %1170 = vmatpush1.bf16.msra.mxu0 0
        %1171 = vmatprep.subr.bf16.mxu0 0
        %1172 = vmatpush1.bf16.msra.mxu0 0
        %1173 = vmatprep.subr.bf16.mxu0 0
        %1174 = vmatpush1.bf16.msra.mxu0 0
        %1175 = vmatprep.subr.bf16.mxu0 0
        %1176 = vmatpush1.bf16.msra.mxu0 0
        %1177 = vmatprep.mubr.bf16.mxu0 0
        %1178 = vmatmul.mubr.bf16.gmra.mrb[0].mxu0 %v1093
        %v1179 = vpop.f32.mrb[0].mxu0
        %v1180 = vadd.f32 0.0, %v1179
        %v1181 = vpop.f32.mrb[0].mxu0
        %v1182 = vpop.f32.mrb[0].mxu0
        %v1183 = vpop.f32.mrb[0].mxu0
        %1184 = vdwg.mxu0
        %v1185 = vadd.f32 %v1075, %v1139
        %v1186 = vadd.f32 %v1076, %v1141
        %v1187 = vadd.f32 %v1077, %v1180
        %s1188 = scalar_lea.vmem [#allocation9], 32
        %v1189 = vld [vmem:[%s1188] sm:$0xf]
        %1190 = vrot.lane.b32.xlu0 %v850, 109
        %v1191 = vpop.permute.xlu0 %1190
        %1192 = vrot.lane.b32.xlu0 %v851, 109
        %v1193 = vpop.permute.xlu0 %1192
        %1194 = vrot.lane.b32.xlu0 %v852, 109
        %v1195 = vpop.permute.xlu0 %1194
        %1196 = vrot.lane.b32.xlu0 %v853, 109
        %v1197 = vpop.permute.xlu0 %1196
        %vm1198 = vcmask 891904
        %v1199 = vsel %vm1198, %v1191, %v1193
        %v1200 = vsel %vm1198, %v1193, %v1195
        %v1201 = vsel %vm1198, %v1195, %v1197
        %v1203 = vsel %vm328, %v1189, 0
        %v1206 = vsel %vm332, %v1199, 0
        %v1209 = vsel %vm332, %v1200, 0
        %v1212 = vsel %vm332, %v1201, 0
        %1214 = vmatprep.subr.bf16.mxu0 %v1209
        %1215 = vmatpush1.bf16.msra.mxu0 %v1206
        %1216 = vmatprep.subr.bf16.mxu0 0
        %1217 = vmatpush1.bf16.msra.mxu0 0
        %1218 = vmatprep.subr.bf16.mxu0 0
        %1219 = vmatpush1.bf16.msra.mxu0 0
        %1220 = vmatprep.subr.bf16.mxu0 0
        %1221 = vmatpush1.bf16.msra.mxu0 0
        %1222 = vmatprep.subr.bf16.mxu0 0
        %1223 = vmatpush1.bf16.msra.mxu0 0
        %1224 = vmatprep.subr.bf16.mxu0 0
        %1225 = vmatpush1.bf16.msra.mxu0 0
        %1226 = vmatprep.subr.bf16.mxu0 0
        %1227 = vmatpush1.bf16.msra.mxu0 0
        %1228 = vmatprep.subr.bf16.mxu0 0
        %1229 = vmatpush1.bf16.msra.mxu0 0
        %1230 = vmatprep.subr.bf16.mxu0 0
        %1231 = vmatpush1.bf16.msra.mxu0 0
        %1232 = vmatprep.subr.bf16.mxu0 0
        %1233 = vmatpush1.bf16.msra.mxu0 0
        %1234 = vmatprep.subr.bf16.mxu0 0
        %1235 = vmatpush1.bf16.msra.mxu0 0
        %1236 = vmatprep.subr.bf16.mxu0 0
        %1237 = vmatpush1.bf16.msra.mxu0 0
        %1238 = vmatprep.subr.bf16.mxu0 0
        %1239 = vmatpush1.bf16.msra.mxu0 0
        %1240 = vmatprep.subr.bf16.mxu0 0
        %1241 = vmatpush1.bf16.msra.mxu0 0
        %1242 = vmatprep.subr.bf16.mxu0 0
        %1243 = vmatpush1.bf16.msra.mxu0 0
        %1244 = vmatprep.subr.bf16.mxu0 0
        %1245 = vmatpush1.bf16.msra.mxu0 0
        %1246 = vmatprep.mubr.bf16.mxu0 0
        %1247 = vmatmul.mubr.bf16.gmra.mrb[0].mxu0 %v1203
        %v1248 = vpop.f32.mrb[0].mxu0
        %v1249 = vadd.f32 0.0, %v1248
        %v1250 = vpop.f32.mrb[0].mxu0
        %v1251 = vadd.f32 0.0, %v1250
        %v1252 = vpop.f32.mrb[0].mxu0
        %v1253 = vpop.f32.mrb[0].mxu0
        %1254 = vdwg.mxu0
        %1255 = vmatprep.subr.bf16.mxu0 0
        %1256 = vmatpush1.bf16.msra.mxu0 %v1212
        %1257 = vmatprep.subr.bf16.mxu0 0
        %1258 = vmatpush1.bf16.msra.mxu0 0
        %1259 = vmatprep.subr.bf16.mxu0 0
        %1260 = vmatpush1.bf16.msra.mxu0 0
        %1261 = vmatprep.subr.bf16.mxu0 0
        %1262 = vmatpush1.bf16.msra.mxu0 0
        %1263 = vmatprep.subr.bf16.mxu0 0
        %1264 = vmatpush1.bf16.msra.mxu0 0
        %1265 = vmatprep.subr.bf16.mxu0 0
        %1266 = vmatpush1.bf16.msra.mxu0 0
        %1267 = vmatprep.subr.bf16.mxu0 0
        %1268 = vmatpush1.bf16.msra.mxu0 0
        %1269 = vmatprep.subr.bf16.mxu0 0
        %1270 = vmatpush1.bf16.msra.mxu0 0
        %1271 = vmatprep.subr.bf16.mxu0 0
        %1272 = vmatpush1.bf16.msra.mxu0 0
        %1273 = vmatprep.subr.bf16.mxu0 0
        %1274 = vmatpush1.bf16.msra.mxu0 0
        %1275 = vmatprep.subr.bf16.mxu0 0
        %1276 = vmatpush1.bf16.msra.mxu0 0
        %1277 = vmatprep.subr.bf16.mxu0 0
        %1278 = vmatpush1.bf16.msra.mxu0 0
        %1279 = vmatprep.subr.bf16.mxu0 0
        %1280 = vmatpush1.bf16.msra.mxu0 0
        %1281 = vmatprep.subr.bf16.mxu0 0
        %1282 = vmatpush1.bf16.msra.mxu0 0
        %1283 = vmatprep.subr.bf16.mxu0 0
        %1284 = vmatpush1.bf16.msra.mxu0 0
        %1285 = vmatprep.subr.bf16.mxu0 0
        %1286 = vmatpush1.bf16.msra.mxu0 0
        %1287 = vmatprep.mubr.bf16.mxu0 0
        %1288 = vmatmul.mubr.bf16.gmra.mrb[0].mxu0 %v1203
        %v1289 = vpop.f32.mrb[0].mxu0
        %v1290 = vadd.f32 0.0, %v1289
        %v1291 = vpop.f32.mrb[0].mxu0
        %v1292 = vpop.f32.mrb[0].mxu0
        %v1293 = vpop.f32.mrb[0].mxu0
        %1294 = vdwg.mxu0
        %v1295 = vadd.f32 %v1185, %v1249
        %v1296 = vadd.f32 %v1186, %v1251
        %v1297 = vadd.f32 %v1187, %v1290
        %v1298 = vld [vmem:[#allocation10] sm:$0xff]
        %1300 = vset.pattern.permute.xlu0 0
        %1301 = vperm.xlu0 %1300, %v1298
        %v1302 = vpop.permute.xlu0 %1301
        %v1304 = vmul.f32 %v1295, %v1302
        %v1305 = vmul.f32 %v1296, %v1302
        %v1306 = vmul.f32 %v1297, %v1302
        %s1307 = scalar_lea.vmem [#allocation10], 8
        %v1308 = vld [vmem:[%s1307] sm:$0xff]
        %1310 = vset.pattern.permute.xlu0 0
        %1311 = vperm.xlu0 %1310, %v1308
        %v1312 = vpop.permute.xlu0 %1311
        %v1314 = vadd.f32 %v1304, %v1312
        %v1315 = vadd.f32 %v1305, %v1312
        %v1316 = vadd.f32 %v1306, %v1312
        %vm1317 = vcmp.ge.f32.partialorder %v1314, 0.0
        %vm1318 = vcmp.ge.f32.partialorder %v1315, 0.0
        %vm1319 = vcmp.ge.f32.partialorder %v1316, 0.0
        %v1320 = vmul.f32 %v1314, 0.01
        %v1321 = vmul.f32 %v1315, 0.01
        %v1322 = vmul.f32 %v1316, 0.01
        %v1323 = vsel %vm1317, %v1314, %v1320
        %v1324 = vsel %vm1318, %v1315, %v1321
        %v1325 = vsel %vm1319, %v1316, %v1322
        %v1327 = vlaneseq
        %v1328 = vshrl.u32 %v1327, 7
        %v1329 = vsub.s32 0, %v1328
        %v1330 = vrot.slane %v296, %v1329
        %v1331 = vlaneseq
        %v1332 = vshrl.u32 %v1331, 7
        %v1333 = vsub.s32 1, %v1332
        %v1334 = vrot.slane %v296, %v1333
        %v1335 = vlaneseq
        %v1336 = vshrl.u32 %v1335, 7
        %v1337 = vsub.s32 2, %v1336
        %v1338 = vrot.slane %v296, %v1337
        %v1342 = vmul.f32 %v1323, %v1330
        %v1343 = vmul.f32 %v1324, %v1334
        %v1344 = vmul.f32 %v1325, %v1338
        %v1345 = vpack.c.bf16 %v1342, %v1342
        %v1346 = vpack.c.bf16 %v1343, %v1343
        %v1347 = vpack.c.bf16 %v1344, %v1344
        %v1351 = vunpack.c.l.b16 %v1345
        %v1352 = vunpack.c.l.b16 %v1346
        %v1353 = vunpack.c.l.b16 %v1347
        %v1354 = vpack.c.b16 %v1352, %v1351
        %v1355 = vpack.c.b16 %v1353, %v1353
        %1358 = vst [vmem:[#allocation2 + $0x4] sm:$0xff] %v1354
        %1359 = vst [vmem:[#allocation2 + $0xc] sm:$0xf] %v1355
        %v1360 = vld [vmem:[#allocation2] sm:$0xff]
        %v1361 = vld [vmem:[#allocation2 + $0x8] sm:$0xff]
        %s1362 = scalar_lea.vmem [#allocation9], 36
        %v1363 = vld [vmem:[%s1362] sm:$0xf]
        %s1364 = scalar_lea.vmem [#allocation9], 40
        %v1365 = vld [vmem:[%s1364] sm:$0xf]
        %v1368 = vunpack.c.l.b16 %v1360
        %v1369 = vunpack.c.h.b16 %v1360
        %v1370 = vunpack.c.l.b16 %v1361
        %v1371 = vunpack.c.h.b16 %v1361
        %v1372 = vpack.c.b16 %v1368, %v1368
        %v1373 = vpack.c.b16 %v1369, %v1369
        %v1374 = vpack.c.b16 %v1370, %v1370
        %v1375 = vpack.c.b16 %v1371, %v1371
        %1376 = vrot.lane.b32.xlu0 %v1372, 18
        %v1377 = vpop.permute.xlu0 %1376
        %1378 = vrot.lane.b32.xlu0 %v1373, 18
        %v1379 = vpop.permute.xlu0 %1378
        %1380 = vrot.lane.b32.xlu0 %v1374, 18
        %v1381 = vpop.permute.xlu0 %1380
        %1382 = vrot.lane.b32.xlu0 %v1375, 18
        %v1383 = vpop.permute.xlu0 %1382
        %v1384 = vsel %vm324, %v1377, %v1379
        %v1385 = vsel %vm324, %v1379, %v1381
        %v1386 = vsel %vm324, %v1381, %v1383
        %v1388 = vsel %vm328, %v1365, 0
        %v1391 = vsel %vm332, %v1384, 0
        %v1394 = vsel %vm332, %v1385, 0
        %v1397 = vsel %vm332, %v1386, 0
        %1399 = vmatprep.subr.bf16.mxu0 %v1394
        %1400 = vmatpush1.bf16.msra.mxu0 %v1391
        %1401 = vmatprep.subr.bf16.mxu0 0
        %1402 = vmatpush1.bf16.msra.mxu0 0
        %1403 = vmatprep.subr.bf16.mxu0 0
        %1404 = vmatpush1.bf16.msra.mxu0 0
        %1405 = vmatprep.subr.bf16.mxu0 0
        %1406 = vmatpush1.bf16.msra.mxu0 0
        %1407 = vmatprep.subr.bf16.mxu0 0
        %1408 = vmatpush1.bf16.msra.mxu0 0
        %1409 = vmatprep.subr.bf16.mxu0 0
        %1410 = vmatpush1.bf16.msra.mxu0 0
        %1411 = vmatprep.subr.bf16.mxu0 0
        %1412 = vmatpush1.bf16.msra.mxu0 0
        %1413 = vmatprep.subr.bf16.mxu0 0
        %1414 = vmatpush1.bf16.msra.mxu0 0
        %1415 = vmatprep.subr.bf16.mxu0 0
        %1416 = vmatpush1.bf16.msra.mxu0 0
        %1417 = vmatprep.subr.bf16.mxu0 0
        %1418 = vmatpush1.bf16.msra.mxu0 0
        %1419 = vmatprep.subr.bf16.mxu0 0
        %1420 = vmatpush1.bf16.msra.mxu0 0
        %1421 = vmatprep.subr.bf16.mxu0 0
        %1422 = vmatpush1.bf16.msra.mxu0 0
        %1423 = vmatprep.subr.bf16.mxu0 0
        %1424 = vmatpush1.bf16.msra.mxu0 0
        %1425 = vmatprep.subr.bf16.mxu0 0
        %1426 = vmatpush1.bf16.msra.mxu0 0
        %1427 = vmatprep.subr.bf16.mxu0 0
        %1428 = vmatpush1.bf16.msra.mxu0 0
        %1429 = vmatprep.subr.bf16.mxu0 0
        %1430 = vmatpush1.bf16.msra.mxu0 0
        %1431 = vmatprep.mubr.bf16.mxu0 0
        %1432 = vmatmul.mubr.bf16.gmra.mrb[0].mxu0 %v1388
        %v1433 = vpop.f32.mrb[0].mxu0
        %v1434 = vadd.f32 0.0, %v1433
        %v1435 = vpop.f32.mrb[0].mxu0
        %v1436 = vadd.f32 0.0, %v1435
        %v1437 = vpop.f32.mrb[0].mxu0
        %v1438 = vpop.f32.mrb[0].mxu0
        %1439 = vdwg.mxu0
        %1440 = vmatprep.subr.bf16.mxu0 0
        %1441 = vmatpush1.bf16.msra.mxu0 %v1397
        %1442 = vmatprep.subr.bf16.mxu0 0
        %1443 = vmatpush1.bf16.msra.mxu0 0
        %1444 = vmatprep.subr.bf16.mxu0 0
        %1445 = vmatpush1.bf16.msra.mxu0 0
        %1446 = vmatprep.subr.bf16.mxu0 0
        %1447 = vmatpush1.bf16.msra.mxu0 0
        %1448 = vmatprep.subr.bf16.mxu0 0
        %1449 = vmatpush1.bf16.msra.mxu0 0
        %1450 = vmatprep.subr.bf16.mxu0 0
        %1451 = vmatpush1.bf16.msra.mxu0 0
        %1452 = vmatprep.subr.bf16.mxu0 0
        %1453 = vmatpush1.bf16.msra.mxu0 0
        %1454 = vmatprep.subr.bf16.mxu0 0
        %1455 = vmatpush1.bf16.msra.mxu0 0
        %1456 = vmatprep.subr.bf16.mxu0 0
        %1457 = vmatpush1.bf16.msra.mxu0 0
        %1458 = vmatprep.subr.bf16.mxu0 0
        %1459 = vmatpush1.bf16.msra.mxu0 0
        %1460 = vmatprep.subr.bf16.mxu0 0
        %1461 = vmatpush1.bf16.msra.mxu0 0
        %1462 = vmatprep.subr.bf16.mxu0 0
        %1463 = vmatpush1.bf16.msra.mxu0 0
        %1464 = vmatprep.subr.bf16.mxu0 0
        %1465 = vmatpush1.bf16.msra.mxu0 0
        %1466 = vmatprep.subr.bf16.mxu0 0
        %1467 = vmatpush1.bf16.msra.mxu0 0
        %1468 = vmatprep.subr.bf16.mxu0 0
        %1469 = vmatpush1.bf16.msra.mxu0 0
        %1470 = vmatprep.subr.bf16.mxu0 0
        %1471 = vmatpush1.bf16.msra.mxu0 0
        %1472 = vmatprep.mubr.bf16.mxu0 0
        %1473 = vmatmul.mubr.bf16.gmra.mrb[0].mxu0 %v1388
        %v1474 = vpop.f32.mrb[0].mxu0
        %v1475 = vadd.f32 0.0, %v1474
        %v1476 = vpop.f32.mrb[0].mxu0
        %v1477 = vpop.f32.mrb[0].mxu0
        %v1478 = vpop.f32.mrb[0].mxu0
        %1479 = vdwg.mxu0
        %1480 = vrot.lane.b32.xlu0 %v1372, 19
        %v1481 = vpop.permute.xlu0 %1480
        %1482 = vrot.lane.b32.xlu0 %v1373, 19
        %v1483 = vpop.permute.xlu0 %1482
        %1484 = vrot.lane.b32.xlu0 %v1374, 19
        %v1485 = vpop.permute.xlu0 %1484
        %1486 = vrot.lane.b32.xlu0 %v1375, 19
        %v1487 = vpop.permute.xlu0 %1486
        %v1488 = vsel %vm431, %v1481, %v1483
        %v1489 = vsel %vm431, %v1483, %v1485
        %v1490 = vsel %vm431, %v1485, %v1487
        %v1492 = vsel %vm328, %v1363, 0
        %v1495 = vsel %vm332, %v1488, 0
        %v1498 = vsel %vm332, %v1489, 0
        %v1501 = vsel %vm332, %v1490, 0
        %1503 = vmatprep.subr.bf16.mxu0 %v1498
        %1504 = vmatpush1.bf16.msra.mxu0 %v1495
        %1505 = vmatprep.subr.bf16.mxu0 0
        %1506 = vmatpush1.bf16.msra.mxu0 0
        %1507 = vmatprep.subr.bf16.mxu0 0
        %1508 = vmatpush1.bf16.msra.mxu0 0
        %1509 = vmatprep.subr.bf16.mxu0 0
        %1510 = vmatpush1.bf16.msra.mxu0 0
        %1511 = vmatprep.subr.bf16.mxu0 0
        %1512 = vmatpush1.bf16.msra.mxu0 0
        %1513 = vmatprep.subr.bf16.mxu0 0
        %1514 = vmatpush1.bf16.msra.mxu0 0
        %1515 = vmatprep.subr.bf16.mxu0 0
        %1516 = vmatpush1.bf16.msra.mxu0 0
        %1517 = vmatprep.subr.bf16.mxu0 0
        %1518 = vmatpush1.bf16.msra.mxu0 0
        %1519 = vmatprep.subr.bf16.mxu0 0
        %1520 = vmatpush1.bf16.msra.mxu0 0
        %1521 = vmatprep.subr.bf16.mxu0 0
        %1522 = vmatpush1.bf16.msra.mxu0 0
        %1523 = vmatprep.subr.bf16.mxu0 0
        %1524 = vmatpush1.bf16.msra.mxu0 0
        %1525 = vmatprep.subr.bf16.mxu0 0
        %1526 = vmatpush1.bf16.msra.mxu0 0
        %1527 = vmatprep.subr.bf16.mxu0 0
        %1528 = vmatpush1.bf16.msra.mxu0 0
        %1529 = vmatprep.subr.bf16.mxu0 0
        %1530 = vmatpush1.bf16.msra.mxu0 0
        %1531 = vmatprep.subr.bf16.mxu0 0
        %1532 = vmatpush1.bf16.msra.mxu0 0
        %1533 = vmatprep.subr.bf16.mxu0 0
        %1534 = vmatpush1.bf16.msra.mxu0 0
        %1535 = vmatprep.mubr.bf16.mxu0 0
        %1536 = vmatmul.mubr.bf16.gmra.mrb[0].mxu0 %v1492
        %v1537 = vpop.f32.mrb[0].mxu0
        %v1538 = vadd.f32 %v1434, %v1537
        %v1539 = vpop.f32.mrb[0].mxu0
        %v1540 = vadd.f32 %v1436, %v1539
        %v1541 = vpop.f32.mrb[0].mxu0
        %v1542 = vpop.f32.mrb[0].mxu0
        %1543 = vdwg.mxu0
        %1544 = vmatprep.subr.bf16.mxu0 0
        %1545 = vmatpush1.bf16.msra.mxu0 %v1501
        %1546 = vmatprep.subr.bf16.mxu0 0
        %1547 = vmatpush1.bf16.msra.mxu0 0
        %1548 = vmatprep.subr.bf16.mxu0 0
        %1549 = vmatpush1.bf16.msra.mxu0 0
        %1550 = vmatprep.subr.bf16.mxu0 0
        %1551 = vmatpush1.bf16.msra.mxu0 0
        %1552 = vmatprep.subr.bf16.mxu0 0
        %1553 = vmatpush1.bf16.msra.mxu0 0
        %1554 = vmatprep.subr.bf16.mxu0 0
        %1555 = vmatpush1.bf16.msra.mxu0 0
        %1556 = vmatprep.subr.bf16.mxu0 0
        %1557 = vmatpush1.bf16.msra.mxu0 0
        %1558 = vmatprep.subr.bf16.mxu0 0
        %1559 = vmatpush1.bf16.msra.mxu0 0
        %1560 = vmatprep.subr.bf16.mxu0 0
        %1561 = vmatpush1.bf16.msra.mxu0 0
        %1562 = vmatprep.subr.bf16.mxu0 0
        %1563 = vmatpush1.bf16.msra.mxu0 0
        %1564 = vmatprep.subr.bf16.mxu0 0
        %1565 = vmatpush1.bf16.msra.mxu0 0
        %1566 = vmatprep.subr.bf16.mxu0 0
        %1567 = vmatpush1.bf16.msra.mxu0 0
        %1568 = vmatprep.subr.bf16.mxu0 0
        %1569 = vmatpush1.bf16.msra.mxu0 0
        %1570 = vmatprep.subr.bf16.mxu0 0
        %1571 = vmatpush1.bf16.msra.mxu0 0
        %1572 = vmatprep.subr.bf16.mxu0 0
        %1573 = vmatpush1.bf16.msra.mxu0 0
        %1574 = vmatprep.subr.bf16.mxu0 0
        %1575 = vmatpush1.bf16.msra.mxu0 0
        %1576 = vmatprep.mubr.bf16.mxu0 0
        %1577 = vmatmul.mubr.bf16.gmra.mrb[0].mxu0 %v1492
        %v1578 = vpop.f32.mrb[0].mxu0
        %v1579 = vadd.f32 %v1475, %v1578
        %v1580 = vpop.f32.mrb[0].mxu0
        %v1581 = vpop.f32.mrb[0].mxu0
        %v1582 = vpop.f32.mrb[0].mxu0
        %1583 = vdwg.mxu0
        %s1584 = scalar_lea.vmem [#allocation9], 44
        %v1585 = vld [vmem:[%s1584] sm:$0xf]
        %1586 = vrot.lane.b32.xlu0 %v1372, 17
        %v1587 = vpop.permute.xlu0 %1586
        %1588 = vrot.lane.b32.xlu0 %v1373, 17
        %v1589 = vpop.permute.xlu0 %1588
        %1590 = vrot.lane.b32.xlu0 %v1374, 17
        %v1591 = vpop.permute.xlu0 %1590
        %1592 = vrot.lane.b32.xlu0 %v1375, 17
        %v1593 = vpop.permute.xlu0 %1592
        %v1594 = vsel %vm538, %v1587, %v1589
        %v1595 = vsel %vm538, %v1589, %v1591
        %v1596 = vsel %vm538, %v1591, %v1593
        %v1598 = vsel %vm328, %v1585, 0
        %v1601 = vsel %vm332, %v1594, 0
        %v1604 = vsel %vm332, %v1595, 0
        %v1607 = vsel %vm332, %v1596, 0
        %1609 = vmatprep.subr.bf16.mxu0 %v1604
        %1610 = vmatpush1.bf16.msra.mxu0 %v1601
        %1611 = vmatprep.subr.bf16.mxu0 0
        %1612 = vmatpush1.bf16.msra.mxu0 0
        %1613 = vmatprep.subr.bf16.mxu0 0
        %1614 = vmatpush1.bf16.msra.mxu0 0
        %1615 = vmatprep.subr.bf16.mxu0 0
        %1616 = vmatpush1.bf16.msra.mxu0 0
        %1617 = vmatprep.subr.bf16.mxu0 0
        %1618 = vmatpush1.bf16.msra.mxu0 0
        %1619 = vmatprep.subr.bf16.mxu0 0
        %1620 = vmatpush1.bf16.msra.mxu0 0
        %1621 = vmatprep.subr.bf16.mxu0 0
        %1622 = vmatpush1.bf16.msra.mxu0 0
        %1623 = vmatprep.subr.bf16.mxu0 0
        %1624 = vmatpush1.bf16.msra.mxu0 0
        %1625 = vmatprep.subr.bf16.mxu0 0
        %1626 = vmatpush1.bf16.msra.mxu0 0
        %1627 = vmatprep.subr.bf16.mxu0 0
        %1628 = vmatpush1.bf16.msra.mxu0 0
        %1629 = vmatprep.subr.bf16.mxu0 0
        %1630 = vmatpush1.bf16.msra.mxu0 0
        %1631 = vmatprep.subr.bf16.mxu0 0
        %1632 = vmatpush1.bf16.msra.mxu0 0
        %1633 = vmatprep.subr.bf16.mxu0 0
        %1634 = vmatpush1.bf16.msra.mxu0 0
        %1635 = vmatprep.subr.bf16.mxu0 0
        %1636 = vmatpush1.bf16.msra.mxu0 0
        %1637 = vmatprep.subr.bf16.mxu0 0
        %1638 = vmatpush1.bf16.msra.mxu0 0
        %1639 = vmatprep.subr.bf16.mxu0 0
        %1640 = vmatpush1.bf16.msra.mxu0 0
        %1641 = vmatprep.mubr.bf16.mxu0 0
        %1642 = vmatmul.mubr.bf16.gmra.mrb[0].mxu0 %v1598
        %v1643 = vpop.f32.mrb[0].mxu0
        %v1644 = vadd.f32 0.0, %v1643
        %v1645 = vpop.f32.mrb[0].mxu0
        %v1646 = vadd.f32 0.0, %v1645
        %v1647 = vpop.f32.mrb[0].mxu0
        %v1648 = vpop.f32.mrb[0].mxu0
        %1649 = vdwg.mxu0
        %1650 = vmatprep.subr.bf16.mxu0 0
        %1651 = vmatpush1.bf16.msra.mxu0 %v1607
        %1652 = vmatprep.subr.bf16.mxu0 0
        %1653 = vmatpush1.bf16.msra.mxu0 0
        %1654 = vmatprep.subr.bf16.mxu0 0
        %1655 = vmatpush1.bf16.msra.mxu0 0
        %1656 = vmatprep.subr.bf16.mxu0 0
        %1657 = vmatpush1.bf16.msra.mxu0 0
        %1658 = vmatprep.subr.bf16.mxu0 0
        %1659 = vmatpush1.bf16.msra.mxu0 0
        %1660 = vmatprep.subr.bf16.mxu0 0
        %1661 = vmatpush1.bf16.msra.mxu0 0
        %1662 = vmatprep.subr.bf16.mxu0 0
        %1663 = vmatpush1.bf16.msra.mxu0 0
        %1664 = vmatprep.subr.bf16.mxu0 0
        %1665 = vmatpush1.bf16.msra.mxu0 0
        %1666 = vmatprep.subr.bf16.mxu0 0
        %1667 = vmatpush1.bf16.msra.mxu0 0
        %1668 = vmatprep.subr.bf16.mxu0 0
        %1669 = vmatpush1.bf16.msra.mxu0 0
        %1670 = vmatprep.subr.bf16.mxu0 0
        %1671 = vmatpush1.bf16.msra.mxu0 0
        %1672 = vmatprep.subr.bf16.mxu0 0
        %1673 = vmatpush1.bf16.msra.mxu0 0
        %1674 = vmatprep.subr.bf16.mxu0 0
        %1675 = vmatpush1.bf16.msra.mxu0 0
        %1676 = vmatprep.subr.bf16.mxu0 0
        %1677 = vmatpush1.bf16.msra.mxu0 0
        %1678 = vmatprep.subr.bf16.mxu0 0
        %1679 = vmatpush1.bf16.msra.mxu0 0
        %1680 = vmatprep.subr.bf16.mxu0 0
        %1681 = vmatpush1.bf16.msra.mxu0 0
        %1682 = vmatprep.mubr.bf16.mxu0 0
        %1683 = vmatmul.mubr.bf16.gmra.mrb[0].mxu0 %v1598
        %v1684 = vpop.f32.mrb[0].mxu0
        %v1685 = vadd.f32 0.0, %v1684
        %v1686 = vpop.f32.mrb[0].mxu0
        %v1687 = vpop.f32.mrb[0].mxu0
        %v1688 = vpop.f32.mrb[0].mxu0
        %1689 = vdwg.mxu0
        %v1690 = vadd.f32 %v1538, %v1644
        %v1691 = vadd.f32 %v1540, %v1646
        %v1692 = vadd.f32 %v1579, %v1685
        %s1693 = scalar_lea.vmem [#allocation9], 48
        %v1694 = vld [vmem:[%s1693] sm:$0xf]
        %1695 = vrot.lane.b32.xlu0 %v1372, 1
        %v1696 = vpop.permute.xlu0 %1695
        %1697 = vrot.lane.b32.xlu0 %v1373, 1
        %v1698 = vpop.permute.xlu0 %1697
        %1699 = vrot.lane.b32.xlu0 %v1374, 1
        %v1700 = vpop.permute.xlu0 %1699
        %1701 = vrot.lane.b32.xlu0 %v1375, 1
        %v1702 = vpop.permute.xlu0 %1701
        %v1703 = vsel %vm648, %v1696, %v1698
        %v1704 = vsel %vm648, %v1698, %v1700
        %v1705 = vsel %vm648, %v1700, %v1702
        %v1707 = vsel %vm328, %v1694, 0
        %v1710 = vsel %vm332, %v1703, 0
        %v1713 = vsel %vm332, %v1704, 0
        %v1716 = vsel %vm332, %v1705, 0
        %1718 = vmatprep.subr.bf16.mxu0 %v1713
        %1719 = vmatpush1.bf16.msra.mxu0 %v1710
        %1720 = vmatprep.subr.bf16.mxu0 0
        %1721 = vmatpush1.bf16.msra.mxu0 0
        %1722 = vmatprep.subr.bf16.mxu0 0
        %1723 = vmatpush1.bf16.msra.mxu0 0
        %1724 = vmatprep.subr.bf16.mxu0 0
        %1725 = vmatpush1.bf16.msra.mxu0 0
        %1726 = vmatprep.subr.bf16.mxu0 0
        %1727 = vmatpush1.bf16.msra.mxu0 0
        %1728 = vmatprep.subr.bf16.mxu0 0
        %1729 = vmatpush1.bf16.msra.mxu0 0
        %1730 = vmatprep.subr.bf16.mxu0 0
        %1731 = vmatpush1.bf16.msra.mxu0 0
        %1732 = vmatprep.subr.bf16.mxu0 0
        %1733 = vmatpush1.bf16.msra.mxu0 0
        %1734 = vmatprep.subr.bf16.mxu0 0
        %1735 = vmatpush1.bf16.msra.mxu0 0
        %1736 = vmatprep.subr.bf16.mxu0 0
        %1737 = vmatpush1.bf16.msra.mxu0 0
        %1738 = vmatprep.subr.bf16.mxu0 0
        %1739 = vmatpush1.bf16.msra.mxu0 0
        %1740 = vmatprep.subr.bf16.mxu0 0
        %1741 = vmatpush1.bf16.msra.mxu0 0
        %1742 = vmatprep.subr.bf16.mxu0 0
        %1743 = vmatpush1.bf16.msra.mxu0 0
        %1744 = vmatprep.subr.bf16.mxu0 0
        %1745 = vmatpush1.bf16.msra.mxu0 0
        %1746 = vmatprep.subr.bf16.mxu0 0
        %1747 = vmatpush1.bf16.msra.mxu0 0
        %1748 = vmatprep.subr.bf16.mxu0 0
        %1749 = vmatpush1.bf16.msra.mxu0 0
        %1750 = vmatprep.mubr.bf16.mxu0 0
        %1751 = vmatmul.mubr.bf16.gmra.mrb[0].mxu0 %v1707
        %v1752 = vpop.f32.mrb[0].mxu0
        %v1753 = vadd.f32 0.0, %v1752
        %v1754 = vpop.f32.mrb[0].mxu0
        %v1755 = vadd.f32 0.0, %v1754
        %v1756 = vpop.f32.mrb[0].mxu0
        %v1757 = vpop.f32.mrb[0].mxu0
        %1758 = vdwg.mxu0
        %1759 = vmatprep.subr.bf16.mxu0 0
        %1760 = vmatpush1.bf16.msra.mxu0 %v1716
        %1761 = vmatprep.subr.bf16.mxu0 0
        %1762 = vmatpush1.bf16.msra.mxu0 0
        %1763 = vmatprep.subr.bf16.mxu0 0
        %1764 = vmatpush1.bf16.msra.mxu0 0
        %1765 = vmatprep.subr.bf16.mxu0 0
        %1766 = vmatpush1.bf16.msra.mxu0 0
        %1767 = vmatprep.subr.bf16.mxu0 0
        %1768 = vmatpush1.bf16.msra.mxu0 0
        %1769 = vmatprep.subr.bf16.mxu0 0
        %1770 = vmatpush1.bf16.msra.mxu0 0
        %1771 = vmatprep.subr.bf16.mxu0 0
        %1772 = vmatpush1.bf16.msra.mxu0 0
        %1773 = vmatprep.subr.bf16.mxu0 0
        %1774 = vmatpush1.bf16.msra.mxu0 0
        %1775 = vmatprep.subr.bf16.mxu0 0
        %1776 = vmatpush1.bf16.msra.mxu0 0
        %1777 = vmatprep.subr.bf16.mxu0 0
        %1778 = vmatpush1.bf16.msra.mxu0 0
        %1779 = vmatprep.subr.bf16.mxu0 0
        %1780 = vmatpush1.bf16.msra.mxu0 0
        %1781 = vmatprep.subr.bf16.mxu0 0
        %1782 = vmatpush1.bf16.msra.mxu0 0
        %1783 = vmatprep.subr.bf16.mxu0 0
        %1784 = vmatpush1.bf16.msra.mxu0 0
        %1785 = vmatprep.subr.bf16.mxu0 0
        %1786 = vmatpush1.bf16.msra.mxu0 0
        %1787 = vmatprep.subr.bf16.mxu0 0
        %1788 = vmatpush1.bf16.msra.mxu0 0
        %1789 = vmatprep.subr.bf16.mxu0 0
        %1790 = vmatpush1.bf16.msra.mxu0 0
        %1791 = vmatprep.mubr.bf16.mxu0 0
        %1792 = vmatmul.mubr.bf16.gmra.mrb[0].mxu0 %v1707
        %v1793 = vpop.f32.mrb[0].mxu0
        %v1794 = vadd.f32 0.0, %v1793
        %v1795 = vpop.f32.mrb[0].mxu0
        %v1796 = vpop.f32.mrb[0].mxu0
        %v1797 = vpop.f32.mrb[0].mxu0
        %1798 = vdwg.mxu0
        %v1799 = vadd.f32 %v1690, %v1753
        %v1800 = vadd.f32 %v1691, %v1755
        %v1801 = vadd.f32 %v1692, %v1794
        %v1802 = vld [vmem:[#allocation2 + $0x4] sm:$0xff]
        %v1803 = vld [vmem:[#allocation2 + $0xc] sm:$0xf]
        %s1804 = scalar_lea.vmem [#allocation9], 52
        %v1805 = vld [vmem:[%s1804] sm:$0xf]
        %v1808 = vunpack.c.l.b16 %v1802
        %v1809 = vunpack.c.h.b16 %v1802
        %v1810 = vunpack.c.l.b16 %v1803
        %v1811 = vpack.c.b16 %v1808, %v1808
        %v1812 = vpack.c.b16 %v1809, %v1809
        %v1813 = vpack.c.b16 %v1810, %v1810
        %v1815 = vsel %vm328, %v1805, 0
        %v1818 = vsel %vm332, %v1811, 0
        %v1821 = vsel %vm332, %v1812, 0
        %v1824 = vsel %vm332, %v1813, 0
        %1826 = vmatprep.subr.bf16.mxu0 %v1821
        %1827 = vmatpush1.bf16.msra.mxu0 %v1818
        %1828 = vmatprep.subr.bf16.mxu0 0
        %1829 = vmatpush1.bf16.msra.mxu0 0
        %1830 = vmatprep.subr.bf16.mxu0 0
        %1831 = vmatpush1.bf16.msra.mxu0 0
        %1832 = vmatprep.subr.bf16.mxu0 0
        %1833 = vmatpush1.bf16.msra.mxu0 0
        %1834 = vmatprep.subr.bf16.mxu0 0
        %1835 = vmatpush1.bf16.msra.mxu0 0
        %1836 = vmatprep.subr.bf16.mxu0 0
        %1837 = vmatpush1.bf16.msra.mxu0 0
        %1838 = vmatprep.subr.bf16.mxu0 0
        %1839 = vmatpush1.bf16.msra.mxu0 0
        %1840 = vmatprep.subr.bf16.mxu0 0
        %1841 = vmatpush1.bf16.msra.mxu0 0
        %1842 = vmatprep.subr.bf16.mxu0 0
        %1843 = vmatpush1.bf16.msra.mxu0 0
        %1844 = vmatprep.subr.bf16.mxu0 0
        %1845 = vmatpush1.bf16.msra.mxu0 0
        %1846 = vmatprep.subr.bf16.mxu0 0
        %1847 = vmatpush1.bf16.msra.mxu0 0
        %1848 = vmatprep.subr.bf16.mxu0 0
        %1849 = vmatpush1.bf16.msra.mxu0 0
        %1850 = vmatprep.subr.bf16.mxu0 0
        %1851 = vmatpush1.bf16.msra.mxu0 0
        %1852 = vmatprep.subr.bf16.mxu0 0
        %1853 = vmatpush1.bf16.msra.mxu0 0
        %1854 = vmatprep.subr.bf16.mxu0 0
        %1855 = vmatpush1.bf16.msra.mxu0 0
        %1856 = vmatprep.subr.bf16.mxu0 0
        %1857 = vmatpush1.bf16.msra.mxu0 0
        %1858 = vmatprep.mubr.bf16.mxu0 0
        %1859 = vmatmul.mubr.bf16.gmra.mrb[0].mxu0 %v1815
        %v1860 = vpop.f32.mrb[0].mxu0
        %v1861 = vadd.f32 0.0, %v1860
        %v1862 = vpop.f32.mrb[0].mxu0
        %v1863 = vadd.f32 0.0, %v1862
        %v1864 = vpop.f32.mrb[0].mxu0
        %v1865 = vpop.f32.mrb[0].mxu0
        %1866 = vdwg.mxu0
        %1867 = vmatprep.subr.bf16.mxu0 0
        %1868 = vmatpush1.bf16.msra.mxu0 %v1824
        %1869 = vmatprep.subr.bf16.mxu0 0
        %1870 = vmatpush1.bf16.msra.mxu0 0
        %1871 = vmatprep.subr.bf16.mxu0 0
        %1872 = vmatpush1.bf16.msra.mxu0 0
        %1873 = vmatprep.subr.bf16.mxu0 0
        %1874 = vmatpush1.bf16.msra.mxu0 0
        %1875 = vmatprep.subr.bf16.mxu0 0
        %1876 = vmatpush1.bf16.msra.mxu0 0
        %1877 = vmatprep.subr.bf16.mxu0 0
        %1878 = vmatpush1.bf16.msra.mxu0 0
        %1879 = vmatprep.subr.bf16.mxu0 0
        %1880 = vmatpush1.bf16.msra.mxu0 0
        %1881 = vmatprep.subr.bf16.mxu0 0
        %1882 = vmatpush1.bf16.msra.mxu0 0
        %1883 = vmatprep.subr.bf16.mxu0 0
        %1884 = vmatpush1.bf16.msra.mxu0 0
        %1885 = vmatprep.subr.bf16.mxu0 0
        %1886 = vmatpush1.bf16.msra.mxu0 0
        %1887 = vmatprep.subr.bf16.mxu0 0
        %1888 = vmatpush1.bf16.msra.mxu0 0
        %1889 = vmatprep.subr.bf16.mxu0 0
        %1890 = vmatpush1.bf16.msra.mxu0 0
        %1891 = vmatprep.subr.bf16.mxu0 0
        %1892 = vmatpush1.bf16.msra.mxu0 0
        %1893 = vmatprep.subr.bf16.mxu0 0
        %1894 = vmatpush1.bf16.msra.mxu0 0
        %1895 = vmatprep.subr.bf16.mxu0 0
        %1896 = vmatpush1.bf16.msra.mxu0 0
        %1897 = vmatprep.subr.bf16.mxu0 0
        %1898 = vmatpush1.bf16.msra.mxu0 0
        %1899 = vmatprep.mubr.bf16.mxu0 0
        %1900 = vmatmul.mubr.bf16.gmra.mrb[0].mxu0 %v1815
        %v1901 = vpop.f32.mrb[0].mxu0
        %v1902 = vadd.f32 0.0, %v1901
        %v1903 = vpop.f32.mrb[0].mxu0
        %v1904 = vpop.f32.mrb[0].mxu0
        %v1905 = vpop.f32.mrb[0].mxu0
        %1906 = vdwg.mxu0
        %v1907 = vadd.f32 %v1799, %v1861
        %v1908 = vadd.f32 %v1800, %v1863
        %v1909 = vadd.f32 %v1801, %v1902
        %v1910 = vld [vmem:[#allocation2 + $0x4] sm:$0xff]
        %v1911 = vld [vmem:[#allocation2 + $0xc] sm:$0xff]
        %s1912 = scalar_lea.vmem [#allocation9], 56
        %v1913 = vld [vmem:[%s1912] sm:$0xf]
        %v1916 = vunpack.c.l.b16 %v1910
        %v1917 = vunpack.c.h.b16 %v1910
        %v1918 = vunpack.c.l.b16 %v1911
        %v1919 = vunpack.c.h.b16 %v1911
        %v1920 = vpack.c.b16 %v1916, %v1916
        %v1921 = vpack.c.b16 %v1917, %v1917
        %v1922 = vpack.c.b16 %v1918, %v1918
        %v1923 = vpack.c.b16 %v1919, %v1919
        %1924 = vrot.lane.b32.xlu0 %v1920, 127
        %v1925 = vpop.permute.xlu0 %1924
        %1926 = vrot.lane.b32.xlu0 %v1921, 127
        %v1927 = vpop.permute.xlu0 %1926
        %1928 = vrot.lane.b32.xlu0 %v1922, 127
        %v1929 = vpop.permute.xlu0 %1928
        %1930 = vrot.lane.b32.xlu0 %v1923, 127
        %v1931 = vpop.permute.xlu0 %1930
        %v1932 = vsel %vm868, %v1925, %v1927
        %v1933 = vsel %vm868, %v1927, %v1929
        %v1934 = vsel %vm868, %v1929, %v1931
        %v1936 = vsel %vm328, %v1913, 0
        %v1939 = vsel %vm332, %v1932, 0
        %v1942 = vsel %vm332, %v1933, 0
        %v1945 = vsel %vm332, %v1934, 0
        %1947 = vmatprep.subr.bf16.mxu0 %v1942
        %1948 = vmatpush1.bf16.msra.mxu0 %v1939
        %1949 = vmatprep.subr.bf16.mxu0 0
        %1950 = vmatpush1.bf16.msra.mxu0 0
        %1951 = vmatprep.subr.bf16.mxu0 0
        %1952 = vmatpush1.bf16.msra.mxu0 0
        %1953 = vmatprep.subr.bf16.mxu0 0
        %1954 = vmatpush1.bf16.msra.mxu0 0
        %1955 = vmatprep.subr.bf16.mxu0 0
        %1956 = vmatpush1.bf16.msra.mxu0 0
        %1957 = vmatprep.subr.bf16.mxu0 0
        %1958 = vmatpush1.bf16.msra.mxu0 0
        %1959 = vmatprep.subr.bf16.mxu0 0
        %1960 = vmatpush1.bf16.msra.mxu0 0
        %1961 = vmatprep.subr.bf16.mxu0 0
        %1962 = vmatpush1.bf16.msra.mxu0 0
        %1963 = vmatprep.subr.bf16.mxu0 0
        %1964 = vmatpush1.bf16.msra.mxu0 0
        %1965 = vmatprep.subr.bf16.mxu0 0
        %1966 = vmatpush1.bf16.msra.mxu0 0
        %1967 = vmatprep.subr.bf16.mxu0 0
        %1968 = vmatpush1.bf16.msra.mxu0 0
        %1969 = vmatprep.subr.bf16.mxu0 0
        %1970 = vmatpush1.bf16.msra.mxu0 0
        %1971 = vmatprep.subr.bf16.mxu0 0
        %1972 = vmatpush1.bf16.msra.mxu0 0
        %1973 = vmatprep.subr.bf16.mxu0 0
        %1974 = vmatpush1.bf16.msra.mxu0 0
        %1975 = vmatprep.subr.bf16.mxu0 0
        %1976 = vmatpush1.bf16.msra.mxu0 0
        %1977 = vmatprep.subr.bf16.mxu0 0
        %1978 = vmatpush1.bf16.msra.mxu0 0
        %1979 = vmatprep.mubr.bf16.mxu0 0
        %1980 = vmatmul.mubr.bf16.gmra.mrb[0].mxu0 %v1936
        %v1981 = vpop.f32.mrb[0].mxu0
        %v1982 = vadd.f32 0.0, %v1981
        %v1983 = vpop.f32.mrb[0].mxu0
        %v1984 = vadd.f32 0.0, %v1983
        %v1985 = vpop.f32.mrb[0].mxu0
        %v1986 = vpop.f32.mrb[0].mxu0
        %1987 = vdwg.mxu0
        %1988 = vmatprep.subr.bf16.mxu0 0
        %1989 = vmatpush1.bf16.msra.mxu0 %v1945
        %1990 = vmatprep.subr.bf16.mxu0 0
        %1991 = vmatpush1.bf16.msra.mxu0 0
        %1992 = vmatprep.subr.bf16.mxu0 0
        %1993 = vmatpush1.bf16.msra.mxu0 0
        %1994 = vmatprep.subr.bf16.mxu0 0
        %1995 = vmatpush1.bf16.msra.mxu0 0
        %1996 = vmatprep.subr.bf16.mxu0 0
        %1997 = vmatpush1.bf16.msra.mxu0 0
        %1998 = vmatprep.subr.bf16.mxu0 0
        %1999 = vmatpush1.bf16.msra.mxu0 0
        %2000 = vmatprep.subr.bf16.mxu0 0
        %2001 = vmatpush1.bf16.msra.mxu0 0
        %2002 = vmatprep.subr.bf16.mxu0 0
        %2003 = vmatpush1.bf16.msra.mxu0 0
        %2004 = vmatprep.subr.bf16.mxu0 0
        %2005 = vmatpush1.bf16.msra.mxu0 0
        %2006 = vmatprep.subr.bf16.mxu0 0
        %2007 = vmatpush1.bf16.msra.mxu0 0
        %2008 = vmatprep.subr.bf16.mxu0 0
        %2009 = vmatpush1.bf16.msra.mxu0 0
        %2010 = vmatprep.subr.bf16.mxu0 0
        %2011 = vmatpush1.bf16.msra.mxu0 0
        %2012 = vmatprep.subr.bf16.mxu0 0
        %2013 = vmatpush1.bf16.msra.mxu0 0
        %2014 = vmatprep.subr.bf16.mxu0 0
        %2015 = vmatpush1.bf16.msra.mxu0 0
        %2016 = vmatprep.subr.bf16.mxu0 0
        %2017 = vmatpush1.bf16.msra.mxu0 0
        %2018 = vmatprep.subr.bf16.mxu0 0
        %2019 = vmatpush1.bf16.msra.mxu0 0
        %2020 = vmatprep.mubr.bf16.mxu0 0
        %2021 = vmatmul.mubr.bf16.gmra.mrb[0].mxu0 %v1936
        %v2022 = vpop.f32.mrb[0].mxu0
        %v2023 = vadd.f32 0.0, %v2022
        %v2024 = vpop.f32.mrb[0].mxu0
        %v2025 = vpop.f32.mrb[0].mxu0
        %v2026 = vpop.f32.mrb[0].mxu0
        %2027 = vdwg.mxu0
        %v2028 = vadd.f32 %v1907, %v1982
        %v2029 = vadd.f32 %v1908, %v1984
        %v2030 = vadd.f32 %v1909, %v2023
        %s2031 = scalar_lea.vmem [#allocation9], 60
        %v2032 = vld [vmem:[%s2031] sm:$0xf]
        %2033 = vrot.lane.b32.xlu0 %v1920, 111
        %v2034 = vpop.permute.xlu0 %2033
        %2035 = vrot.lane.b32.xlu0 %v1921, 111
        %v2036 = vpop.permute.xlu0 %2035
        %2037 = vrot.lane.b32.xlu0 %v1922, 111
        %v2038 = vpop.permute.xlu0 %2037
        %2039 = vrot.lane.b32.xlu0 %v1923, 111
        %v2040 = vpop.permute.xlu0 %2039
        %v2041 = vsel %vm978, %v2034, %v2036
        %v2042 = vsel %vm978, %v2036, %v2038
        %v2043 = vsel %vm978, %v2038, %v2040
        %v2045 = vsel %vm328, %v2032, 0
        %v2048 = vsel %vm332, %v2041, 0
        %v2051 = vsel %vm332, %v2042, 0
        %v2054 = vsel %vm332, %v2043, 0
        %2056 = vmatprep.subr.bf16.mxu0 %v2051
        %2057 = vmatpush1.bf16.msra.mxu0 %v2048
        %2058 = vmatprep.subr.bf16.mxu0 0
        %2059 = vmatpush1.bf16.msra.mxu0 0
        %2060 = vmatprep.subr.bf16.mxu0 0
        %2061 = vmatpush1.bf16.msra.mxu0 0
        %2062 = vmatprep.subr.bf16.mxu0 0
        %2063 = vmatpush1.bf16.msra.mxu0 0
        %2064 = vmatprep.subr.bf16.mxu0 0
        %2065 = vmatpush1.bf16.msra.mxu0 0
        %2066 = vmatprep.subr.bf16.mxu0 0
        %2067 = vmatpush1.bf16.msra.mxu0 0
        %2068 = vmatprep.subr.bf16.mxu0 0
        %2069 = vmatpush1.bf16.msra.mxu0 0
        %2070 = vmatprep.subr.bf16.mxu0 0
        %2071 = vmatpush1.bf16.msra.mxu0 0
        %2072 = vmatprep.subr.bf16.mxu0 0
        %2073 = vmatpush1.bf16.msra.mxu0 0
        %2074 = vmatprep.subr.bf16.mxu0 0
        %2075 = vmatpush1.bf16.msra.mxu0 0
        %2076 = vmatprep.subr.bf16.mxu0 0
        %2077 = vmatpush1.bf16.msra.mxu0 0
        %2078 = vmatprep.subr.bf16.mxu0 0
        %2079 = vmatpush1.bf16.msra.mxu0 0
        %2080 = vmatprep.subr.bf16.mxu0 0
        %2081 = vmatpush1.bf16.msra.mxu0 0
        %2082 = vmatprep.subr.bf16.mxu0 0
        %2083 = vmatpush1.bf16.msra.mxu0 0
        %2084 = vmatprep.subr.bf16.mxu0 0
        %2085 = vmatpush1.bf16.msra.mxu0 0
        %2086 = vmatprep.subr.bf16.mxu0 0
        %2087 = vmatpush1.bf16.msra.mxu0 0
        %2088 = vmatprep.mubr.bf16.mxu0 0
        %2089 = vmatmul.mubr.bf16.gmra.mrb[0].mxu0 %v2045
        %v2090 = vpop.f32.mrb[0].mxu0
        %v2091 = vadd.f32 0.0, %v2090
        %v2092 = vpop.f32.mrb[0].mxu0
        %v2093 = vadd.f32 0.0, %v2092
        %v2094 = vpop.f32.mrb[0].mxu0
        %v2095 = vpop.f32.mrb[0].mxu0
        %2096 = vdwg.mxu0
        %2097 = vmatprep.subr.bf16.mxu0 0
        %2098 = vmatpush1.bf16.msra.mxu0 %v2054
        %2099 = vmatprep.subr.bf16.mxu0 0
        %2100 = vmatpush1.bf16.msra.mxu0 0
        %2101 = vmatprep.subr.bf16.mxu0 0
        %2102 = vmatpush1.bf16.msra.mxu0 0
        %2103 = vmatprep.subr.bf16.mxu0 0
        %2104 = vmatpush1.bf16.msra.mxu0 0
        %2105 = vmatprep.subr.bf16.mxu0 0
        %2106 = vmatpush1.bf16.msra.mxu0 0
        %2107 = vmatprep.subr.bf16.mxu0 0
        %2108 = vmatpush1.bf16.msra.mxu0 0
        %2109 = vmatprep.subr.bf16.mxu0 0
        %2110 = vmatpush1.bf16.msra.mxu0 0
        %2111 = vmatprep.subr.bf16.mxu0 0
        %2112 = vmatpush1.bf16.msra.mxu0 0
        %2113 = vmatprep.subr.bf16.mxu0 0
        %2114 = vmatpush1.bf16.msra.mxu0 0
        %2115 = vmatprep.subr.bf16.mxu0 0
        %2116 = vmatpush1.bf16.msra.mxu0 0
        %2117 = vmatprep.subr.bf16.mxu0 0
        %2118 = vmatpush1.bf16.msra.mxu0 0
        %2119 = vmatprep.subr.bf16.mxu0 0
        %2120 = vmatpush1.bf16.msra.mxu0 0
        %2121 = vmatprep.subr.bf16.mxu0 0
        %2122 = vmatpush1.bf16.msra.mxu0 0
        %2123 = vmatprep.subr.bf16.mxu0 0
        %2124 = vmatpush1.bf16.msra.mxu0 0
        %2125 = vmatprep.subr.bf16.mxu0 0
        %2126 = vmatpush1.bf16.msra.mxu0 0
        %2127 = vmatprep.subr.bf16.mxu0 0
        %2128 = vmatpush1.bf16.msra.mxu0 0
        %2129 = vmatprep.mubr.bf16.mxu0 0
        %2130 = vmatmul.mubr.bf16.gmra.mrb[0].mxu0 %v2045
        %v2131 = vpop.f32.mrb[0].mxu0
        %v2132 = vadd.f32 0.0, %v2131
        %v2133 = vpop.f32.mrb[0].mxu0
        %v2134 = vpop.f32.mrb[0].mxu0
        %v2135 = vpop.f32.mrb[0].mxu0
        %2136 = vdwg.mxu0
        %v2137 = vadd.f32 %v2028, %v2091
        %v2138 = vadd.f32 %v2029, %v2093
        %v2139 = vadd.f32 %v2030, %v2132
        %s2140 = scalar_lea.vmem [#allocation9], 64
        %v2141 = vld [vmem:[%s2140] sm:$0xf]
        %2142 = vrot.lane.b32.xlu0 %v1920, 110
        %v2143 = vpop.permute.xlu0 %2142
        %2144 = vrot.lane.b32.xlu0 %v1921, 110
        %v2145 = vpop.permute.xlu0 %2144
        %2146 = vrot.lane.b32.xlu0 %v1922, 110
        %v2147 = vpop.permute.xlu0 %2146
        %2148 = vrot.lane.b32.xlu0 %v1923, 110
        %v2149 = vpop.permute.xlu0 %2148
        %v2150 = vsel %vm1088, %v2143, %v2145
        %v2151 = vsel %vm1088, %v2145, %v2147
        %v2152 = vsel %vm1088, %v2147, %v2149
        %v2154 = vsel %vm328, %v2141, 0
        %v2157 = vsel %vm332, %v2150, 0
        %v2160 = vsel %vm332, %v2151, 0
        %v2163 = vsel %vm332, %v2152, 0
        %2165 = vmatprep.subr.bf16.mxu0 %v2160
        %2166 = vmatpush1.bf16.msra.mxu0 %v2157
        %2167 = vmatprep.subr.bf16.mxu0 0
        %2168 = vmatpush1.bf16.msra.mxu0 0
        %2169 = vmatprep.subr.bf16.mxu0 0
        %2170 = vmatpush1.bf16.msra.mxu0 0
        %2171 = vmatprep.subr.bf16.mxu0 0
        %2172 = vmatpush1.bf16.msra.mxu0 0
        %2173 = vmatprep.subr.bf16.mxu0 0
        %2174 = vmatpush1.bf16.msra.mxu0 0
        %2175 = vmatprep.subr.bf16.mxu0 0
        %2176 = vmatpush1.bf16.msra.mxu0 0
        %2177 = vmatprep.subr.bf16.mxu0 0
        %2178 = vmatpush1.bf16.msra.mxu0 0
        %2179 = vmatprep.subr.bf16.mxu0 0
        %2180 = vmatpush1.bf16.msra.mxu0 0
        %2181 = vmatprep.subr.bf16.mxu0 0
        %2182 = vmatpush1.bf16.msra.mxu0 0
        %2183 = vmatprep.subr.bf16.mxu0 0
        %2184 = vmatpush1.bf16.msra.mxu0 0
        %2185 = vmatprep.subr.bf16.mxu0 0
        %2186 = vmatpush1.bf16.msra.mxu0 0
        %2187 = vmatprep.subr.bf16.mxu0 0
        %2188 = vmatpush1.bf16.msra.mxu0 0
        %2189 = vmatprep.subr.bf16.mxu0 0
        %2190 = vmatpush1.bf16.msra.mxu0 0
        %2191 = vmatprep.subr.bf16.mxu0 0
        %2192 = vmatpush1.bf16.msra.mxu0 0
        %2193 = vmatprep.subr.bf16.mxu0 0
        %2194 = vmatpush1.bf16.msra.mxu0 0
        %2195 = vmatprep.subr.bf16.mxu0 0
        %2196 = vmatpush1.bf16.msra.mxu0 0
        %2197 = vmatprep.mubr.bf16.mxu0 0
        %2198 = vmatmul.mubr.bf16.gmra.mrb[0].mxu0 %v2154
        %v2199 = vpop.f32.mrb[0].mxu0
        %v2200 = vadd.f32 0.0, %v2199
        %v2201 = vpop.f32.mrb[0].mxu0
        %v2202 = vadd.f32 0.0, %v2201
        %v2203 = vpop.f32.mrb[0].mxu0
        %v2204 = vpop.f32.mrb[0].mxu0
        %2205 = vdwg.mxu0
        %2206 = vmatprep.subr.bf16.mxu0 0
        %2207 = vmatpush1.bf16.msra.mxu0 %v2163
        %2208 = vmatprep.subr.bf16.mxu0 0
        %2209 = vmatpush1.bf16.msra.mxu0 0
        %2210 = vmatprep.subr.bf16.mxu0 0
        %2211 = vmatpush1.bf16.msra.mxu0 0
        %2212 = vmatprep.subr.bf16.mxu0 0
        %2213 = vmatpush1.bf16.msra.mxu0 0
        %2214 = vmatprep.subr.bf16.mxu0 0
        %2215 = vmatpush1.bf16.msra.mxu0 0
        %2216 = vmatprep.subr.bf16.mxu0 0
        %2217 = vmatpush1.bf16.msra.mxu0 0
        %2218 = vmatprep.subr.bf16.mxu0 0
        %2219 = vmatpush1.bf16.msra.mxu0 0
        %2220 = vmatprep.subr.bf16.mxu0 0
        %2221 = vmatpush1.bf16.msra.mxu0 0
        %2222 = vmatprep.subr.bf16.mxu0 0
        %2223 = vmatpush1.bf16.msra.mxu0 0
        %2224 = vmatprep.subr.bf16.mxu0 0
        %2225 = vmatpush1.bf16.msra.mxu0 0
        %2226 = vmatprep.subr.bf16.mxu0 0
        %2227 = vmatpush1.bf16.msra.mxu0 0
        %2228 = vmatprep.subr.bf16.mxu0 0
        %2229 = vmatpush1.bf16.msra.mxu0 0
        %2230 = vmatprep.subr.bf16.mxu0 0
        %2231 = vmatpush1.bf16.msra.mxu0 0
        %2232 = vmatprep.subr.bf16.mxu0 0
        %2233 = vmatpush1.bf16.msra.mxu0 0
        %2234 = vmatprep.subr.bf16.mxu0 0
        %2235 = vmatpush1.bf16.msra.mxu0 0
        %2236 = vmatprep.subr.bf16.mxu0 0
        %2237 = vmatpush1.bf16.msra.mxu0 0
        %2238 = vmatprep.mubr.bf16.mxu0 0
        %2239 = vmatmul.mubr.bf16.gmra.mrb[0].mxu0 %v2154
        %v2240 = vpop.f32.mrb[0].mxu0
        %v2241 = vadd.f32 0.0, %v2240
        %v2242 = vpop.f32.mrb[0].mxu0
        %v2243 = vpop.f32.mrb[0].mxu0
        %v2244 = vpop.f32.mrb[0].mxu0
        %2245 = vdwg.mxu0
        %v2246 = vadd.f32 %v2137, %v2200
        %v2247 = vadd.f32 %v2138, %v2202
        %v2248 = vadd.f32 %v2139, %v2241
        %s2249 = scalar_lea.vmem [#allocation9], 68
        %v2250 = vld [vmem:[%s2249] sm:$0xf]
        %2251 = vrot.lane.b32.xlu0 %v1920, 109
        %v2252 = vpop.permute.xlu0 %2251
        %2253 = vrot.lane.b32.xlu0 %v1921, 109
        %v2254 = vpop.permute.xlu0 %2253
        %2255 = vrot.lane.b32.xlu0 %v1922, 109
        %v2256 = vpop.permute.xlu0 %2255
        %2257 = vrot.lane.b32.xlu0 %v1923, 109
        %v2258 = vpop.permute.xlu0 %2257
        %v2259 = vsel %vm1198, %v2252, %v2254
        %v2260 = vsel %vm1198, %v2254, %v2256
        %v2261 = vsel %vm1198, %v2256, %v2258
        %v2263 = vsel %vm328, %v2250, 0
        %v2266 = vsel %vm332, %v2259, 0
        %v2269 = vsel %vm332, %v2260, 0
        %v2272 = vsel %vm332, %v2261, 0
        %2274 = vmatprep.subr.bf16.mxu0 %v2269
        %2275 = vmatpush1.bf16.msra.mxu0 %v2266
        %2276 = vmatprep.subr.bf16.mxu0 0
        %2277 = vmatpush1.bf16.msra.mxu0 0
        %2278 = vmatprep.subr.bf16.mxu0 0
        %2279 = vmatpush1.bf16.msra.mxu0 0
        %2280 = vmatprep.subr.bf16.mxu0 0
        %2281 = vmatpush1.bf16.msra.mxu0 0
        %2282 = vmatprep.subr.bf16.mxu0 0
        %2283 = vmatpush1.bf16.msra.mxu0 0
        %2284 = vmatprep.subr.bf16.mxu0 0
        %2285 = vmatpush1.bf16.msra.mxu0 0
        %2286 = vmatprep.subr.bf16.mxu0 0
        %2287 = vmatpush1.bf16.msra.mxu0 0
        %2288 = vmatprep.subr.bf16.mxu0 0
        %2289 = vmatpush1.bf16.msra.mxu0 0
        %2290 = vmatprep.subr.bf16.mxu0 0
        %2291 = vmatpush1.bf16.msra.mxu0 0
        %2292 = vmatprep.subr.bf16.mxu0 0
        %2293 = vmatpush1.bf16.msra.mxu0 0
        %2294 = vmatprep.subr.bf16.mxu0 0
        %2295 = vmatpush1.bf16.msra.mxu0 0
        %2296 = vmatprep.subr.bf16.mxu0 0
        %2297 = vmatpush1.bf16.msra.mxu0 0
        %2298 = vmatprep.subr.bf16.mxu0 0
        %2299 = vmatpush1.bf16.msra.mxu0 0
        %2300 = vmatprep.subr.bf16.mxu0 0
        %2301 = vmatpush1.bf16.msra.mxu0 0
        %2302 = vmatprep.subr.bf16.mxu0 0
        %2303 = vmatpush1.bf16.msra.mxu0 0
        %2304 = vmatprep.subr.bf16.mxu0 0
        %2305 = vmatpush1.bf16.msra.mxu0 0
        %2306 = vmatprep.mubr.bf16.mxu0 0
        %2307 = vmatmul.mubr.bf16.gmra.mrb[0].mxu0 %v2263
        %v2308 = vpop.f32.mrb[0].mxu0
        %v2309 = vadd.f32 0.0, %v2308
        %v2310 = vpop.f32.mrb[0].mxu0
        %v2311 = vadd.f32 0.0, %v2310
        %v2312 = vpop.f32.mrb[0].mxu0
        %v2313 = vpop.f32.mrb[0].mxu0
        %2314 = vdwg.mxu0
        %2315 = vmatprep.subr.bf16.mxu0 0
        %2316 = vmatpush1.bf16.msra.mxu0 %v2272
        %2317 = vmatprep.subr.bf16.mxu0 0
        %2318 = vmatpush1.bf16.msra.mxu0 0
        %2319 = vmatprep.subr.bf16.mxu0 0
        %2320 = vmatpush1.bf16.msra.mxu0 0
        %2321 = vmatprep.subr.bf16.mxu0 0
        %2322 = vmatpush1.bf16.msra.mxu0 0
        %2323 = vmatprep.subr.bf16.mxu0 0
        %2324 = vmatpush1.bf16.msra.mxu0 0
        %2325 = vmatprep.subr.bf16.mxu0 0
        %2326 = vmatpush1.bf16.msra.mxu0 0
        %2327 = vmatprep.subr.bf16.mxu0 0
        %2328 = vmatpush1.bf16.msra.mxu0 0
        %2329 = vmatprep.subr.bf16.mxu0 0
        %2330 = vmatpush1.bf16.msra.mxu0 0
        %2331 = vmatprep.subr.bf16.mxu0 0
        %2332 = vmatpush1.bf16.msra.mxu0 0
        %2333 = vmatprep.subr.bf16.mxu0 0
        %2334 = vmatpush1.bf16.msra.mxu0 0
        %2335 = vmatprep.subr.bf16.mxu0 0
        %2336 = vmatpush1.bf16.msra.mxu0 0
        %2337 = vmatprep.subr.bf16.mxu0 0
        %2338 = vmatpush1.bf16.msra.mxu0 0
        %2339 = vmatprep.subr.bf16.mxu0 0
        %2340 = vmatpush1.bf16.msra.mxu0 0
        %2341 = vmatprep.subr.bf16.mxu0 0
        %2342 = vmatpush1.bf16.msra.mxu0 0
        %2343 = vmatprep.subr.bf16.mxu0 0
        %2344 = vmatpush1.bf16.msra.mxu0 0
        %2345 = vmatprep.subr.bf16.mxu0 0
        %2346 = vmatpush1.bf16.msra.mxu0 0
        %2347 = vmatprep.mubr.bf16.mxu0 0
        %2348 = vmatmul.mubr.bf16.gmra.mrb[0].mxu0 %v2263
        %v2349 = vpop.f32.mrb[0].mxu0
        %v2350 = vadd.f32 0.0, %v2349
        %v2351 = vpop.f32.mrb[0].mxu0
        %v2352 = vpop.f32.mrb[0].mxu0
        %v2353 = vpop.f32.mrb[0].mxu0
        %2354 = vdwg.mxu0
        %v2355 = vadd.f32 %v2246, %v2309
        %v2356 = vadd.f32 %v2247, %v2311
        %v2357 = vadd.f32 %v2248, %v2350
        %s2358 = scalar_lea.vmem [#allocation10], 16
        %v2359 = vld [vmem:[%s2358] sm:$0xff]
        %2361 = vset.pattern.permute.xlu0 0
        %2362 = vperm.xlu0 %2361, %v2359
        %v2363 = vpop.permute.xlu0 %2362
        %v2365 = vmul.f32 %v2355, %v2363
        %v2366 = vmul.f32 %v2356, %v2363
        %v2367 = vmul.f32 %v2357, %v2363
        %s2368 = scalar_lea.vmem [#allocation10], 24
        %v2369 = vld [vmem:[%s2368] sm:$0xff]
        %2371 = vset.pattern.permute.xlu0 0
        %2372 = vperm.xlu0 %2371, %v2369
        %v2373 = vpop.permute.xlu0 %2372
        %v2375 = vadd.f32 %v2365, %v2373
        %v2376 = vadd.f32 %v2366, %v2373
        %v2377 = vadd.f32 %v2367, %v2373
        %vm2378 = vcmp.ge.f32.partialorder %v2375, 0.0
        %vm2379 = vcmp.ge.f32.partialorder %v2376, 0.0
        %vm2380 = vcmp.ge.f32.partialorder %v2377, 0.0
        %v2381 = vmul.f32 %v2375, 0.01
        %v2382 = vmul.f32 %v2376, 0.01
        %v2383 = vmul.f32 %v2377, 0.01
        %v2384 = vsel %vm2378, %v2375, %v2381
        %v2385 = vsel %vm2379, %v2376, %v2382
        %v2386 = vsel %vm2380, %v2377, %v2383
        %v2387 = vmul.f32 %v2384, %v1330
        %v2388 = vmul.f32 %v2385, %v1334
        %v2389 = vmul.f32 %v2386, %v1338
        %v2390 = vpack.c.bf16 %v2387, %v2387
        %v2391 = vpack.c.bf16 %v2388, %v2388
        %v2392 = vpack.c.bf16 %v2389, %v2389
        %v2396 = vunpack.c.l.b16 %v2390
        %v2397 = vunpack.c.l.b16 %v2391
        %v2398 = vunpack.c.l.b16 %v2392
        %v2399 = vpack.c.b16 %v2397, %v2396
        %v2400 = vpack.c.b16 %v2398, %v2398
        %2403 = vst [vmem:[#allocation3 + $0x4] sm:$0xff] %v2399
        %2404 = vst [vmem:[#allocation3 + $0xc] sm:$0xf] %v2400
        %v2405 = vld [vmem:[#allocation3] sm:$0xff]
        %v2406 = vld [vmem:[#allocation3 + $0x8] sm:$0xff]
        %s2407 = scalar_lea.vmem [#allocation9], 72
        %v2408 = vld [vmem:[%s2407] sm:$0xf]
        %s2409 = scalar_lea.vmem [#allocation9], 76
        %v2410 = vld [vmem:[%s2409] sm:$0xf]
        %v2413 = vunpack.c.l.b16 %v2405
        %v2414 = vunpack.c.h.b16 %v2405
        %v2415 = vunpack.c.l.b16 %v2406
        %v2416 = vunpack.c.h.b16 %v2406
        %v2417 = vpack.c.b16 %v2413, %v2413
        %v2418 = vpack.c.b16 %v2414, %v2414
        %v2419 = vpack.c.b16 %v2415, %v2415
        %v2420 = vpack.c.b16 %v2416, %v2416
        %2421 = vrot.lane.b32.xlu0 %v2417, 18
        %v2422 = vpop.permute.xlu0 %2421
        %2423 = vrot.lane.b32.xlu0 %v2418, 18
        %v2424 = vpop.permute.xlu0 %2423
        %2425 = vrot.lane.b32.xlu0 %v2419, 18
        %v2426 = vpop.permute.xlu0 %2425
        %2427 = vrot.lane.b32.xlu0 %v2420, 18
        %v2428 = vpop.permute.xlu0 %2427
        %v2429 = vsel %vm324, %v2422, %v2424
        %v2430 = vsel %vm324, %v2424, %v2426
        %v2431 = vsel %vm324, %v2426, %v2428
        %v2433 = vsel %vm328, %v2410, 0
        %v2436 = vsel %vm332, %v2429, 0
        %v2439 = vsel %vm332, %v2430, 0
        %v2442 = vsel %vm332, %v2431, 0
        %2444 = vmatprep.subr.bf16.mxu0 %v2439
        %2445 = vmatpush1.bf16.msra.mxu0 %v2436
        %2446 = vmatprep.subr.bf16.mxu0 0
        %2447 = vmatpush1.bf16.msra.mxu0 0
        %2448 = vmatprep.subr.bf16.mxu0 0
        %2449 = vmatpush1.bf16.msra.mxu0 0
        %2450 = vmatprep.subr.bf16.mxu0 0
        %2451 = vmatpush1.bf16.msra.mxu0 0
        %2452 = vmatprep.subr.bf16.mxu0 0
        %2453 = vmatpush1.bf16.msra.mxu0 0
        %2454 = vmatprep.subr.bf16.mxu0 0
        %2455 = vmatpush1.bf16.msra.mxu0 0
        %2456 = vmatprep.subr.bf16.mxu0 0
        %2457 = vmatpush1.bf16.msra.mxu0 0
        %2458 = vmatprep.subr.bf16.mxu0 0
        %2459 = vmatpush1.bf16.msra.mxu0 0
        %2460 = vmatprep.subr.bf16.mxu0 0
        %2461 = vmatpush1.bf16.msra.mxu0 0
        %2462 = vmatprep.subr.bf16.mxu0 0
        %2463 = vmatpush1.bf16.msra.mxu0 0
        %2464 = vmatprep.subr.bf16.mxu0 0
        %2465 = vmatpush1.bf16.msra.mxu0 0
        %2466 = vmatprep.subr.bf16.mxu0 0
        %2467 = vmatpush1.bf16.msra.mxu0 0
        %2468 = vmatprep.subr.bf16.mxu0 0
        %2469 = vmatpush1.bf16.msra.mxu0 0
        %2470 = vmatprep.subr.bf16.mxu0 0
        %2471 = vmatpush1.bf16.msra.mxu0 0
        %2472 = vmatprep.subr.bf16.mxu0 0
        %2473 = vmatpush1.bf16.msra.mxu0 0
        %2474 = vmatprep.subr.bf16.mxu0 0
        %2475 = vmatpush1.bf16.msra.mxu0 0
        %2476 = vmatprep.mubr.bf16.mxu0 0
        %2477 = vmatmul.mubr.bf16.gmra.mrb[0].mxu0 %v2433
        %v2478 = vpop.f32.mrb[0].mxu0
        %v2479 = vadd.f32 0.0, %v2478
        %v2480 = vpop.f32.mrb[0].mxu0
        %v2481 = vadd.f32 0.0, %v2480
        %v2482 = vpop.f32.mrb[0].mxu0
        %v2483 = vpop.f32.mrb[0].mxu0
        %2484 = vdwg.mxu0
        %2485 = vmatprep.subr.bf16.mxu0 0
        %2486 = vmatpush1.bf16.msra.mxu0 %v2442
        %2487 = vmatprep.subr.bf16.mxu0 0
        %2488 = vmatpush1.bf16.msra.mxu0 0
        %2489 = vmatprep.subr.bf16.mxu0 0
        %2490 = vmatpush1.bf16.msra.mxu0 0
        %2491 = vmatprep.subr.bf16.mxu0 0
        %2492 = vmatpush1.bf16.msra.mxu0 0
        %2493 = vmatprep.subr.bf16.mxu0 0
        %2494 = vmatpush1.bf16.msra.mxu0 0
        %2495 = vmatprep.subr.bf16.mxu0 0
        %2496 = vmatpush1.bf16.msra.mxu0 0
        %2497 = vmatprep.subr.bf16.mxu0 0
        %2498 = vmatpush1.bf16.msra.mxu0 0
        %2499 = vmatprep.subr.bf16.mxu0 0
        %2500 = vmatpush1.bf16.msra.mxu0 0
        %2501 = vmatprep.subr.bf16.mxu0 0
        %2502 = vmatpush1.bf16.msra.mxu0 0
        %2503 = vmatprep.subr.bf16.mxu0 0
        %2504 = vmatpush1.bf16.msra.mxu0 0
        %2505 = vmatprep.subr.bf16.mxu0 0
        %2506 = vmatpush1.bf16.msra.mxu0 0
        %2507 = vmatprep.subr.bf16.mxu0 0
        %2508 = vmatpush1.bf16.msra.mxu0 0
        %2509 = vmatprep.subr.bf16.mxu0 0
        %2510 = vmatpush1.bf16.msra.mxu0 0
        %2511 = vmatprep.subr.bf16.mxu0 0
        %2512 = vmatpush1.bf16.msra.mxu0 0
        %2513 = vmatprep.subr.bf16.mxu0 0
        %2514 = vmatpush1.bf16.msra.mxu0 0
        %2515 = vmatprep.subr.bf16.mxu0 0
        %2516 = vmatpush1.bf16.msra.mxu0 0
        %2517 = vmatprep.mubr.bf16.mxu0 0
        %2518 = vmatmul.mubr.bf16.gmra.mrb[0].mxu0 %v2433
        %v2519 = vpop.f32.mrb[0].mxu0
        %v2520 = vadd.f32 0.0, %v2519
        %v2521 = vpop.f32.mrb[0].mxu0
        %v2522 = vpop.f32.mrb[0].mxu0
        %v2523 = vpop.f32.mrb[0].mxu0
        %2524 = vdwg.mxu0
        %2525 = vrot.lane.b32.xlu0 %v2417, 19
        %v2526 = vpop.permute.xlu0 %2525
        %2527 = vrot.lane.b32.xlu0 %v2418, 19
        %v2528 = vpop.permute.xlu0 %2527
        %2529 = vrot.lane.b32.xlu0 %v2419, 19
        %v2530 = vpop.permute.xlu0 %2529
        %2531 = vrot.lane.b32.xlu0 %v2420, 19
        %v2532 = vpop.permute.xlu0 %2531
        %v2533 = vsel %vm431, %v2526, %v2528
        %v2534 = vsel %vm431, %v2528, %v2530
        %v2535 = vsel %vm431, %v2530, %v2532
        %v2537 = vsel %vm328, %v2408, 0
        %v2540 = vsel %vm332, %v2533, 0
        %v2543 = vsel %vm332, %v2534, 0
        %v2546 = vsel %vm332, %v2535, 0
        %2548 = vmatprep.subr.bf16.mxu0 %v2543
        %2549 = vmatpush1.bf16.msra.mxu0 %v2540
        %2550 = vmatprep.subr.bf16.mxu0 0
        %2551 = vmatpush1.bf16.msra.mxu0 0
        %2552 = vmatprep.subr.bf16.mxu0 0
        %2553 = vmatpush1.bf16.msra.mxu0 0
        %2554 = vmatprep.subr.bf16.mxu0 0
        %2555 = vmatpush1.bf16.msra.mxu0 0
        %2556 = vmatprep.subr.bf16.mxu0 0
        %2557 = vmatpush1.bf16.msra.mxu0 0
        %2558 = vmatprep.subr.bf16.mxu0 0
        %2559 = vmatpush1.bf16.msra.mxu0 0
        %2560 = vmatprep.subr.bf16.mxu0 0
        %2561 = vmatpush1.bf16.msra.mxu0 0
        %2562 = vmatprep.subr.bf16.mxu0 0
        %2563 = vmatpush1.bf16.msra.mxu0 0
        %2564 = vmatprep.subr.bf16.mxu0 0
        %2565 = vmatpush1.bf16.msra.mxu0 0
        %2566 = vmatprep.subr.bf16.mxu0 0
        %2567 = vmatpush1.bf16.msra.mxu0 0
        %2568 = vmatprep.subr.bf16.mxu0 0
        %2569 = vmatpush1.bf16.msra.mxu0 0
        %2570 = vmatprep.subr.bf16.mxu0 0
        %2571 = vmatpush1.bf16.msra.mxu0 0
        %2572 = vmatprep.subr.bf16.mxu0 0
        %2573 = vmatpush1.bf16.msra.mxu0 0
        %2574 = vmatprep.subr.bf16.mxu0 0
        %2575 = vmatpush1.bf16.msra.mxu0 0
        %2576 = vmatprep.subr.bf16.mxu0 0
        %2577 = vmatpush1.bf16.msra.mxu0 0
        %2578 = vmatprep.subr.bf16.mxu0 0
        %2579 = vmatpush1.bf16.msra.mxu0 0
        %2580 = vmatprep.mubr.bf16.mxu0 0
        %2581 = vmatmul.mubr.bf16.gmra.mrb[0].mxu0 %v2537
        %v2582 = vpop.f32.mrb[0].mxu0
        %v2583 = vadd.f32 %v2479, %v2582
        %v2584 = vpop.f32.mrb[0].mxu0
        %v2585 = vadd.f32 %v2481, %v2584
        %v2586 = vpop.f32.mrb[0].mxu0
        %v2587 = vpop.f32.mrb[0].mxu0
        %2588 = vdwg.mxu0
        %2589 = vmatprep.subr.bf16.mxu0 0
        %2590 = vmatpush1.bf16.msra.mxu0 %v2546
        %2591 = vmatprep.subr.bf16.mxu0 0
        %2592 = vmatpush1.bf16.msra.mxu0 0
        %2593 = vmatprep.subr.bf16.mxu0 0
        %2594 = vmatpush1.bf16.msra.mxu0 0
        %2595 = vmatprep.subr.bf16.mxu0 0
        %2596 = vmatpush1.bf16.msra.mxu0 0
        %2597 = vmatprep.subr.bf16.mxu0 0
        %2598 = vmatpush1.bf16.msra.mxu0 0
        %2599 = vmatprep.subr.bf16.mxu0 0
        %2600 = vmatpush1.bf16.msra.mxu0 0
        %2601 = vmatprep.subr.bf16.mxu0 0
        %2602 = vmatpush1.bf16.msra.mxu0 0
        %2603 = vmatprep.subr.bf16.mxu0 0
        %2604 = vmatpush1.bf16.msra.mxu0 0
        %2605 = vmatprep.subr.bf16.mxu0 0
        %2606 = vmatpush1.bf16.msra.mxu0 0
        %2607 = vmatprep.subr.bf16.mxu0 0
        %2608 = vmatpush1.bf16.msra.mxu0 0
        %2609 = vmatprep.subr.bf16.mxu0 0
        %2610 = vmatpush1.bf16.msra.mxu0 0
        %2611 = vmatprep.subr.bf16.mxu0 0
        %2612 = vmatpush1.bf16.msra.mxu0 0
        %2613 = vmatprep.subr.bf16.mxu0 0
        %2614 = vmatpush1.bf16.msra.mxu0 0
        %2615 = vmatprep.subr.bf16.mxu0 0
        %2616 = vmatpush1.bf16.msra.mxu0 0
        %2617 = vmatprep.subr.bf16.mxu0 0
        %2618 = vmatpush1.bf16.msra.mxu0 0
        %2619 = vmatprep.subr.bf16.mxu0 0
        %2620 = vmatpush1.bf16.msra.mxu0 0
        %2621 = vmatprep.mubr.bf16.mxu0 0
        %2622 = vmatmul.mubr.bf16.gmra.mrb[0].mxu0 %v2537
        %v2623 = vpop.f32.mrb[0].mxu0
        %v2624 = vadd.f32 %v2520, %v2623
        %v2625 = vpop.f32.mrb[0].mxu0
        %v2626 = vpop.f32.mrb[0].mxu0
        %v2627 = vpop.f32.mrb[0].mxu0
        %2628 = vdwg.mxu0
        %s2629 = scalar_lea.vmem [#allocation9], 80
        %v2630 = vld [vmem:[%s2629] sm:$0xf]
        %2631 = vrot.lane.b32.xlu0 %v2417, 17
        %v2632 = vpop.permute.xlu0 %2631
        %2633 = vrot.lane.b32.xlu0 %v2418, 17
        %v2634 = vpop.permute.xlu0 %2633
        %2635 = vrot.lane.b32.xlu0 %v2419, 17
        %v2636 = vpop.permute.xlu0 %2635
        %2637 = vrot.lane.b32.xlu0 %v2420, 17
        %v2638 = vpop.permute.xlu0 %2637
        %v2639 = vsel %vm538, %v2632, %v2634
        %v2640 = vsel %vm538, %v2634, %v2636
        %v2641 = vsel %vm538, %v2636, %v2638
        %v2643 = vsel %vm328, %v2630, 0
        %v2646 = vsel %vm332, %v2639, 0
        %v2649 = vsel %vm332, %v2640, 0
        %v2652 = vsel %vm332, %v2641, 0
        %2654 = vmatprep.subr.bf16.mxu0 %v2649
        %2655 = vmatpush1.bf16.msra.mxu0 %v2646
        %2656 = vmatprep.subr.bf16.mxu0 0
        %2657 = vmatpush1.bf16.msra.mxu0 0
        %2658 = vmatprep.subr.bf16.mxu0 0
        %2659 = vmatpush1.bf16.msra.mxu0 0
        %2660 = vmatprep.subr.bf16.mxu0 0
        %2661 = vmatpush1.bf16.msra.mxu0 0
        %2662 = vmatprep.subr.bf16.mxu0 0
        %2663 = vmatpush1.bf16.msra.mxu0 0
        %2664 = vmatprep.subr.bf16.mxu0 0
        %2665 = vmatpush1.bf16.msra.mxu0 0
        %2666 = vmatprep.subr.bf16.mxu0 0
        %2667 = vmatpush1.bf16.msra.mxu0 0
        %2668 = vmatprep.subr.bf16.mxu0 0
        %2669 = vmatpush1.bf16.msra.mxu0 0
        %2670 = vmatprep.subr.bf16.mxu0 0
        %2671 = vmatpush1.bf16.msra.mxu0 0
        %2672 = vmatprep.subr.bf16.mxu0 0
        %2673 = vmatpush1.bf16.msra.mxu0 0
        %2674 = vmatprep.subr.bf16.mxu0 0
        %2675 = vmatpush1.bf16.msra.mxu0 0
        %2676 = vmatprep.subr.bf16.mxu0 0
        %2677 = vmatpush1.bf16.msra.mxu0 0
        %2678 = vmatprep.subr.bf16.mxu0 0
        %2679 = vmatpush1.bf16.msra.mxu0 0
        %2680 = vmatprep.subr.bf16.mxu0 0
        %2681 = vmatpush1.bf16.msra.mxu0 0
        %2682 = vmatprep.subr.bf16.mxu0 0
        %2683 = vmatpush1.bf16.msra.mxu0 0
        %2684 = vmatprep.subr.bf16.mxu0 0
        %2685 = vmatpush1.bf16.msra.mxu0 0
        %2686 = vmatprep.mubr.bf16.mxu0 0
        %2687 = vmatmul.mubr.bf16.gmra.mrb[0].mxu0 %v2643
        %v2688 = vpop.f32.mrb[0].mxu0
        %v2689 = vadd.f32 0.0, %v2688
        %v2690 = vpop.f32.mrb[0].mxu0
        %v2691 = vadd.f32 0.0, %v2690
        %v2692 = vpop.f32.mrb[0].mxu0
        %v2693 = vpop.f32.mrb[0].mxu0
        %2694 = vdwg.mxu0
        %2695 = vmatprep.subr.bf16.mxu0 0
        %2696 = vmatpush1.bf16.msra.mxu0 %v2652
        %2697 = vmatprep.subr.bf16.mxu0 0
        %2698 = vmatpush1.bf16.msra.mxu0 0
        %2699 = vmatprep.subr.bf16.mxu0 0
        %2700 = vmatpush1.bf16.msra.mxu0 0
        %2701 = vmatprep.subr.bf16.mxu0 0
        %2702 = vmatpush1.bf16.msra.mxu0 0
        %2703 = vmatprep.subr.bf16.mxu0 0
        %2704 = vmatpush1.bf16.msra.mxu0 0
        %2705 = vmatprep.subr.bf16.mxu0 0
        %2706 = vmatpush1.bf16.msra.mxu0 0
        %2707 = vmatprep.subr.bf16.mxu0 0
        %2708 = vmatpush1.bf16.msra.mxu0 0
        %2709 = vmatprep.subr.bf16.mxu0 0
        %2710 = vmatpush1.bf16.msra.mxu0 0
        %2711 = vmatprep.subr.bf16.mxu0 0
        %2712 = vmatpush1.bf16.msra.mxu0 0
        %2713 = vmatprep.subr.bf16.mxu0 0
        %2714 = vmatpush1.bf16.msra.mxu0 0
        %2715 = vmatprep.subr.bf16.mxu0 0
        %2716 = vmatpush1.bf16.msra.mxu0 0
        %2717 = vmatprep.subr.bf16.mxu0 0
        %2718 = vmatpush1.bf16.msra.mxu0 0
        %2719 = vmatprep.subr.bf16.mxu0 0
        %2720 = vmatpush1.bf16.msra.mxu0 0
        %2721 = vmatprep.subr.bf16.mxu0 0
        %2722 = vmatpush1.bf16.msra.mxu0 0
        %2723 = vmatprep.subr.bf16.mxu0 0
        %2724 = vmatpush1.bf16.msra.mxu0 0
        %2725 = vmatprep.subr.bf16.mxu0 0
        %2726 = vmatpush1.bf16.msra.mxu0 0
        %2727 = vmatprep.mubr.bf16.mxu0 0
        %2728 = vmatmul.mubr.bf16.gmra.mrb[0].mxu0 %v2643
        %v2729 = vpop.f32.mrb[0].mxu0
        %v2730 = vadd.f32 0.0, %v2729
        %v2731 = vpop.f32.mrb[0].mxu0
        %v2732 = vpop.f32.mrb[0].mxu0
        %v2733 = vpop.f32.mrb[0].mxu0
        %2734 = vdwg.mxu0
        %v2735 = vadd.f32 %v2583, %v2689
        %v2736 = vadd.f32 %v2585, %v2691
        %v2737 = vadd.f32 %v2624, %v2730
        %s2738 = scalar_lea.vmem [#allocation9], 84
        %v2739 = vld [vmem:[%s2738] sm:$0xf]
        %2740 = vrot.lane.b32.xlu0 %v2417, 1
        %v2741 = vpop.permute.xlu0 %2740
        %2742 = vrot.lane.b32.xlu0 %v2418, 1
        %v2743 = vpop.permute.xlu0 %2742
        %2744 = vrot.lane.b32.xlu0 %v2419, 1
        %v2745 = vpop.permute.xlu0 %2744
        %2746 = vrot.lane.b32.xlu0 %v2420, 1
        %v2747 = vpop.permute.xlu0 %2746
        %v2748 = vsel %vm648, %v2741, %v2743
        %v2749 = vsel %vm648, %v2743, %v2745
        %v2750 = vsel %vm648, %v2745, %v2747
        %v2752 = vsel %vm328, %v2739, 0
        %v2755 = vsel %vm332, %v2748, 0
        %v2758 = vsel %vm332, %v2749, 0
        %v2761 = vsel %vm332, %v2750, 0
        %2763 = vmatprep.subr.bf16.mxu0 %v2758
        %2764 = vmatpush1.bf16.msra.mxu0 %v2755
        %2765 = vmatprep.subr.bf16.mxu0 0
        %2766 = vmatpush1.bf16.msra.mxu0 0
        %2767 = vmatprep.subr.bf16.mxu0 0
        %2768 = vmatpush1.bf16.msra.mxu0 0
        %2769 = vmatprep.subr.bf16.mxu0 0
        %2770 = vmatpush1.bf16.msra.mxu0 0
        %2771 = vmatprep.subr.bf16.mxu0 0
        %2772 = vmatpush1.bf16.msra.mxu0 0
        %2773 = vmatprep.subr.bf16.mxu0 0
        %2774 = vmatpush1.bf16.msra.mxu0 0
        %2775 = vmatprep.subr.bf16.mxu0 0
        %2776 = vmatpush1.bf16.msra.mxu0 0
        %2777 = vmatprep.subr.bf16.mxu0 0
        %2778 = vmatpush1.bf16.msra.mxu0 0
        %2779 = vmatprep.subr.bf16.mxu0 0
        %2780 = vmatpush1.bf16.msra.mxu0 0
        %2781 = vmatprep.subr.bf16.mxu0 0
        %2782 = vmatpush1.bf16.msra.mxu0 0
        %2783 = vmatprep.subr.bf16.mxu0 0
        %2784 = vmatpush1.bf16.msra.mxu0 0
        %2785 = vmatprep.subr.bf16.mxu0 0
        %2786 = vmatpush1.bf16.msra.mxu0 0
        %2787 = vmatprep.subr.bf16.mxu0 0
        %2788 = vmatpush1.bf16.msra.mxu0 0
        %2789 = vmatprep.subr.bf16.mxu0 0
        %2790 = vmatpush1.bf16.msra.mxu0 0
        %2791 = vmatprep.subr.bf16.mxu0 0
        %2792 = vmatpush1.bf16.msra.mxu0 0
        %2793 = vmatprep.subr.bf16.mxu0 0
        %2794 = vmatpush1.bf16.msra.mxu0 0
        %2795 = vmatprep.mubr.bf16.mxu0 0
        %2796 = vmatmul.mubr.bf16.gmra.mrb[0].mxu0 %v2752
        %v2797 = vpop.f32.mrb[0].mxu0
        %v2798 = vadd.f32 0.0, %v2797
        %v2799 = vpop.f32.mrb[0].mxu0
        %v2800 = vadd.f32 0.0, %v2799
        %v2801 = vpop.f32.mrb[0].mxu0
        %v2802 = vpop.f32.mrb[0].mxu0
        %2803 = vdwg.mxu0
        %2804 = vmatprep.subr.bf16.mxu0 0
        %2805 = vmatpush1.bf16.msra.mxu0 %v2761
        %2806 = vmatprep.subr.bf16.mxu0 0
        %2807 = vmatpush1.bf16.msra.mxu0 0
        %2808 = vmatprep.subr.bf16.mxu0 0
        %2809 = vmatpush1.bf16.msra.mxu0 0
        %2810 = vmatprep.subr.bf16.mxu0 0
        %2811 = vmatpush1.bf16.msra.mxu0 0
        %2812 = vmatprep.subr.bf16.mxu0 0
        %2813 = vmatpush1.bf16.msra.mxu0 0
        %2814 = vmatprep.subr.bf16.mxu0 0
        %2815 = vmatpush1.bf16.msra.mxu0 0
        %2816 = vmatprep.subr.bf16.mxu0 0
        %2817 = vmatpush1.bf16.msra.mxu0 0
        %2818 = vmatprep.subr.bf16.mxu0 0
        %2819 = vmatpush1.bf16.msra.mxu0 0
        %2820 = vmatprep.subr.bf16.mxu0 0
        %2821 = vmatpush1.bf16.msra.mxu0 0
        %2822 = vmatprep.subr.bf16.mxu0 0
        %2823 = vmatpush1.bf16.msra.mxu0 0
        %2824 = vmatprep.subr.bf16.mxu0 0
        %2825 = vmatpush1.bf16.msra.mxu0 0
        %2826 = vmatprep.subr.bf16.mxu0 0
        %2827 = vmatpush1.bf16.msra.mxu0 0
        %2828 = vmatprep.subr.bf16.mxu0 0
        %2829 = vmatpush1.bf16.msra.mxu0 0
        %2830 = vmatprep.subr.bf16.mxu0 0
        %2831 = vmatpush1.bf16.msra.mxu0 0
        %2832 = vmatprep.subr.bf16.mxu0 0
        %2833 = vmatpush1.bf16.msra.mxu0 0
        %2834 = vmatprep.subr.bf16.mxu0 0
        %2835 = vmatpush1.bf16.msra.mxu0 0
        %2836 = vmatprep.mubr.bf16.mxu0 0
        %2837 = vmatmul.mubr.bf16.gmra.mrb[0].mxu0 %v2752
        %v2838 = vpop.f32.mrb[0].mxu0
        %v2839 = vadd.f32 0.0, %v2838
        %v2840 = vpop.f32.mrb[0].mxu0
        %v2841 = vpop.f32.mrb[0].mxu0
        %v2842 = vpop.f32.mrb[0].mxu0
        %2843 = vdwg.mxu0
        %v2844 = vadd.f32 %v2735, %v2798
        %v2845 = vadd.f32 %v2736, %v2800
        %v2846 = vadd.f32 %v2737, %v2839
        %v2847 = vld [vmem:[#allocation3 + $0x4] sm:$0xff]
        %v2848 = vld [vmem:[#allocation3 + $0xc] sm:$0xf]
        %s2849 = scalar_lea.vmem [#allocation9], 88
        %v2850 = vld [vmem:[%s2849] sm:$0xf]
        %v2853 = vunpack.c.l.b16 %v2847
        %v2854 = vunpack.c.h.b16 %v2847
        %v2855 = vunpack.c.l.b16 %v2848
        %v2856 = vpack.c.b16 %v2853, %v2853
        %v2857 = vpack.c.b16 %v2854, %v2854
        %v2858 = vpack.c.b16 %v2855, %v2855
        %v2860 = vsel %vm328, %v2850, 0
        %v2863 = vsel %vm332, %v2856, 0
        %v2866 = vsel %vm332, %v2857, 0
        %v2869 = vsel %vm332, %v2858, 0
        %2871 = vmatprep.subr.bf16.mxu0 %v2866
        %2872 = vmatpush1.bf16.msra.mxu0 %v2863
        %2873 = vmatprep.subr.bf16.mxu0 0
        %2874 = vmatpush1.bf16.msra.mxu0 0
        %2875 = vmatprep.subr.bf16.mxu0 0
        %2876 = vmatpush1.bf16.msra.mxu0 0
        %2877 = vmatprep.subr.bf16.mxu0 0
        %2878 = vmatpush1.bf16.msra.mxu0 0
        %2879 = vmatprep.subr.bf16.mxu0 0
        %2880 = vmatpush1.bf16.msra.mxu0 0
        %2881 = vmatprep.subr.bf16.mxu0 0
        %2882 = vmatpush1.bf16.msra.mxu0 0
        %2883 = vmatprep.subr.bf16.mxu0 0
        %2884 = vmatpush1.bf16.msra.mxu0 0
        %2885 = vmatprep.subr.bf16.mxu0 0
        %2886 = vmatpush1.bf16.msra.mxu0 0
        %2887 = vmatprep.subr.bf16.mxu0 0
        %2888 = vmatpush1.bf16.msra.mxu0 0
        %2889 = vmatprep.subr.bf16.mxu0 0
        %2890 = vmatpush1.bf16.msra.mxu0 0
        %2891 = vmatprep.subr.bf16.mxu0 0
        %2892 = vmatpush1.bf16.msra.mxu0 0
        %2893 = vmatprep.subr.bf16.mxu0 0
        %2894 = vmatpush1.bf16.msra.mxu0 0
        %2895 = vmatprep.subr.bf16.mxu0 0
        %2896 = vmatpush1.bf16.msra.mxu0 0
        %2897 = vmatprep.subr.bf16.mxu0 0
        %2898 = vmatpush1.bf16.msra.mxu0 0
        %2899 = vmatprep.subr.bf16.mxu0 0
        %2900 = vmatpush1.bf16.msra.mxu0 0
        %2901 = vmatprep.subr.bf16.mxu0 0
        %2902 = vmatpush1.bf16.msra.mxu0 0
        %2903 = vmatprep.mubr.bf16.mxu0 0
        %2904 = vmatmul.mubr.bf16.gmra.mrb[0].mxu0 %v2860
        %v2905 = vpop.f32.mrb[0].mxu0
        %v2906 = vadd.f32 0.0, %v2905
        %v2907 = vpop.f32.mrb[0].mxu0
        %v2908 = vadd.f32 0.0, %v2907
        %v2909 = vpop.f32.mrb[0].mxu0
        %v2910 = vpop.f32.mrb[0].mxu0
        %2911 = vdwg.mxu0
        %2912 = vmatprep.subr.bf16.mxu0 0
        %2913 = vmatpush1.bf16.msra.mxu0 %v2869
        %2914 = vmatprep.subr.bf16.mxu0 0
        %2915 = vmatpush1.bf16.msra.mxu0 0
        %2916 = vmatprep.subr.bf16.mxu0 0
        %2917 = vmatpush1.bf16.msra.mxu0 0
        %2918 = vmatprep.subr.bf16.mxu0 0
        %2919 = vmatpush1.bf16.msra.mxu0 0
        %2920 = vmatprep.subr.bf16.mxu0 0
        %2921 = vmatpush1.bf16.msra.mxu0 0
        %2922 = vmatprep.subr.bf16.mxu0 0
        %2923 = vmatpush1.bf16.msra.mxu0 0
        %2924 = vmatprep.subr.bf16.mxu0 0
        %2925 = vmatpush1.bf16.msra.mxu0 0
        %2926 = vmatprep.subr.bf16.mxu0 0
        %2927 = vmatpush1.bf16.msra.mxu0 0
        %2928 = vmatprep.subr.bf16.mxu0 0
        %2929 = vmatpush1.bf16.msra.mxu0 0
        %2930 = vmatprep.subr.bf16.mxu0 0
        %2931 = vmatpush1.bf16.msra.mxu0 0
        %2932 = vmatprep.subr.bf16.mxu0 0
        %2933 = vmatpush1.bf16.msra.mxu0 0
        %2934 = vmatprep.subr.bf16.mxu0 0
        %2935 = vmatpush1.bf16.msra.mxu0 0
        %2936 = vmatprep.subr.bf16.mxu0 0
        %2937 = vmatpush1.bf16.msra.mxu0 0
        %2938 = vmatprep.subr.bf16.mxu0 0
        %2939 = vmatpush1.bf16.msra.mxu0 0
        %2940 = vmatprep.subr.bf16.mxu0 0
        %2941 = vmatpush1.bf16.msra.mxu0 0
        %2942 = vmatprep.subr.bf16.mxu0 0
        %2943 = vmatpush1.bf16.msra.mxu0 0
        %2944 = vmatprep.mubr.bf16.mxu0 0
        %2945 = vmatmul.mubr.bf16.gmra.mrb[0].mxu0 %v2860
        %v2946 = vpop.f32.mrb[0].mxu0
        %v2947 = vadd.f32 0.0, %v2946
        %v2948 = vpop.f32.mrb[0].mxu0
        %v2949 = vpop.f32.mrb[0].mxu0
        %v2950 = vpop.f32.mrb[0].mxu0
        %2951 = vdwg.mxu0
        %v2952 = vadd.f32 %v2844, %v2906
        %v2953 = vadd.f32 %v2845, %v2908
        %v2954 = vadd.f32 %v2846, %v2947
        %v2955 = vld [vmem:[#allocation3 + $0x4] sm:$0xff]
        %v2956 = vld [vmem:[#allocation3 + $0xc] sm:$0xff]
        %s2957 = scalar_lea.vmem [#allocation9], 92
        %v2958 = vld [vmem:[%s2957] sm:$0xf]
        %v2961 = vunpack.c.l.b16 %v2955
        %v2962 = vunpack.c.h.b16 %v2955
        %v2963 = vunpack.c.l.b16 %v2956
        %v2964 = vunpack.c.h.b16 %v2956
        %v2965 = vpack.c.b16 %v2961, %v2961
        %v2966 = vpack.c.b16 %v2962, %v2962
        %v2967 = vpack.c.b16 %v2963, %v2963
        %v2968 = vpack.c.b16 %v2964, %v2964
        %2969 = vrot.lane.b32.xlu0 %v2965, 127
        %v2970 = vpop.permute.xlu0 %2969
        %2971 = vrot.lane.b32.xlu0 %v2966, 127
        %v2972 = vpop.permute.xlu0 %2971
        %2973 = vrot.lane.b32.xlu0 %v2967, 127
        %v2974 = vpop.permute.xlu0 %2973
        %2975 = vrot.lane.b32.xlu0 %v2968, 127
        %v2976 = vpop.permute.xlu0 %2975
        %v2977 = vsel %vm868, %v2970, %v2972
        %v2978 = vsel %vm868, %v2972, %v2974
        %v2979 = vsel %vm868, %v2974, %v2976
        %v2981 = vsel %vm328, %v2958, 0
        %v2984 = vsel %vm332, %v2977, 0
        %v2987 = vsel %vm332, %v2978, 0
        %v2990 = vsel %vm332, %v2979, 0
        %2992 = vmatprep.subr.bf16.mxu0 %v2987
        %2993 = vmatpush1.bf16.msra.mxu0 %v2984
        %2994 = vmatprep.subr.bf16.mxu0 0
        %2995 = vmatpush1.bf16.msra.mxu0 0
        %2996 = vmatprep.subr.bf16.mxu0 0
        %2997 = vmatpush1.bf16.msra.mxu0 0
        %2998 = vmatprep.subr.bf16.mxu0 0
        %2999 = vmatpush1.bf16.msra.mxu0 0
        %3000 = vmatprep.subr.bf16.mxu0 0
        %3001 = vmatpush1.bf16.msra.mxu0 0
        %3002 = vmatprep.subr.bf16.mxu0 0
        %3003 = vmatpush1.bf16.msra.mxu0 0
        %3004 = vmatprep.subr.bf16.mxu0 0
        %3005 = vmatpush1.bf16.msra.mxu0 0
        %3006 = vmatprep.subr.bf16.mxu0 0
        %3007 = vmatpush1.bf16.msra.mxu0 0
        %3008 = vmatprep.subr.bf16.mxu0 0
        %3009 = vmatpush1.bf16.msra.mxu0 0
        %3010 = vmatprep.subr.bf16.mxu0 0
        %3011 = vmatpush1.bf16.msra.mxu0 0
        %3012 = vmatprep.subr.bf16.mxu0 0
        %3013 = vmatpush1.bf16.msra.mxu0 0
        %3014 = vmatprep.subr.bf16.mxu0 0
        %3015 = vmatpush1.bf16.msra.mxu0 0
        %3016 = vmatprep.subr.bf16.mxu0 0
        %3017 = vmatpush1.bf16.msra.mxu0 0
        %3018 = vmatprep.subr.bf16.mxu0 0
        %3019 = vmatpush1.bf16.msra.mxu0 0
        %3020 = vmatprep.subr.bf16.mxu0 0
        %3021 = vmatpush1.bf16.msra.mxu0 0
        %3022 = vmatprep.subr.bf16.mxu0 0
        %3023 = vmatpush1.bf16.msra.mxu0 0
        %3024 = vmatprep.mubr.bf16.mxu0 0
        %3025 = vmatmul.mubr.bf16.gmra.mrb[0].mxu0 %v2981
        %v3026 = vpop.f32.mrb[0].mxu0
        %v3027 = vadd.f32 0.0, %v3026
        %v3028 = vpop.f32.mrb[0].mxu0
        %v3029 = vadd.f32 0.0, %v3028
        %v3030 = vpop.f32.mrb[0].mxu0
        %v3031 = vpop.f32.mrb[0].mxu0
        %3032 = vdwg.mxu0
        %3033 = vmatprep.subr.bf16.mxu0 0
        %3034 = vmatpush1.bf16.msra.mxu0 %v2990
        %3035 = vmatprep.subr.bf16.mxu0 0
        %3036 = vmatpush1.bf16.msra.mxu0 0
        %3037 = vmatprep.subr.bf16.mxu0 0
        %3038 = vmatpush1.bf16.msra.mxu0 0
        %3039 = vmatprep.subr.bf16.mxu0 0
        %3040 = vmatpush1.bf16.msra.mxu0 0
        %3041 = vmatprep.subr.bf16.mxu0 0
        %3042 = vmatpush1.bf16.msra.mxu0 0
        %3043 = vmatprep.subr.bf16.mxu0 0
        %3044 = vmatpush1.bf16.msra.mxu0 0
        %3045 = vmatprep.subr.bf16.mxu0 0
        %3046 = vmatpush1.bf16.msra.mxu0 0
        %3047 = vmatprep.subr.bf16.mxu0 0
        %3048 = vmatpush1.bf16.msra.mxu0 0
        %3049 = vmatprep.subr.bf16.mxu0 0
        %3050 = vmatpush1.bf16.msra.mxu0 0
        %3051 = vmatprep.subr.bf16.mxu0 0
        %3052 = vmatpush1.bf16.msra.mxu0 0
        %3053 = vmatprep.subr.bf16.mxu0 0
        %3054 = vmatpush1.bf16.msra.mxu0 0
        %3055 = vmatprep.subr.bf16.mxu0 0
        %3056 = vmatpush1.bf16.msra.mxu0 0
        %3057 = vmatprep.subr.bf16.mxu0 0
        %3058 = vmatpush1.bf16.msra.mxu0 0
        %3059 = vmatprep.subr.bf16.mxu0 0
        %3060 = vmatpush1.bf16.msra.mxu0 0
        %3061 = vmatprep.subr.bf16.mxu0 0
        %3062 = vmatpush1.bf16.msra.mxu0 0
        %3063 = vmatprep.subr.bf16.mxu0 0
        %3064 = vmatpush1.bf16.msra.mxu0 0
        %3065 = vmatprep.mubr.bf16.mxu0 0
        %3066 = vmatmul.mubr.bf16.gmra.mrb[0].mxu0 %v2981
        %v3067 = vpop.f32.mrb[0].mxu0
        %v3068 = vadd.f32 0.0, %v3067
        %v3069 = vpop.f32.mrb[0].mxu0
        %v3070 = vpop.f32.mrb[0].mxu0
        %v3071 = vpop.f32.mrb[0].mxu0
        %3072 = vdwg.mxu0
        %v3073 = vadd.f32 %v2952, %v3027
        %v3074 = vadd.f32 %v2953, %v3029
        %v3075 = vadd.f32 %v2954, %v3068
        %s3076 = scalar_lea.vmem [#allocation9], 96
        %v3077 = vld [vmem:[%s3076] sm:$0xf]
        %3078 = vrot.lane.b32.xlu0 %v2965, 111
        %v3079 = vpop.permute.xlu0 %3078
        %3080 = vrot.lane.b32.xlu0 %v2966, 111
        %v3081 = vpop.permute.xlu0 %3080
        %3082 = vrot.lane.b32.xlu0 %v2967, 111
        %v3083 = vpop.permute.xlu0 %3082
        %3084 = vrot.lane.b32.xlu0 %v2968, 111
        %v3085 = vpop.permute.xlu0 %3084
        %v3086 = vsel %vm978, %v3079, %v3081
        %v3087 = vsel %vm978, %v3081, %v3083
        %v3088 = vsel %vm978, %v3083, %v3085
        %v3090 = vsel %vm328, %v3077, 0
        %v3093 = vsel %vm332, %v3086, 0
        %v3096 = vsel %vm332, %v3087, 0
        %v3099 = vsel %vm332, %v3088, 0
        %3101 = vmatprep.subr.bf16.mxu0 %v3096
        %3102 = vmatpush1.bf16.msra.mxu0 %v3093
        %3103 = vmatprep.subr.bf16.mxu0 0
        %3104 = vmatpush1.bf16.msra.mxu0 0
        %3105 = vmatprep.subr.bf16.mxu0 0
        %3106 = vmatpush1.bf16.msra.mxu0 0
        %3107 = vmatprep.subr.bf16.mxu0 0
        %3108 = vmatpush1.bf16.msra.mxu0 0
        %3109 = vmatprep.subr.bf16.mxu0 0
        %3110 = vmatpush1.bf16.msra.mxu0 0
        %3111 = vmatprep.subr.bf16.mxu0 0
        %3112 = vmatpush1.bf16.msra.mxu0 0
        %3113 = vmatprep.subr.bf16.mxu0 0
        %3114 = vmatpush1.bf16.msra.mxu0 0
        %3115 = vmatprep.subr.bf16.mxu0 0
        %3116 = vmatpush1.bf16.msra.mxu0 0
        %3117 = vmatprep.subr.bf16.mxu0 0
        %3118 = vmatpush1.bf16.msra.mxu0 0
        %3119 = vmatprep.subr.bf16.mxu0 0
        %3120 = vmatpush1.bf16.msra.mxu0 0
        %3121 = vmatprep.subr.bf16.mxu0 0
        %3122 = vmatpush1.bf16.msra.mxu0 0
        %3123 = vmatprep.subr.bf16.mxu0 0
        %3124 = vmatpush1.bf16.msra.mxu0 0
        %3125 = vmatprep.subr.bf16.mxu0 0
        %3126 = vmatpush1.bf16.msra.mxu0 0
        %3127 = vmatprep.subr.bf16.mxu0 0
        %3128 = vmatpush1.bf16.msra.mxu0 0
        %3129 = vmatprep.subr.bf16.mxu0 0
        %3130 = vmatpush1.bf16.msra.mxu0 0
        %3131 = vmatprep.subr.bf16.mxu0 0
        %3132 = vmatpush1.bf16.msra.mxu0 0
        %3133 = vmatprep.mubr.bf16.mxu0 0
        %3134 = vmatmul.mubr.bf16.gmra.mrb[0].mxu0 %v3090
        %v3135 = vpop.f32.mrb[0].mxu0
        %v3136 = vadd.f32 0.0, %v3135
        %v3137 = vpop.f32.mrb[0].mxu0
        %v3138 = vadd.f32 0.0, %v3137
        %v3139 = vpop.f32.mrb[0].mxu0
        %v3140 = vpop.f32.mrb[0].mxu0
        %3141 = vdwg.mxu0
        %3142 = vmatprep.subr.bf16.mxu0 0
        %3143 = vmatpush1.bf16.msra.mxu0 %v3099
        %3144 = vmatprep.subr.bf16.mxu0 0
        %3145 = vmatpush1.bf16.msra.mxu0 0
        %3146 = vmatprep.subr.bf16.mxu0 0
        %3147 = vmatpush1.bf16.msra.mxu0 0
        %3148 = vmatprep.subr.bf16.mxu0 0
        %3149 = vmatpush1.bf16.msra.mxu0 0
        %3150 = vmatprep.subr.bf16.mxu0 0
        %3151 = vmatpush1.bf16.msra.mxu0 0
        %3152 = vmatprep.subr.bf16.mxu0 0
        %3153 = vmatpush1.bf16.msra.mxu0 0
        %3154 = vmatprep.subr.bf16.mxu0 0
        %3155 = vmatpush1.bf16.msra.mxu0 0
        %3156 = vmatprep.subr.bf16.mxu0 0
        %3157 = vmatpush1.bf16.msra.mxu0 0
        %3158 = vmatprep.subr.bf16.mxu0 0
        %3159 = vmatpush1.bf16.msra.mxu0 0
        %3160 = vmatprep.subr.bf16.mxu0 0
        %3161 = vmatpush1.bf16.msra.mxu0 0
        %3162 = vmatprep.subr.bf16.mxu0 0
        %3163 = vmatpush1.bf16.msra.mxu0 0
        %3164 = vmatprep.subr.bf16.mxu0 0
        %3165 = vmatpush1.bf16.msra.mxu0 0
        %3166 = vmatprep.subr.bf16.mxu0 0
        %3167 = vmatpush1.bf16.msra.mxu0 0
        %3168 = vmatprep.subr.bf16.mxu0 0
        %3169 = vmatpush1.bf16.msra.mxu0 0
        %3170 = vmatprep.subr.bf16.mxu0 0
        %3171 = vmatpush1.bf16.msra.mxu0 0
        %3172 = vmatprep.subr.bf16.mxu0 0
        %3173 = vmatpush1.bf16.msra.mxu0 0
        %3174 = vmatprep.mubr.bf16.mxu0 0
        %3175 = vmatmul.mubr.bf16.gmra.mrb[0].mxu0 %v3090
        %v3176 = vpop.f32.mrb[0].mxu0
        %v3177 = vadd.f32 0.0, %v3176
        %v3178 = vpop.f32.mrb[0].mxu0
        %v3179 = vpop.f32.mrb[0].mxu0
        %v3180 = vpop.f32.mrb[0].mxu0
        %3181 = vdwg.mxu0
        %v3182 = vadd.f32 %v3073, %v3136
        %v3183 = vadd.f32 %v3074, %v3138
        %v3184 = vadd.f32 %v3075, %v3177
        %s3185 = scalar_lea.vmem [#allocation9], 100
        %v3186 = vld [vmem:[%s3185] sm:$0xf]
        %3187 = vrot.lane.b32.xlu0 %v2965, 110
        %v3188 = vpop.permute.xlu0 %3187
        %3189 = vrot.lane.b32.xlu0 %v2966, 110
        %v3190 = vpop.permute.xlu0 %3189
        %3191 = vrot.lane.b32.xlu0 %v2967, 110
        %v3192 = vpop.permute.xlu0 %3191
        %3193 = vrot.lane.b32.xlu0 %v2968, 110
        %v3194 = vpop.permute.xlu0 %3193
        %v3195 = vsel %vm1088, %v3188, %v3190
        %v3196 = vsel %vm1088, %v3190, %v3192
        %v3197 = vsel %vm1088, %v3192, %v3194
        %v3199 = vsel %vm328, %v3186, 0
        %v3202 = vsel %vm332, %v3195, 0
        %v3205 = vsel %vm332, %v3196, 0
        %v3208 = vsel %vm332, %v3197, 0
        %3210 = vmatprep.subr.bf16.mxu0 %v3205
        %3211 = vmatpush1.bf16.msra.mxu0 %v3202
        %3212 = vmatprep.subr.bf16.mxu0 0
        %3213 = vmatpush1.bf16.msra.mxu0 0
        %3214 = vmatprep.subr.bf16.mxu0 0
        %3215 = vmatpush1.bf16.msra.mxu0 0
        %3216 = vmatprep.subr.bf16.mxu0 0
        %3217 = vmatpush1.bf16.msra.mxu0 0
        %3218 = vmatprep.subr.bf16.mxu0 0
        %3219 = vmatpush1.bf16.msra.mxu0 0
        %3220 = vmatprep.subr.bf16.mxu0 0
        %3221 = vmatpush1.bf16.msra.mxu0 0
        %3222 = vmatprep.subr.bf16.mxu0 0
        %3223 = vmatpush1.bf16.msra.mxu0 0
        %3224 = vmatprep.subr.bf16.mxu0 0
        %3225 = vmatpush1.bf16.msra.mxu0 0
        %3226 = vmatprep.subr.bf16.mxu0 0
        %3227 = vmatpush1.bf16.msra.mxu0 0
        %3228 = vmatprep.subr.bf16.mxu0 0
        %3229 = vmatpush1.bf16.msra.mxu0 0
        %3230 = vmatprep.subr.bf16.mxu0 0
        %3231 = vmatpush1.bf16.msra.mxu0 0
        %3232 = vmatprep.subr.bf16.mxu0 0
        %3233 = vmatpush1.bf16.msra.mxu0 0
        %3234 = vmatprep.subr.bf16.mxu0 0
        %3235 = vmatpush1.bf16.msra.mxu0 0
        %3236 = vmatprep.subr.bf16.mxu0 0
        %3237 = vmatpush1.bf16.msra.mxu0 0
        %3238 = vmatprep.subr.bf16.mxu0 0
        %3239 = vmatpush1.bf16.msra.mxu0 0
        %3240 = vmatprep.subr.bf16.mxu0 0
        %3241 = vmatpush1.bf16.msra.mxu0 0
        %3242 = vmatprep.mubr.bf16.mxu0 0
        %3243 = vmatmul.mubr.bf16.gmra.mrb[0].mxu0 %v3199
        %v3244 = vpop.f32.mrb[0].mxu0
        %v3245 = vadd.f32 0.0, %v3244
        %v3246 = vpop.f32.mrb[0].mxu0
        %v3247 = vadd.f32 0.0, %v3246
        %v3248 = vpop.f32.mrb[0].mxu0
        %v3249 = vpop.f32.mrb[0].mxu0
        %3250 = vdwg.mxu0
        %3251 = vmatprep.subr.bf16.mxu0 0
        %3252 = vmatpush1.bf16.msra.mxu0 %v3208
        %3253 = vmatprep.subr.bf16.mxu0 0
        %3254 = vmatpush1.bf16.msra.mxu0 0
        %3255 = vmatprep.subr.bf16.mxu0 0
        %3256 = vmatpush1.bf16.msra.mxu0 0
        %3257 = vmatprep.subr.bf16.mxu0 0
        %3258 = vmatpush1.bf16.msra.mxu0 0
        %3259 = vmatprep.subr.bf16.mxu0 0
        %3260 = vmatpush1.bf16.msra.mxu0 0
        %3261 = vmatprep.subr.bf16.mxu0 0
        %3262 = vmatpush1.bf16.msra.mxu0 0
        %3263 = vmatprep.subr.bf16.mxu0 0
        %3264 = vmatpush1.bf16.msra.mxu0 0
        %3265 = vmatprep.subr.bf16.mxu0 0
        %3266 = vmatpush1.bf16.msra.mxu0 0
        %3267 = vmatprep.subr.bf16.mxu0 0
        %3268 = vmatpush1.bf16.msra.mxu0 0
        %3269 = vmatprep.subr.bf16.mxu0 0
        %3270 = vmatpush1.bf16.msra.mxu0 0
        %3271 = vmatprep.subr.bf16.mxu0 0
        %3272 = vmatpush1.bf16.msra.mxu0 0
        %3273 = vmatprep.subr.bf16.mxu0 0
        %3274 = vmatpush1.bf16.msra.mxu0 0
        %3275 = vmatprep.subr.bf16.mxu0 0
        %3276 = vmatpush1.bf16.msra.mxu0 0
        %3277 = vmatprep.subr.bf16.mxu0 0
        %3278 = vmatpush1.bf16.msra.mxu0 0
        %3279 = vmatprep.subr.bf16.mxu0 0
        %3280 = vmatpush1.bf16.msra.mxu0 0
        %3281 = vmatprep.subr.bf16.mxu0 0
        %3282 = vmatpush1.bf16.msra.mxu0 0
        %3283 = vmatprep.mubr.bf16.mxu0 0
        %3284 = vmatmul.mubr.bf16.gmra.mrb[0].mxu0 %v3199
        %v3285 = vpop.f32.mrb[0].mxu0
        %v3286 = vadd.f32 0.0, %v3285
        %v3287 = vpop.f32.mrb[0].mxu0
        %v3288 = vpop.f32.mrb[0].mxu0
        %v3289 = vpop.f32.mrb[0].mxu0
        %3290 = vdwg.mxu0
        %v3291 = vadd.f32 %v3182, %v3245
        %v3292 = vadd.f32 %v3183, %v3247
        %v3293 = vadd.f32 %v3184, %v3286
        %s3294 = scalar_lea.vmem [#allocation9], 104
        %v3295 = vld [vmem:[%s3294] sm:$0xf]
        %3296 = vrot.lane.b32.xlu0 %v2965, 109
        %v3297 = vpop.permute.xlu0 %3296
        %3298 = vrot.lane.b32.xlu0 %v2966, 109
        %v3299 = vpop.permute.xlu0 %3298
        %3300 = vrot.lane.b32.xlu0 %v2967, 109
        %v3301 = vpop.permute.xlu0 %3300
        %3302 = vrot.lane.b32.xlu0 %v2968, 109
        %v3303 = vpop.permute.xlu0 %3302
        %v3304 = vsel %vm1198, %v3297, %v3299
        %v3305 = vsel %vm1198, %v3299, %v3301
        %v3306 = vsel %vm1198, %v3301, %v3303
        %v3308 = vsel %vm328, %v3295, 0
        %v3311 = vsel %vm332, %v3304, 0
        %v3314 = vsel %vm332, %v3305, 0
        %v3317 = vsel %vm332, %v3306, 0
        %3319 = vmatprep.subr.bf16.mxu0 %v3314
        %3320 = vmatpush1.bf16.msra.mxu0 %v3311
        %3321 = vmatprep.subr.bf16.mxu0 0
        %3322 = vmatpush1.bf16.msra.mxu0 0
        %3323 = vmatprep.subr.bf16.mxu0 0
        %3324 = vmatpush1.bf16.msra.mxu0 0
        %3325 = vmatprep.subr.bf16.mxu0 0
        %3326 = vmatpush1.bf16.msra.mxu0 0
        %3327 = vmatprep.subr.bf16.mxu0 0
        %3328 = vmatpush1.bf16.msra.mxu0 0
        %3329 = vmatprep.subr.bf16.mxu0 0
        %3330 = vmatpush1.bf16.msra.mxu0 0
        %3331 = vmatprep.subr.bf16.mxu0 0
        %3332 = vmatpush1.bf16.msra.mxu0 0
        %3333 = vmatprep.subr.bf16.mxu0 0
        %3334 = vmatpush1.bf16.msra.mxu0 0
        %3335 = vmatprep.subr.bf16.mxu0 0
        %3336 = vmatpush1.bf16.msra.mxu0 0
        %3337 = vmatprep.subr.bf16.mxu0 0
        %3338 = vmatpush1.bf16.msra.mxu0 0
        %3339 = vmatprep.subr.bf16.mxu0 0
        %3340 = vmatpush1.bf16.msra.mxu0 0
        %3341 = vmatprep.subr.bf16.mxu0 0
        %3342 = vmatpush1.bf16.msra.mxu0 0
        %3343 = vmatprep.subr.bf16.mxu0 0
        %3344 = vmatpush1.bf16.msra.mxu0 0
        %3345 = vmatprep.subr.bf16.mxu0 0
        %3346 = vmatpush1.bf16.msra.mxu0 0
        %3347 = vmatprep.subr.bf16.mxu0 0
        %3348 = vmatpush1.bf16.msra.mxu0 0
        %3349 = vmatprep.subr.bf16.mxu0 0
        %3350 = vmatpush1.bf16.msra.mxu0 0
        %3351 = vmatprep.mubr.bf16.mxu0 0
        %3352 = vmatmul.mubr.bf16.gmra.mrb[0].mxu0 %v3308
        %v3353 = vpop.f32.mrb[0].mxu0
        %v3354 = vadd.f32 0.0, %v3353
        %v3355 = vpop.f32.mrb[0].mxu0
        %v3356 = vadd.f32 0.0, %v3355
        %v3357 = vpop.f32.mrb[0].mxu0
        %v3358 = vpop.f32.mrb[0].mxu0
        %3359 = vdwg.mxu0
        %3360 = vmatprep.subr.bf16.mxu0 0
        %3361 = vmatpush1.bf16.msra.mxu0 %v3317
        %3362 = vmatprep.subr.bf16.mxu0 0
        %3363 = vmatpush1.bf16.msra.mxu0 0
        %3364 = vmatprep.subr.bf16.mxu0 0
        %3365 = vmatpush1.bf16.msra.mxu0 0
        %3366 = vmatprep.subr.bf16.mxu0 0
        %3367 = vmatpush1.bf16.msra.mxu0 0
        %3368 = vmatprep.subr.bf16.mxu0 0
        %3369 = vmatpush1.bf16.msra.mxu0 0
        %3370 = vmatprep.subr.bf16.mxu0 0
        %3371 = vmatpush1.bf16.msra.mxu0 0
        %3372 = vmatprep.subr.bf16.mxu0 0
        %3373 = vmatpush1.bf16.msra.mxu0 0
        %3374 = vmatprep.subr.bf16.mxu0 0
        %3375 = vmatpush1.bf16.msra.mxu0 0
        %3376 = vmatprep.subr.bf16.mxu0 0
        %3377 = vmatpush1.bf16.msra.mxu0 0
        %3378 = vmatprep.subr.bf16.mxu0 0
        %3379 = vmatpush1.bf16.msra.mxu0 0
        %3380 = vmatprep.subr.bf16.mxu0 0
        %3381 = vmatpush1.bf16.msra.mxu0 0
        %3382 = vmatprep.subr.bf16.mxu0 0
        %3383 = vmatpush1.bf16.msra.mxu0 0
        %3384 = vmatprep.subr.bf16.mxu0 0
        %3385 = vmatpush1.bf16.msra.mxu0 0
        %3386 = vmatprep.subr.bf16.mxu0 0
        %3387 = vmatpush1.bf16.msra.mxu0 0
        %3388 = vmatprep.subr.bf16.mxu0 0
        %3389 = vmatpush1.bf16.msra.mxu0 0
        %3390 = vmatprep.subr.bf16.mxu0 0
        %3391 = vmatpush1.bf16.msra.mxu0 0
        %3392 = vmatprep.mubr.bf16.mxu0 0
        %3393 = vmatmul.mubr.bf16.gmra.mrb[0].mxu0 %v3308
        %v3394 = vpop.f32.mrb[0].mxu0
        %v3395 = vadd.f32 0.0, %v3394
        %v3396 = vpop.f32.mrb[0].mxu0
        %v3397 = vpop.f32.mrb[0].mxu0
        %v3398 = vpop.f32.mrb[0].mxu0
        %3399 = vdwg.mxu0
        %v3400 = vadd.f32 %v3291, %v3354
        %v3401 = vadd.f32 %v3292, %v3356
        %v3402 = vadd.f32 %v3293, %v3395
        %s3403 = scalar_lea.vmem [#allocation10], 32
        %v3404 = vld [vmem:[%s3403] sm:$0xff]
        %3406 = vset.pattern.permute.xlu0 0
        %3407 = vperm.xlu0 %3406, %v3404
        %v3408 = vpop.permute.xlu0 %3407
        %v3410 = vmul.f32 %v3400, %v3408
        %v3411 = vmul.f32 %v3401, %v3408
        %v3412 = vmul.f32 %v3402, %v3408
        %s3413 = scalar_lea.vmem [#allocation10], 40
        %v3414 = vld [vmem:[%s3413] sm:$0xff]
        %3416 = vset.pattern.permute.xlu0 0
        %3417 = vperm.xlu0 %3416, %v3414
        %v3418 = vpop.permute.xlu0 %3417
        %v3420 = vadd.f32 %v3410, %v3418
        %v3421 = vadd.f32 %v3411, %v3418
        %v3422 = vadd.f32 %v3412, %v3418
        %v3423 = vld [vmem:[%s252 + $0x8] sm:$0xff]
        %v3424 = vld [vmem:[%s252 + $0x10] sm:$0xff]
        %v3425 = vld [vmem:[%s252 + $0x18] sm:$0xff]
        %v3426 = vld [vmem:[#allocation12] sm:$0xf]
        %v3427 = vpack.c.bf16 %v3423, %v3423
        %v3428 = vpack.c.bf16 %v3424, %v3424
        %v3429 = vpack.c.bf16 %v3425, %v3425
        %v3431 = vsel %vm328, %v3426, 0
        %v3434 = vsel %vm332, %v3427, 0
        %v3437 = vsel %vm332, %v3428, 0
        %v3440 = vsel %vm332, %v3429, 0
        %3442 = vmatprep.subr.bf16.mxu0 %v3437
        %3443 = vmatpush1.bf16.msra.mxu0 %v3434
        %3444 = vmatprep.subr.bf16.mxu0 0
        %3445 = vmatpush1.bf16.msra.mxu0 0
        %3446 = vmatprep.subr.bf16.mxu0 0
        %3447 = vmatpush1.bf16.msra.mxu0 0
        %3448 = vmatprep.subr.bf16.mxu0 0
        %3449 = vmatpush1.bf16.msra.mxu0 0
        %3450 = vmatprep.subr.bf16.mxu0 0
        %3451 = vmatpush1.bf16.msra.mxu0 0
        %3452 = vmatprep.subr.bf16.mxu0 0
        %3453 = vmatpush1.bf16.msra.mxu0 0
        %3454 = vmatprep.subr.bf16.mxu0 0
        %3455 = vmatpush1.bf16.msra.mxu0 0
        %3456 = vmatprep.subr.bf16.mxu0 0
        %3457 = vmatpush1.bf16.msra.mxu0 0
        %3458 = vmatprep.subr.bf16.mxu0 0
        %3459 = vmatpush1.bf16.msra.mxu0 0
        %3460 = vmatprep.subr.bf16.mxu0 0
        %3461 = vmatpush1.bf16.msra.mxu0 0
        %3462 = vmatprep.subr.bf16.mxu0 0
        %3463 = vmatpush1.bf16.msra.mxu0 0
        %3464 = vmatprep.subr.bf16.mxu0 0
        %3465 = vmatpush1.bf16.msra.mxu0 0
        %3466 = vmatprep.subr.bf16.mxu0 0
        %3467 = vmatpush1.bf16.msra.mxu0 0
        %3468 = vmatprep.subr.bf16.mxu0 0
        %3469 = vmatpush1.bf16.msra.mxu0 0
        %3470 = vmatprep.subr.bf16.mxu0 0
        %3471 = vmatpush1.bf16.msra.mxu0 0
        %3472 = vmatprep.subr.bf16.mxu0 0
        %3473 = vmatpush1.bf16.msra.mxu0 0
        %3474 = vmatprep.mubr.bf16.mxu0 0
        %3475 = vmatmul.mubr.bf16.gmra.mrb[0].mxu0 %v3431
        %v3476 = vpop.f32.mrb[0].mxu0
        %v3477 = vadd.f32 0.0, %v3476
        %v3478 = vpop.f32.mrb[0].mxu0
        %v3479 = vadd.f32 0.0, %v3478
        %v3480 = vpop.f32.mrb[0].mxu0
        %v3481 = vpop.f32.mrb[0].mxu0
        %3482 = vdwg.mxu0
        %3483 = vmatprep.subr.bf16.mxu0 0
        %3484 = vmatpush1.bf16.msra.mxu0 %v3440
        %3485 = vmatprep.subr.bf16.mxu0 0
        %3486 = vmatpush1.bf16.msra.mxu0 0
        %3487 = vmatprep.subr.bf16.mxu0 0
        %3488 = vmatpush1.bf16.msra.mxu0 0
        %3489 = vmatprep.subr.bf16.mxu0 0
        %3490 = vmatpush1.bf16.msra.mxu0 0
        %3491 = vmatprep.subr.bf16.mxu0 0
        %3492 = vmatpush1.bf16.msra.mxu0 0
        %3493 = vmatprep.subr.bf16.mxu0 0
        %3494 = vmatpush1.bf16.msra.mxu0 0
        %3495 = vmatprep.subr.bf16.mxu0 0
        %3496 = vmatpush1.bf16.msra.mxu0 0
        %3497 = vmatprep.subr.bf16.mxu0 0
        %3498 = vmatpush1.bf16.msra.mxu0 0
        %3499 = vmatprep.subr.bf16.mxu0 0
        %3500 = vmatpush1.bf16.msra.mxu0 0
        %3501 = vmatprep.subr.bf16.mxu0 0
        %3502 = vmatpush1.bf16.msra.mxu0 0
        %3503 = vmatprep.subr.bf16.mxu0 0
        %3504 = vmatpush1.bf16.msra.mxu0 0
        %3505 = vmatprep.subr.bf16.mxu0 0
        %3506 = vmatpush1.bf16.msra.mxu0 0
        %3507 = vmatprep.subr.bf16.mxu0 0
        %3508 = vmatpush1.bf16.msra.mxu0 0
        %3509 = vmatprep.subr.bf16.mxu0 0
        %3510 = vmatpush1.bf16.msra.mxu0 0
        %3511 = vmatprep.subr.bf16.mxu0 0
        %3512 = vmatpush1.bf16.msra.mxu0 0
        %3513 = vmatprep.subr.bf16.mxu0 0
        %3514 = vmatpush1.bf16.msra.mxu0 0
        %3515 = vmatprep.mubr.bf16.mxu0 0
        %3516 = vmatmul.mubr.bf16.gmra.mrb[0].mxu0 %v3431
        %v3517 = vpop.f32.mrb[0].mxu0
        %v3518 = vadd.f32 0.0, %v3517
        %v3519 = vpop.f32.mrb[0].mxu0
        %v3520 = vpop.f32.mrb[0].mxu0
        %v3521 = vpop.f32.mrb[0].mxu0
        %3522 = vdwg.mxu0
        %s3523 = scalar_lea.vmem [#allocation10], 48
        %v3524 = vld [vmem:[%s3523] sm:$0xff]
        %3526 = vset.pattern.permute.xlu0 0
        %3527 = vperm.xlu0 %3526, %v3524
        %v3528 = vpop.permute.xlu0 %3527
        %v3530 = vmul.f32 %v3477, %v3528
        %v3531 = vmul.f32 %v3479, %v3528
        %v3532 = vmul.f32 %v3518, %v3528
        %s3533 = scalar_lea.vmem [#allocation10], 56
        %v3534 = vld [vmem:[%s3533] sm:$0xff]
        %3536 = vset.pattern.permute.xlu0 0
        %3537 = vperm.xlu0 %3536, %v3534
        %v3538 = vpop.permute.xlu0 %3537
        %v3540 = vadd.f32 %v3530, %v3538
        %v3541 = vadd.f32 %v3531, %v3538
        %v3542 = vadd.f32 %v3532, %v3538
        %v3543 = vadd.f32 %v3420, %v3540
        %v3544 = vadd.f32 %v3421, %v3541
        %v3545 = vadd.f32 %v3422, %v3542
        %vm3546 = vcmp.ge.f32.partialorder %v3543, 0.0
        %vm3547 = vcmp.ge.f32.partialorder %v3544, 0.0
        %vm3548 = vcmp.ge.f32.partialorder %v3545, 0.0
        %v3549 = vmul.f32 %v3543, 0.01
        %v3550 = vmul.f32 %v3544, 0.01
        %v3551 = vmul.f32 %v3545, 0.01
        %v3552 = vsel %vm3546, %v3543, %v3549
        %v3553 = vsel %vm3547, %v3544, %v3550
        %v3554 = vsel %vm3548, %v3545, %v3551
        %3555 = vst [vmem:[%s294] sm:$0xff] %v3552
        %3556 = vst [vmem:[%s294 + $0x8] sm:$0xff] %v3553
        %3557 = vst [vmem:[%s294 + $0x10] sm:$0xff] %v3554
        %s3558 = sand.u32 %s142, 1
        %s3559 = scalar_lea.sflag [#allocation6], %s3558
        %s3560 = sand.u32 %s142, 1
        %s3561 = smul.addr %s3560, 24
        %s3562 = scalar_lea.vmem [#allocation13], %s3561
        // Predicated region
        $region61: #{tpu_custom_call.1} parent=39 // pred_check
          %p3563 = pneg %p152
        $region62: #{tpu_custom_call.1} parent=39 // pred_check_branch
          %3565 = sbr.rel (%p3563) target = $region64
        $region63: #{tpu_custom_call.1} parent=39 // pred_region
          %s3567 = ssub.s32 384, 384
          %3568 = vsyncadd %s3559, %s3567
          %s3569 = smul.addr %s24, 3
          %s3570 = smul.addr %s3569, 128
          %s3571 = scalar_lea.hbm %s5, %s3570
          %s3573 = sshll.u32 %s3562, 4
          %s3574 = int_to_ptr.vmem [resolvable:$true] %s3573
          %3576 = dma.vmem_to_hbm [thread:$0]  %s3574, 384, %s3571, %s3559
        $region64: #{tpu_custom_call.1} parent=39 // pred_fallthru
          _
      $region40: #{tpu_custom_call.1} parent=5 // pred_fallthru
        _
      %p3577 = scmp.le.s32.totalorder 2, %s19
      // Predicated region
      $region65: #{tpu_custom_call.1} parent=5 // pred_check
        %p3578 = pneg %p3577
      $region66: #{tpu_custom_call.1} parent=5 // pred_check_branch
        %3580 = sbr.rel (%p3578) target = $region68
      $region67: #{tpu_custom_call.1} parent=5 // pred_region
        %s3581 = ssub.s32 %s19, 2
        // Predicated region
        $region69: #{tpu_custom_call.1} parent=67 // pred_check
          %p3582 = pneg %p158
        $region70: #{tpu_custom_call.1} parent=67 // pred_check_branch
          %3584 = sbr.rel (%p3582) target = $region72
        $region71: #{tpu_custom_call.1} parent=67 // pred_region
          %s3585 = sand.u32 %s143, 1
          %s3586 = scalar_lea.sflag [#allocation6], %s3585
          %s3587 = sand.u32 %s143, 1
          %s3588 = smul.addr %s3587, 24
          %s3589 = scalar_lea.vmem [#allocation13], %s3588
          %3590 = dma.done %s3586, 384
        $region72: #{tpu_custom_call.1} parent=67 // pred_fallthru
          _
      $region68: #{tpu_custom_call.1} parent=5 // pred_fallthru
        _
    $region6: #{tpu_custom_call.1} parent=1 // loop_footer
      %s23 = sadd.s32 1, %s19
    $region7: #{tpu_custom_call.1} parent=1 // loop_footer_branch
      %18 = sbr.rel target = $region3
    $region8: #{tpu_custom_call.1} parent=1 // loop_exit
      _
    %3591 = vsyncpa [#allocation5], 1
    %s3592 = scalar_lea.sflag [#allocation5], 1
    %3593 = vsyncpa %s3592, 1
    %3594 = vsyncpa [#allocation8], 1
    %3595 = vsyncpa [#allocation11], 1
    %3596 = vsyncpa [#allocation6], 1
    %s3597 = scalar_lea.sflag [#allocation6], 1
    %3598 = vsyncpa %s3597, 1

</llo_original>
